<compile_context>
chip_gen: v5e
topology: v5e:2x2
jax: 0.10.0
libtpu: 0.0.40
codegen_flags: <defaults>
</compile_context>

<pallas_src>
import math
import jax
import jax.numpy as jnp
from jax.experimental import pallas as pl
from jax.experimental.pallas import tpu as pltpu


# Lane-tile padding constants (one 128-lane vreg block per logical channel block).
GW = 128   # padded width of one dout-sized output block (z, r, update, h)
IP = 128   # padded width of activation inputs (x and state)


# ----------------------------- Pallas kernel -------------------------------

def make_decoder_kernel(layers, cheb_k):
    """Build the fused decoder kernel (all shapes static Python)."""
    K = cheb_k
    gsec = 2 * GW            # per-k gate block: [z (pad 128) | r (pad 128)]
    upd_off = K * gsec       # start of the update columns (128-aligned)

    def kernel(*refs):
        # refs = x, states, supp_blk, (w_big, ws_upd, b_gate, b_upd) * layers, h_out
        x_ref, states_ref, supp_ref = refs[0], refs[1], refs[2]
        w_refs = refs[3:3 + 4 * layers]
        h_ref = refs[3 + 4 * layers]

        # Hoist support loads: shared by all layers and by both GCNs.
        supps = [supp_ref[k] for k in range(K - 1)]          # each (B*N, B*N)

        cur = x_ref[...]                                     # (B*N, IP), zero-padded
        for l in range(layers):                              # static unroll over layers
            wbig_ref, wsu_ref, bg_ref, bu_ref = w_refs[4 * l:4 * (l + 1)]
            s = states_ref[l]                                # (B*N, IP), zero-padded

            # ONE fused projection: gate x-side + gate state-side + update x-side.
            # (state-rows x update-cols of W_big are zero, so update cols only see x.)
            inp = jnp.concatenate([cur, s], axis=-1)         # (B*N, 2*IP), lane-aligned concat
            proj = jnp.dot(inp, wbig_ref[...],
                           preferred_element_type=jnp.float32)   # (B*N, 3*K*GW)

            # ---- gate GCN: sum_k S_k @ proj_gate[k]  (S_0 == I handled analytically)
            g = proj[:, 0:gsec]
            for k in range(1, K):
                g = g + jnp.dot(supps[k - 1], proj[:, k * gsec:(k + 1) * gsec],
                                preferred_element_type=jnp.float32)
            zr = jax.nn.sigmoid(g + bg_ref[...])             # (B*N, 2*GW)
            z = zr[:, :GW]                                   # lane-aligned splits
            r = zr[:, GW:]

            # ---- update GCN on concat(x, z*state); x-side already sits in proj.
            zs = z * s                                       # zero padding preserved
            pc = jnp.dot(zs, wsu_ref[...],
                         preferred_element_type=jnp.float32) # (B*N, K*GW)
            u = proj[:, upd_off:upd_off + GW] + pc[:, 0:GW]  # k = 0 identity term
            for k in range(1, K):
                u = u + jnp.dot(
                    supps[k - 1],
                    proj[:, upd_off + k * GW:upd_off + (k + 1) * GW]
                    + pc[:, k * GW:(k + 1) * GW],
                    preferred_element_type=jnp.float32)
            hc = jnp.tanh(u + bu_ref[...])

            h = r * s + (1.0 - r) * hc                       # padding stays exactly 0
            h_ref[l] = h                                     # full-lane (128) unmasked store
            cur = h                                          # next layer input stays in VMEM

    return kernel


def gcrnn_decoder_pallas(xt, init_states, supp_stack, packed_params):
    """Full GCRNN_Decoder forward in one Pallas kernel.

    xt          : (B, N, din)
    init_states : (LAYERS, B, N, dout)
    supp_stack  : (K, N, N) Chebyshev supports INCLUDING the identity at k=0
    packed_params : list of per-layer tuples from pack_params_for_kernel()
    returns (current_inputs, output_hidden) like the PyTorch module.
    """
    B, N, din = xt.shape
    layers, _, _, dout = init_states.shape
    K = supp_stack.shape[0]
    BN = B * N
    assert din <= IP and dout <= GW, "pad widths assume din, dout <= 128"

    # Batch folded into sublanes; channels zero-padded to a full 128-lane tile.
    x_pad = jnp.zeros((BN, IP), jnp.float32).at[:, :din].set(xt.reshape(BN, din))
    states_pad = jnp.zeros((layers, BN, IP), jnp.float32).at[:, :, :dout].set(
        init_states.reshape(layers, BN, dout))

    # Block-diagonal supports over batch (identity k=0 handled in-kernel).
    supp_blk = jax.vmap(lambda s: jnp.kron(jnp.eye(B, dtype=s.dtype), s))(supp_stack[1:])

    flat_w = [w for lp in packed_params for w in lp]
    args = [x_pad, states_pad, supp_blk] + flat_w

    out_sds = jax.ShapeDtypeStruct((layers, BN, GW), jnp.float32)
    # VMEM budget derived from the actual resident buffers (+ headroom), not hard-coded.
    resident = sum(int(a.size) * a.dtype.itemsize for a in args) + layers * BN * GW * 4
    vmem_limit = int(min(100 << 20, max(8 << 20, 2 * resident + (2 << 20))))

    vmem_spec = pl.BlockSpec(memory_space=pltpu.MemorySpace.VMEM)
    kernel = make_decoder_kernel(layers, K)
    h_pad = pl.pallas_call(
        kernel,
        out_shape=out_sds,
        in_specs=[vmem_spec] * len(args),
        out_specs=vmem_spec,
        compiler_params=pltpu.CompilerParams(vmem_limit_bytes=vmem_limit),
    )(*args)

    h_all = h_pad[:, :, :dout].reshape(layers, B, N, dout)
    hidden = [h_all[l] for l in range(layers)]
    return hidden[-1], hidden


# ------------------------------- glue (JAX) --------------------------------

def cheb_supports(support, cheb_k):
    """support_set = [I, S, 2*S@prev - prevprev, ...] stacked to (K, N, N)."""
    assert cheb_k >= 2, "cheb_k >= 2 (as implied by the PyTorch GCN)"
    N = support.shape[0]
    supp = [jnp.eye(N, dtype=support.dtype), support]
    for _ in range(2, cheb_k):
        supp.append(2.0 * support @ supp[-1] - supp[-2])
    return jnp.stack(supp, axis=0)


def init_cell_params(key, din, dout, cheb_k):
    """Same parameterization as the PyTorch GCRNCell: gate GCN (out=2*dout) + update GCN."""
    C1 = din + dout
    kg, ku = jax.random.split(key)

    def xavier(k, fan_in, fan_out):
        std = math.sqrt(2.0 / (fan_in + fan_out))
        return std * jax.random.normal(k, (fan_in, fan_out), jnp.float32)

    return dict(
        w_gate=xavier(kg, cheb_k * C1, 2 * dout),
        b_gate=jnp.zeros((2 * dout,), jnp.float32),
        w_upd=xavier(ku, cheb_k * C1, dout),
        b_upd=jnp.zeros((dout,), jnp.float32),
    )


def pack_params_for_kernel(p, din, dout, cheb_k):
    """Repack the (K*C1, O) GCN weights into fused, 128-lane-padded layouts.

    w_big  : (2*IP, 3*K*GW)  rows [0:IP) = x side (first din rows meaningful),
                             rows [IP:2*IP) = state side (first dout rows; update cols ZERO).
                             cols = for each k: [z pad GW | r pad GW], then for each k: [upd pad GW]
    ws_upd : (IP,   K*GW)    (z*state)-side of the update GCN, k-major, each block padded to GW
    b_gate : (1, 2*GW)       [z bias pad GW | r bias pad GW]
    b_upd  : (1, GW)
    """
    K, C1 = cheb_k, din + dout
    gsec = 2 * GW
    upd_off = K * gsec
    ncols = K * gsec + K * GW

    wg = p["w_gate"].reshape(K, C1, 2 * dout)
    wu = p["w_upd"].reshape(K, C1, dout)

    w_big = jnp.zeros((2 * IP, ncols), jnp.float32)
    ws_upd = jnp.zeros((IP, K * GW), jnp.float32)
    for k in range(K):
        gb = k * gsec
        ub = upd_off + k * GW
        # gate, x rows
        w_big = w_big.at[0:din, gb:gb + dout].set(wg[k, :din, :dout])
        w_big = w_big.at[0:din, gb + GW:gb + GW + dout].set(wg[k, :din, dout:])
        # gate, state rows
        w_big = w_big.at[IP:IP + dout, gb:gb + dout].set(wg[k, din:, :dout])
        w_big = w_big.at[IP:IP + dout, gb + GW:gb + GW + dout].set(wg[k, din:, dout:])
        # update, x rows (state rows x update cols stay ZERO: z*state path uses ws_upd)
        w_big = w_big.at[0:din, ub:ub + dout].set(wu[k, :din, :])
        # update, (z*state) rows
        ws_upd = ws_upd.at[0:dout, k * GW:k * GW + dout].set(wu[k, din:, :])

    b_gate = jnp.zeros((1, gsec), jnp.float32)
    b_gate = b_gate.at[0, 0:dout].set(p["b_gate"][:dout])
    b_gate = b_gate.at[0, GW:GW + dout].set(p["b_gate"][dout:])
    b_upd = jnp.zeros((1, GW), jnp.float32).at[0, 0:dout].set(p["b_upd"])
    return (w_big, ws_upd, b_gate, b_upd)


# ------------------------- pure-JAX reference check -------------------------

def _gcn_ref(x, supp_stack, w, b):
    K = supp_stack.shape[0]
    xg = jnp.concatenate(
        [jnp.einsum("nm,bmc->bnc", supp_stack[k], x) for k in range(K)], axis=-1)
    return jnp.einsum("bni,io->bno", xg, w) + b


def _cell_ref(x, state, supp_stack, p, dout):
    ins = jnp.concatenate([x, state], axis=-1)
    zr = jax.nn.sigmoid(_gcn_ref(ins, supp_stack, p["w_gate"], p["b_gate"]))
    z, r = zr[..., :dout], zr[..., dout:]
    cand = jnp.concatenate([x, z * state], axis=-1)
    hc = jnp.tanh(_gcn_ref(cand, supp_stack, p["w_upd"], p["b_upd"]))
    return r * state + (1.0 - r) * hc


# ---------------------------------- main ------------------------------------

if __name__ == "__main__":
    B, N, DIN, DOUT, CHEB_K, LAYERS = 2, 16, 4, 32, 3, 2

    key = jax.random.PRNGKey(0)
    k_x, k_sup, k_st, k_p = jax.random.split(key, 4)

    xt = jax.random.normal(k_x, (B, N, DIN), jnp.float32)
    support = jax.random.normal(k_sup, (N, N), jnp.float32) / math.sqrt(N)
    init_states = jax.random.normal(k_st, (LAYERS, B, N, DOUT), jnp.float32)

    p_keys = jax.random.split(k_p, LAYERS)
    raw_params, packed_params = [], []
    for i in range(LAYERS):
        din_i = DIN if i == 0 else DOUT
        p = init_cell_params(p_keys[i], din_i, DOUT, CHEB_K)
        raw_params.append(p)
        packed_params.append(pack_params_for_kernel(p, din_i, DOUT, CHEB_K))

    supp_stack = cheb_supports(support, CHEB_K)

    out, hidden = gcrnn_decoder_pallas(xt, init_states, supp_stack, packed_params)
    out = jax.block_until_ready(out)
    hidden = [jax.block_until_ready(h) for h in hidden]

    # Reference (matches PyTorch op order exactly).
    cur = xt
    ref_hidden = []
    for i in range(LAYERS):
        cur = _cell_ref(cur, init_states[i], supp_stack, raw_params[i], DOUT)
        ref_hidden.append(cur)

    assert out.shape == (B, N, DOUT)
    assert all(h.shape == (B, N, DOUT) for h in hidden)
    for h, hr in zip(hidden, ref_hidden):
        assert jnp.allclose(h, hr, atol=1e-3, rtol=1e-3), "mismatch vs reference"
    assert jnp.allclose(out, cur, atol=1e-3, rtol=1e-3), "mismatch vs reference"

    print("KERNEL_OK")
</pallas_src>

<mosaic_0001>
module attributes {stable_mosaic.version = 11 : i64} {
  func.func @kernel(%arg0: memref<32x128xf32, #tpu.memory_space<vmem>>, %arg1: memref<2x32x128xf32, #tpu.memory_space<vmem>>, %arg2: memref<2x32x32xf32, #tpu.memory_space<vmem>>, %arg3: memref<256x1152xf32, #tpu.memory_space<vmem>>, %arg4: memref<128x384xf32, #tpu.memory_space<vmem>>, %arg5: memref<1x256xf32, #tpu.memory_space<vmem>>, %arg6: memref<1x128xf32, #tpu.memory_space<vmem>>, %arg7: memref<256x1152xf32, #tpu.memory_space<vmem>>, %arg8: memref<128x384xf32, #tpu.memory_space<vmem>>, %arg9: memref<1x256xf32, #tpu.memory_space<vmem>>, %arg10: memref<1x128xf32, #tpu.memory_space<vmem>>, %arg11: memref<2x32x128xf32, #tpu.memory_space<vmem>>) attributes {dimension_semantics = [], scalar_prefetch = 0 : i64, scratch_operands = 0 : i64, tpu.core_type = #tpu.core_type<tc>} {
    %c0 = arith.constant 0 : index
    %c0_0 = arith.constant 0 : index
    %c0_1 = arith.constant 0 : index
    %0 = vector.load %arg2[%c0, %c0_0, %c0_1] : memref<2x32x32xf32, #tpu.memory_space<vmem>>, vector<1x32x32xf32>
    %1 = vector.shape_cast %0 : vector<1x32x32xf32> to vector<32x32xf32>
    %c1 = arith.constant 1 : index
    %c0_2 = arith.constant 0 : index
    %c0_3 = arith.constant 0 : index
    %2 = vector.load %arg2[%c1, %c0_2, %c0_3] : memref<2x32x32xf32, #tpu.memory_space<vmem>>, vector<1x32x32xf32>
    %3 = vector.shape_cast %2 : vector<1x32x32xf32> to vector<32x32xf32>
    %c0_4 = arith.constant 0 : index
    %c0_5 = arith.constant 0 : index
    %4 = vector.load %arg0[%c0_4, %c0_5] : memref<32x128xf32, #tpu.memory_space<vmem>>, vector<32x128xf32>
    %c0_6 = arith.constant 0 : index
    %c0_7 = arith.constant 0 : index
    %c0_8 = arith.constant 0 : index
    %5 = vector.load %arg1[%c0_6, %c0_7, %c0_8] : memref<2x32x128xf32, #tpu.memory_space<vmem>>, vector<1x32x128xf32>
    %6 = vector.shape_cast %5 : vector<1x32x128xf32> to vector<32x128xf32>
    %7 = tpu.concatenate %4, %6 in 1 : vector<32x128xf32>, vector<32x128xf32> -> vector<32x256xf32>
    %c0_9 = arith.constant 0 : index
    %c0_10 = arith.constant 0 : index
    %8 = vector.load %arg3[%c0_9, %c0_10] : memref<256x1152xf32, #tpu.memory_space<vmem>>, vector<256x1152xf32>
    %cst = arith.constant dense<0.000000e+00> : vector<32x1152xf32>
    %9 = tpu.matmul %7, %8, %cst {dimension_numbers = #tpu.dot_dimension_numbers<[1], [0], [0], [1], [0, 0, 1, 1], [], []>} : vector<32x256xf32>, vector<256x1152xf32>, vector<32x1152xf32> -> vector<32x1152xf32>
    %10 = vector.extract_strided_slice %9 {offsets = [0, 0], sizes = [32, 256], strides = [1, 1]} : vector<32x1152xf32> to vector<32x256xf32>
    %11 = vector.extract_strided_slice %9 {offsets = [0, 256], sizes = [32, 256], strides = [1, 1]} : vector<32x1152xf32> to vector<32x256xf32>
    %cst_11 = arith.constant dense<0.000000e+00> : vector<32x256xf32>
    %12 = tpu.matmul %1, %11, %cst_11 {dimension_numbers = #tpu.dot_dimension_numbers<[1], [0], [0], [1], [0, 0, 1, 1], [], []>} : vector<32x32xf32>, vector<32x256xf32>, vector<32x256xf32> -> vector<32x256xf32>
    %13 = arith.addf %10, %12 : vector<32x256xf32>
    %14 = vector.extract_strided_slice %9 {offsets = [0, 512], sizes = [32, 256], strides = [1, 1]} : vector<32x1152xf32> to vector<32x256xf32>
    %cst_12 = arith.constant dense<0.000000e+00> : vector<32x256xf32>
    %15 = tpu.matmul %3, %14, %cst_12 {dimension_numbers = #tpu.dot_dimension_numbers<[1], [0], [0], [1], [0, 0, 1, 1], [], []>} : vector<32x32xf32>, vector<32x256xf32>, vector<32x256xf32> -> vector<32x256xf32>
    %16 = arith.addf %13, %15 : vector<32x256xf32>
    %c0_13 = arith.constant 0 : index
    %c0_14 = arith.constant 0 : index
    %17 = vector.load %arg5[%c0_13, %c0_14] : memref<1x256xf32, #tpu.memory_space<vmem>>, vector<1x256xf32>
    %18 = vector.broadcast %17 : vector<1x256xf32> to vector<32x256xf32>
    %19 = arith.addf %16, %18 : vector<32x256xf32>
    %20 = arith.negf %19 : vector<32x256xf32>
    %21 = math.exp %20 : vector<32x256xf32>
    %cst_15 = arith.constant 1.000000e+00 : f32
    %22 = vector.broadcast %cst_15 : f32 to vector<32x256xf32>
    %23 = arith.addf %22, %21 : vector<32x256xf32>
    %24 = arith.divf %22, %23 : vector<32x256xf32>
    %25 = vector.extract_strided_slice %24 {offsets = [0, 0], sizes = [32, 128], strides = [1, 1]} : vector<32x256xf32> to vector<32x128xf32>
    %26 = vector.extract_strided_slice %24 {offsets = [0, 128], sizes = [32, 128], strides = [1, 1]} : vector<32x256xf32> to vector<32x128xf32>
    %27 = arith.mulf %25, %6 : vector<32x128xf32>
    %c0_16 = arith.constant 0 : index
    %c0_17 = arith.constant 0 : index
    %28 = vector.load %arg4[%c0_16, %c0_17] : memref<128x384xf32, #tpu.memory_space<vmem>>, vector<128x384xf32>
    %cst_18 = arith.constant dense<0.000000e+00> : vector<32x384xf32>
    %29 = tpu.matmul %27, %28, %cst_18 {dimension_numbers = #tpu.dot_dimension_numbers<[1], [0], [0], [1], [0, 0, 1, 1], [], []>} : vector<32x128xf32>, vector<128x384xf32>, vector<32x384xf32> -> vector<32x384xf32>
    %30 = vector.extract_strided_slice %9 {offsets = [0, 768], sizes = [32, 128], strides = [1, 1]} : vector<32x1152xf32> to vector<32x128xf32>
    %31 = vector.extract_strided_slice %29 {offsets = [0, 0], sizes = [32, 128], strides = [1, 1]} : vector<32x384xf32> to vector<32x128xf32>
    %32 = arith.addf %30, %31 : vector<32x128xf32>
    %33 = vector.extract_strided_slice %9 {offsets = [0, 896], sizes = [32, 128], strides = [1, 1]} : vector<32x1152xf32> to vector<32x128xf32>
    %34 = vector.extract_strided_slice %29 {offsets = [0, 128], sizes = [32, 128], strides = [1, 1]} : vector<32x384xf32> to vector<32x128xf32>
    %35 = arith.addf %33, %34 : vector<32x128xf32>
    %cst_19 = arith.constant dense<0.000000e+00> : vector<32x128xf32>
    %36 = tpu.matmul %1, %35, %cst_19 {dimension_numbers = #tpu.dot_dimension_numbers<[1], [0], [0], [1], [0, 0, 1, 1], [], []>} : vector<32x32xf32>, vector<32x128xf32>, vector<32x128xf32> -> vector<32x128xf32>
    %37 = arith.addf %32, %36 : vector<32x128xf32>
    %38 = vector.extract_strided_slice %9 {offsets = [0, 1024], sizes = [32, 128], strides = [1, 1]} : vector<32x1152xf32> to vector<32x128xf32>
    %39 = vector.extract_strided_slice %29 {offsets = [0, 256], sizes = [32, 128], strides = [1, 1]} : vector<32x384xf32> to vector<32x128xf32>
    %40 = arith.addf %38, %39 : vector<32x128xf32>
    %cst_20 = arith.constant dense<0.000000e+00> : vector<32x128xf32>
    %41 = tpu.matmul %3, %40, %cst_20 {dimension_numbers = #tpu.dot_dimension_numbers<[1], [0], [0], [1], [0, 0, 1, 1], [], []>} : vector<32x32xf32>, vector<32x128xf32>, vector<32x128xf32> -> vector<32x128xf32>
    %42 = arith.addf %37, %41 : vector<32x128xf32>
    %c0_21 = arith.constant 0 : index
    %c0_22 = arith.constant 0 : index
    %43 = vector.load %arg6[%c0_21, %c0_22] : memref<1x128xf32, #tpu.memory_space<vmem>>, vector<1x128xf32>
    %44 = vector.broadcast %43 : vector<1x128xf32> to vector<32x128xf32>
    %45 = arith.addf %42, %44 : vector<32x128xf32>
    %46 = math.tanh %45 : vector<32x128xf32>
    %47 = arith.mulf %26, %6 : vector<32x128xf32>
    %cst_23 = arith.constant 1.000000e+00 : f32
    %48 = vector.broadcast %cst_23 : f32 to vector<32x128xf32>
    %49 = arith.subf %48, %26 : vector<32x128xf32>
    %50 = arith.mulf %49, %46 : vector<32x128xf32>
    %51 = arith.addf %47, %50 : vector<32x128xf32>
    %c0_24 = arith.constant 0 : index
    %c0_25 = arith.constant 0 : index
    %c0_26 = arith.constant 0 : index
    %52 = vector.load %arg11[%c0_24, %c0_25, %c0_26] : memref<2x32x128xf32, #tpu.memory_space<vmem>>, vector<1x32x128xf32>
    %53 = vector.shape_cast %52 : vector<1x32x128xf32> to vector<32x128xf32>
    %54 = vector.shape_cast %51 : vector<32x128xf32> to vector<1x32x128xf32>
    tpu.vector_store %arg11[%c0_24, %c0_25, %c0_26], %54 {strides = array<i32>} : memref<2x32x128xf32, #tpu.memory_space<vmem>>, vector<1x32x128xf32>,
    %c1_27 = arith.constant 1 : index
    %c0_28 = arith.constant 0 : index
    %c0_29 = arith.constant 0 : index
    %55 = vector.load %arg1[%c1_27, %c0_28, %c0_29] : memref<2x32x128xf32, #tpu.memory_space<vmem>>, vector<1x32x128xf32>
    %56 = vector.shape_cast %55 : vector<1x32x128xf32> to vector<32x128xf32>
    %57 = tpu.concatenate %51, %56 in 1 : vector<32x128xf32>, vector<32x128xf32> -> vector<32x256xf32>
    %c0_30 = arith.constant 0 : index
    %c0_31 = arith.constant 0 : index
    %58 = vector.load %arg7[%c0_30, %c0_31] : memref<256x1152xf32, #tpu.memory_space<vmem>>, vector<256x1152xf32>
    %cst_32 = arith.constant dense<0.000000e+00> : vector<32x1152xf32>
    %59 = tpu.matmul %57, %58, %cst_32 {dimension_numbers = #tpu.dot_dimension_numbers<[1], [0], [0], [1], [0, 0, 1, 1], [], []>} : vector<32x256xf32>, vector<256x1152xf32>, vector<32x1152xf32> -> vector<32x1152xf32>
    %60 = vector.extract_strided_slice %59 {offsets = [0, 0], sizes = [32, 256], strides = [1, 1]} : vector<32x1152xf32> to vector<32x256xf32>
    %61 = vector.extract_strided_slice %59 {offsets = [0, 256], sizes = [32, 256], strides = [1, 1]} : vector<32x1152xf32> to vector<32x256xf32>
    %cst_33 = arith.constant dense<0.000000e+00> : vector<32x256xf32>
    %62 = tpu.matmul %1, %61, %cst_33 {dimension_numbers = #tpu.dot_dimension_numbers<[1], [0], [0], [1], [0, 0, 1, 1], [], []>} : vector<32x32xf32>, vector<32x256xf32>, vector<32x256xf32> -> vector<32x256xf32>
    %63 = arith.addf %60, %62 : vector<32x256xf32>
    %64 = vector.extract_strided_slice %59 {offsets = [0, 512], sizes = [32, 256], strides = [1, 1]} : vector<32x1152xf32> to vector<32x256xf32>
    %cst_34 = arith.constant dense<0.000000e+00> : vector<32x256xf32>
    %65 = tpu.matmul %3, %64, %cst_34 {dimension_numbers = #tpu.dot_dimension_numbers<[1], [0], [0], [1], [0, 0, 1, 1], [], []>} : vector<32x32xf32>, vector<32x256xf32>, vector<32x256xf32> -> vector<32x256xf32>
    %66 = arith.addf %63, %65 : vector<32x256xf32>
    %c0_35 = arith.constant 0 : index
    %c0_36 = arith.constant 0 : index
    %67 = vector.load %arg9[%c0_35, %c0_36] : memref<1x256xf32, #tpu.memory_space<vmem>>, vector<1x256xf32>
    %68 = vector.broadcast %67 : vector<1x256xf32> to vector<32x256xf32>
    %69 = arith.addf %66, %68 : vector<32x256xf32>
    %70 = arith.negf %69 : vector<32x256xf32>
    %71 = math.exp %70 : vector<32x256xf32>
    %cst_37 = arith.constant 1.000000e+00 : f32
    %72 = vector.broadcast %cst_37 : f32 to vector<32x256xf32>
    %73 = arith.addf %72, %71 : vector<32x256xf32>
    %74 = arith.divf %72, %73 : vector<32x256xf32>
    %75 = vector.extract_strided_slice %74 {offsets = [0, 0], sizes = [32, 128], strides = [1, 1]} : vector<32x256xf32> to vector<32x128xf32>
    %76 = vector.extract_strided_slice %74 {offsets = [0, 128], sizes = [32, 128], strides = [1, 1]} : vector<32x256xf32> to vector<32x128xf32>
    %77 = arith.mulf %75, %56 : vector<32x128xf32>
    %c0_38 = arith.constant 0 : index
    %c0_39 = arith.constant 0 : index
    %78 = vector.load %arg8[%c0_38, %c0_39] : memref<128x384xf32, #tpu.memory_space<vmem>>, vector<128x384xf32>
    %cst_40 = arith.constant dense<0.000000e+00> : vector<32x384xf32>
    %79 = tpu.matmul %77, %78, %cst_40 {dimension_numbers = #tpu.dot_dimension_numbers<[1], [0], [0], [1], [0, 0, 1, 1], [], []>} : vector<32x128xf32>, vector<128x384xf32>, vector<32x384xf32> -> vector<32x384xf32>
    %80 = vector.extract_strided_slice %59 {offsets = [0, 768], sizes = [32, 128], strides = [1, 1]} : vector<32x1152xf32> to vector<32x128xf32>
    %81 = vector.extract_strided_slice %79 {offsets = [0, 0], sizes = [32, 128], strides = [1, 1]} : vector<32x384xf32> to vector<32x128xf32>
    %82 = arith.addf %80, %81 : vector<32x128xf32>
    %83 = vector.extract_strided_slice %59 {offsets = [0, 896], sizes = [32, 128], strides = [1, 1]} : vector<32x1152xf32> to vector<32x128xf32>
    %84 = vector.extract_strided_slice %79 {offsets = [0, 128], sizes = [32, 128], strides = [1, 1]} : vector<32x384xf32> to vector<32x128xf32>
    %85 = arith.addf %83, %84 : vector<32x128xf32>
    %cst_41 = arith.constant dense<0.000000e+00> : vector<32x128xf32>
    %86 = tpu.matmul %1, %85, %cst_41 {dimension_numbers = #tpu.dot_dimension_numbers<[1], [0], [0], [1], [0, 0, 1, 1], [], []>} : vector<32x32xf32>, vector<32x128xf32>, vector<32x128xf32> -> vector<32x128xf32>
    %87 = arith.addf %82, %86 : vector<32x128xf32>
    %88 = vector.extract_strided_slice %59 {offsets = [0, 1024], sizes = [32, 128], strides = [1, 1]} : vector<32x1152xf32> to vector<32x128xf32>
    %89 = vector.extract_strided_slice %79 {offsets = [0, 256], sizes = [32, 128], strides = [1, 1]} : vector<32x384xf32> to vector<32x128xf32>
    %90 = arith.addf %88, %89 : vector<32x128xf32>
    %cst_42 = arith.constant dense<0.000000e+00> : vector<32x128xf32>
    %91 = tpu.matmul %3, %90, %cst_42 {dimension_numbers = #tpu.dot_dimension_numbers<[1], [0], [0], [1], [0, 0, 1, 1], [], []>} : vector<32x32xf32>, vector<32x128xf32>, vector<32x128xf32> -> vector<32x128xf32>
    %92 = arith.addf %87, %91 : vector<32x128xf32>
    %c0_43 = arith.constant 0 : index
    %c0_44 = arith.constant 0 : index
    %93 = vector.load %arg10[%c0_43, %c0_44] : memref<1x128xf32, #tpu.memory_space<vmem>>, vector<1x128xf32>
    %94 = vector.broadcast %93 : vector<1x128xf32> to vector<32x128xf32>
    %95 = arith.addf %92, %94 : vector<32x128xf32>
    %96 = math.tanh %95 : vector<32x128xf32>
    %97 = arith.mulf %76, %56 : vector<32x128xf32>
    %cst_45 = arith.constant 1.000000e+00 : f32
    %98 = vector.broadcast %cst_45 : f32 to vector<32x128xf32>
    %99 = arith.subf %98, %76 : vector<32x128xf32>
    %100 = arith.mulf %99, %96 : vector<32x128xf32>
    %101 = arith.addf %97, %100 : vector<32x128xf32>
    %c1_46 = arith.constant 1 : index
    %c0_47 = arith.constant 0 : index
    %c0_48 = arith.constant 0 : index
    %102 = vector.load %arg11[%c1_46, %c0_47, %c0_48] : memref<2x32x128xf32, #tpu.memory_space<vmem>>, vector<1x32x128xf32>
    %103 = vector.shape_cast %102 : vector<1x32x128xf32> to vector<32x128xf32>
    %104 = vector.shape_cast %101 : vector<32x128xf32> to vector<1x32x128xf32>
    tpu.vector_store %arg11[%c1_46, %c0_47, %c0_48], %104 {strides = array<i32>} : memref<2x32x128xf32, #tpu.memory_space<vmem>>, vector<1x32x128xf32>,
    return
  }
}

</mosaic_0001>

<llo_original>
// kernel: tpu_custom_call.1
$region0: #{tpu_custom_call.1}
  #allocation0 [shape = 'u32[]', space=smem, size = 0x4, offset = 0x4, fixed_abs, tag = 'smem constant byte address 0x4 - core index']
  #allocation1 [shape = 'u32[72,128]{1,0:T(1,128)}', space=vmem, size = 0x9000, scoped, tag = 'internal scratch']
  %s0 = inlined_call_operand.hbm [shape: f32[32,128], index: 0, kind: input, shape index: {}]
  %s1 = inlined_call_operand.hbm [shape: f32[2,32,128], index: 1, kind: input, shape index: {}]
  %s2 = inlined_call_operand.hbm [shape: f32[2,32,32], index: 2, kind: input, shape index: {}]
  %s3 = inlined_call_operand.hbm [shape: f32[256,1152], index: 3, kind: input, shape index: {}]
  %s4 = inlined_call_operand.hbm [shape: f32[128,384], index: 4, kind: input, shape index: {}]
  %s5 = inlined_call_operand.hbm [shape: f32[1,256], index: 5, kind: input, shape index: {}]
  %s6 = inlined_call_operand.hbm [shape: f32[1,128], index: 6, kind: input, shape index: {}]
  %s7 = inlined_call_operand.hbm [shape: f32[256,1152], index: 7, kind: input, shape index: {}]
  %s8 = inlined_call_operand.hbm [shape: f32[128,384], index: 8, kind: input, shape index: {}]
  %s9 = inlined_call_operand.hbm [shape: f32[1,256], index: 9, kind: input, shape index: {}]
  %s10 = inlined_call_operand.hbm [shape: f32[1,128], index: 10, kind: input, shape index: {}]
  %s11 = inlined_call_operand.hbm [shape: f32[2,32,128], index: 11, kind: output, shape index: {}]
  %s12 = sld [smem:[#allocation0]]
  $region98: #{tpu_custom_call.1} parent=0
    _
  %s14 = ssub.s32 1, %s12
  %s15 = scalar_select 0, %s14, %s12
  $region1: #{tpu_custom_call.1} parent=0
    #allocation2 [shape = 'u8[16384]{0}', space=vmem, size = 0x4000, scoped, tag = 'input window, operand 0, single buffered']
    #allocation3 [shape = 's32[1]{0}', space=sflag, size = 0x4, scoped, tag = 'scoped memory for tpu_custom_call.1']
    #allocation4 [shape = 's32[1]{0}', space=sflag, size = 0x4, scoped, tag = 'scoped memory for tpu_custom_call.1']
    #allocation5 [shape = 'u8[32768]{0}', space=vmem, size = 0x8000, scoped, tag = 'input window, operand 1, single buffered']
    #allocation6 [shape = 's32[1]{0}', space=sflag, size = 0x4, scoped, tag = 'scoped memory for tpu_custom_call.1']
    #allocation7 [shape = 'u8[32768]{0}', space=vmem, size = 0x8000, scoped, tag = 'input window, operand 2, single buffered']
    #allocation8 [shape = 'u8[1179648]{0}', space=vmem, size = 0x120000, scoped, tag = 'input window, operand 3, single buffered']
    #allocation9 [shape = 's32[1]{0}', space=sflag, size = 0x4, scoped, tag = 'scoped memory for tpu_custom_call.1']
    #allocation10 [shape = 'u8[196608]{0}', space=vmem, size = 0x30000, scoped, tag = 'input window, operand 4, single buffered']
    #allocation11 [shape = 'u8[1024]{0}', space=vmem, size = 0x400, scoped, tag = 'input window, operand 5, single buffered']
    #allocation12 [shape = 's32[1]{0}', space=sflag, size = 0x4, scoped, tag = 'scoped memory for tpu_custom_call.1']
    #allocation13 [shape = 'u8[512]{0}', space=vmem, size = 0x400, scoped, tag = 'input window, operand 6, single buffered']
    #allocation14 [shape = 'u8[1179648]{0}', space=vmem, size = 0x120000, scoped, tag = 'input window, operand 7, single buffered']
    #allocation15 [shape = 's32[1]{0}', space=sflag, size = 0x4, scoped, tag = 'scoped memory for tpu_custom_call.1']
    #allocation16 [shape = 'u8[196608]{0}', space=vmem, size = 0x30000, scoped, tag = 'input window, operand 8, single buffered']
    #allocation17 [shape = 'u8[1024]{0}', space=vmem, size = 0x400, scoped, tag = 'input window, operand 9, single buffered']
    #allocation18 [shape = 's32[1]{0}', space=sflag, size = 0x4, scoped, tag = 'scoped memory for tpu_custom_call.1']
    #allocation19 [shape = 'u8[512]{0}', space=vmem, size = 0x400, scoped, tag = 'input window, operand 10, single buffered']
    #allocation20 [shape = 'u8[32768]{0}', space=vmem, size = 0x8000, scoped, tag = 'output window, operand 0, single buffered']
    %16 = vsyncpa [#allocation3], 0
    %17 = vsyncpa [#allocation6], 0
    %18 = vsyncpa [#allocation9], 0
    %19 = vsyncpa [#allocation12], 0
    %20 = vsyncpa [#allocation15], 0
    %21 = vsyncpa [#allocation18], 0
    %22 = vsyncpa [#allocation4], 0
    // Predicated region
    $region2: #{tpu_custom_call.1} parent=1 // pred_check
      _
    $region3: #{tpu_custom_call.1} parent=1 // pred_check_branch
      %24 = sbr.rel (0) target = $region5
    $region4: #{tpu_custom_call.1} parent=1 // pred_region
      %26 = vsyncadd [#allocation3], 0
      %s27 = sshll.u32 %s0, 4
      %s28 = int_to_ptr.hbm [resolvable:$true] %s27
      %s29 = sshll.u32 [#allocation2], 4
      %s30 = int_to_ptr.vmem [resolvable:$true] %s29
      %35 = dma.hbm_to_vmem [thread:$0]  %s28, 512, %s30, [#allocation3], 128, 128, 8
    $region5: #{tpu_custom_call.1} parent=1 // pred_fallthru
      _
    // Predicated region
    $region6: #{tpu_custom_call.1} parent=1 // pred_check
      _
    $region7: #{tpu_custom_call.1} parent=1 // pred_check_branch
      %37 = sbr.rel (0) target = $region9
    $region8: #{tpu_custom_call.1} parent=1 // pred_region
      %39 = vsyncadd [#allocation6], 0
      %s40 = sshll.u32 %s1, 4
      %s41 = int_to_ptr.hbm [resolvable:$true] %s40
      %s42 = sshll.u32 [#allocation5], 4
      %s43 = int_to_ptr.vmem [resolvable:$true] %s42
      %48 = dma.hbm_to_vmem [thread:$0]  %s41, 1024, %s43, [#allocation6], 128, 128, 8
    $region9: #{tpu_custom_call.1} parent=1 // pred_fallthru
      _
    // Predicated region
    $region10: #{tpu_custom_call.1} parent=1 // pred_check
      _
    $region11: #{tpu_custom_call.1} parent=1 // pred_check_branch
      %50 = sbr.rel (0) target = $region13
    $region12: #{tpu_custom_call.1} parent=1 // pred_region
      %52 = vsyncadd [#allocation6], 0
      %s53 = sshll.u32 %s2, 4
      %s54 = int_to_ptr.hbm [resolvable:$true] %s53
      %s55 = sshll.u32 [#allocation7], 4
      %s56 = int_to_ptr.vmem [resolvable:$true] %s55
      %61 = dma.hbm_to_vmem [thread:$0]  %s54, 1024, %s56, [#allocation6], 128, 128, 8
    $region13: #{tpu_custom_call.1} parent=1 // pred_fallthru
      _
    // Predicated region
    $region14: #{tpu_custom_call.1} parent=1 // pred_check
      _
    $region15: #{tpu_custom_call.1} parent=1 // pred_check_branch
      %63 = sbr.rel (0) target = $region17
    $region16: #{tpu_custom_call.1} parent=1 // pred_region
      %65 = vsyncadd [#allocation9], 0
      %s66 = sshll.u32 %s3, 4
      %s67 = int_to_ptr.hbm [resolvable:$true] %s66
      %s68 = sshll.u32 [#allocation8], 4
      %s69 = int_to_ptr.vmem [resolvable:$true] %s68
      %74 = dma.hbm_to_vmem [thread:$0]  %s67, 36864, %s69, [#allocation9], 1152, 1152, 72
    $region17: #{tpu_custom_call.1} parent=1 // pred_fallthru
      _
    // Predicated region
    $region18: #{tpu_custom_call.1} parent=1 // pred_check
      _
    $region19: #{tpu_custom_call.1} parent=1 // pred_check_branch
      %76 = sbr.rel (0) target = $region21
    $region20: #{tpu_custom_call.1} parent=1 // pred_region
      %78 = vsyncadd [#allocation9], 0
      %s79 = sshll.u32 %s4, 4
      %s80 = int_to_ptr.hbm [resolvable:$true] %s79
      %s81 = sshll.u32 [#allocation10], 4
      %s82 = int_to_ptr.vmem [resolvable:$true] %s81
      %87 = dma.hbm_to_vmem [thread:$0]  %s80, 6144, %s82, [#allocation9], 384, 384, 24
    $region21: #{tpu_custom_call.1} parent=1 // pred_fallthru
      _
    // Predicated region
    $region22: #{tpu_custom_call.1} parent=1 // pred_check
      _
    $region23: #{tpu_custom_call.1} parent=1 // pred_check_branch
      %89 = sbr.rel (0) target = $region25
    $region24: #{tpu_custom_call.1} parent=1 // pred_region
      %91 = vsyncadd [#allocation12], 0
      %s93 = sshll.u32 %s5, 4
      %s94 = int_to_ptr.hbm [resolvable:$true] %s93
      %s95 = sshll.u32 [#allocation11], 4
      %s96 = int_to_ptr.vmem [resolvable:$true] %s95
      %98 = dma.hbm_to_vmem [thread:$0]  %s94, 32, %s96, [#allocation12]
    $region25: #{tpu_custom_call.1} parent=1 // pred_fallthru
      _
    // Predicated region
    $region26: #{tpu_custom_call.1} parent=1 // pred_check
      _
    $region27: #{tpu_custom_call.1} parent=1 // pred_check_branch
      %100 = sbr.rel (0) target = $region29
    $region28: #{tpu_custom_call.1} parent=1 // pred_region
      %102 = vsyncadd [#allocation12], 0
      %s104 = sshll.u32 %s6, 4
      %s105 = int_to_ptr.hbm [resolvable:$true] %s104
      %s106 = sshll.u32 [#allocation13], 4
      %s107 = int_to_ptr.vmem [resolvable:$true] %s106
      %109 = dma.hbm_to_vmem [thread:$0]  %s105, 16, %s107, [#allocation12]
    $region29: #{tpu_custom_call.1} parent=1 // pred_fallthru
      _
    // Predicated region
    $region30: #{tpu_custom_call.1} parent=1 // pred_check
      _
    $region31: #{tpu_custom_call.1} parent=1 // pred_check_branch
      %111 = sbr.rel (0) target = $region33
    $region32: #{tpu_custom_call.1} parent=1 // pred_region
      %113 = vsyncadd [#allocation15], 0
      %s114 = sshll.u32 %s7, 4
      %s115 = int_to_ptr.hbm [resolvable:$true] %s114
      %s116 = sshll.u32 [#allocation14], 4
      %s117 = int_to_ptr.vmem [resolvable:$true] %s116
      %122 = dma.hbm_to_vmem [thread:$0]  %s115, 36864, %s117, [#allocation15], 1152, 1152, 72
    $region33: #{tpu_custom_call.1} parent=1 // pred_fallthru
      _
    // Predicated region
    $region34: #{tpu_custom_call.1} parent=1 // pred_check
      _
    $region35: #{tpu_custom_call.1} parent=1 // pred_check_branch
      %124 = sbr.rel (0) target = $region37
    $region36: #{tpu_custom_call.1} parent=1 // pred_region
      %126 = vsyncadd [#allocation15], 0
      %s127 = sshll.u32 %s8, 4
      %s128 = int_to_ptr.hbm [resolvable:$true] %s127
      %s129 = sshll.u32 [#allocation16], 4
      %s130 = int_to_ptr.vmem [resolvable:$true] %s129
      %135 = dma.hbm_to_vmem [thread:$0]  %s128, 6144, %s130, [#allocation15], 384, 384, 24
    $region37: #{tpu_custom_call.1} parent=1 // pred_fallthru
      _
    // Predicated region
    $region38: #{tpu_custom_call.1} parent=1 // pred_check
      _
    $region39: #{tpu_custom_call.1} parent=1 // pred_check_branch
      %137 = sbr.rel (0) target = $region41
    $region40: #{tpu_custom_call.1} parent=1 // pred_region
      %139 = vsyncadd [#allocation18], 0
      %s141 = sshll.u32 %s9, 4
      %s142 = int_to_ptr.hbm [resolvable:$true] %s141
      %s143 = sshll.u32 [#allocation17], 4
      %s144 = int_to_ptr.vmem [resolvable:$true] %s143
      %146 = dma.hbm_to_vmem [thread:$0]  %s142, 32, %s144, [#allocation18]
    $region41: #{tpu_custom_call.1} parent=1 // pred_fallthru
      _
    // Predicated region
    $region42: #{tpu_custom_call.1} parent=1 // pred_check
      _
    $region43: #{tpu_custom_call.1} parent=1 // pred_check_branch
      %148 = sbr.rel (0) target = $region45
    $region44: #{tpu_custom_call.1} parent=1 // pred_region
      %150 = vsyncadd [#allocation18], 0
      %s152 = sshll.u32 %s10, 4
      %s153 = int_to_ptr.hbm [resolvable:$true] %s152
      %s154 = sshll.u32 [#allocation19], 4
      %s155 = int_to_ptr.vmem [resolvable:$true] %s154
      %157 = dma.hbm_to_vmem [thread:$0]  %s153, 16, %s155, [#allocation18]
    $region45: #{tpu_custom_call.1} parent=1 // pred_fallthru
      _
    // Predicated region
    $region46: #{tpu_custom_call.1} parent=1 // pred_check
      _
    $region47: #{tpu_custom_call.1} parent=1 // pred_check_branch
      %159 = sbr.rel (0) target = $region49
    $region48: #{tpu_custom_call.1} parent=1 // pred_region
      %161 = dma.done [#allocation3], 512
    $region49: #{tpu_custom_call.1} parent=1 // pred_fallthru
      _
    // Predicated region
    $region50: #{tpu_custom_call.1} parent=1 // pred_check
      _
    $region51: #{tpu_custom_call.1} parent=1 // pred_check_branch
      %163 = sbr.rel (0) target = $region53
    $region52: #{tpu_custom_call.1} parent=1 // pred_region
      %165 = dma.done [#allocation6], 1024
    $region53: #{tpu_custom_call.1} parent=1 // pred_fallthru
      _
    // Predicated region
    $region54: #{tpu_custom_call.1} parent=1 // pred_check
      _
    $region55: #{tpu_custom_call.1} parent=1 // pred_check_branch
      %167 = sbr.rel (0) target = $region57
    $region56: #{tpu_custom_call.1} parent=1 // pred_region
      %169 = dma.done [#allocation6], 1024
    $region57: #{tpu_custom_call.1} parent=1 // pred_fallthru
      _
    // Predicated region
    $region58: #{tpu_custom_call.1} parent=1 // pred_check
      _
    $region59: #{tpu_custom_call.1} parent=1 // pred_check_branch
      %171 = sbr.rel (0) target = $region61
    $region60: #{tpu_custom_call.1} parent=1 // pred_region
      %173 = dma.done [#allocation9], 36864
    $region61: #{tpu_custom_call.1} parent=1 // pred_fallthru
      _
    // Predicated region
    $region62: #{tpu_custom_call.1} parent=1 // pred_check
      _
    $region63: #{tpu_custom_call.1} parent=1 // pred_check_branch
      %175 = sbr.rel (0) target = $region65
    $region64: #{tpu_custom_call.1} parent=1 // pred_region
      %177 = dma.done [#allocation9], 6144
    $region65: #{tpu_custom_call.1} parent=1 // pred_fallthru
      _
    // Predicated region
    $region66: #{tpu_custom_call.1} parent=1 // pred_check
      _
    $region67: #{tpu_custom_call.1} parent=1 // pred_check_branch
      %179 = sbr.rel (0) target = $region69
    $region68: #{tpu_custom_call.1} parent=1 // pred_region
      %181 = dma.done [#allocation12], 32
    $region69: #{tpu_custom_call.1} parent=1 // pred_fallthru
      _
    // Predicated region
    $region70: #{tpu_custom_call.1} parent=1 // pred_check
      _
    $region71: #{tpu_custom_call.1} parent=1 // pred_check_branch
      %183 = sbr.rel (0) target = $region73
    $region72: #{tpu_custom_call.1} parent=1 // pred_region
      %185 = dma.done [#allocation12], 16
    $region73: #{tpu_custom_call.1} parent=1 // pred_fallthru
      _
    // Predicated region
    $region74: #{tpu_custom_call.1} parent=1 // pred_check
      _
    $region75: #{tpu_custom_call.1} parent=1 // pred_check_branch
      %187 = sbr.rel (0) target = $region77
    $region76: #{tpu_custom_call.1} parent=1 // pred_region
      %189 = dma.done [#allocation15], 36864
    $region77: #{tpu_custom_call.1} parent=1 // pred_fallthru
      _
    // Predicated region
    $region78: #{tpu_custom_call.1} parent=1 // pred_check
      _
    $region79: #{tpu_custom_call.1} parent=1 // pred_check_branch
      %191 = sbr.rel (0) target = $region81
    $region80: #{tpu_custom_call.1} parent=1 // pred_region
      %193 = dma.done [#allocation15], 6144
    $region81: #{tpu_custom_call.1} parent=1 // pred_fallthru
      _
    // Predicated region
    $region82: #{tpu_custom_call.1} parent=1 // pred_check
      _
    $region83: #{tpu_custom_call.1} parent=1 // pred_check_branch
      %195 = sbr.rel (0) target = $region85
    $region84: #{tpu_custom_call.1} parent=1 // pred_region
      %197 = dma.done [#allocation18], 32
    $region85: #{tpu_custom_call.1} parent=1 // pred_fallthru
      _
    // Predicated region
    $region86: #{tpu_custom_call.1} parent=1 // pred_check
      _
    $region87: #{tpu_custom_call.1} parent=1 // pred_check_branch
      %199 = sbr.rel (0) target = $region89
    $region88: #{tpu_custom_call.1} parent=1 // pred_region
      %201 = dma.done [#allocation18], 16
    $region89: #{tpu_custom_call.1} parent=1 // pred_fallthru
      _
    %v202 = vld [vmem:[#allocation7] sm:$0xff]
    %v203 = vld [vmem:[#allocation7 + $0x8] sm:$0xff]
    %v204 = vld [vmem:[#allocation7 + $0x10] sm:$0xff]
    %v205 = vld [vmem:[#allocation7 + $0x18] sm:$0xff]
    %s206 = scalar_lea.vmem [#allocation7], 32
    %v207 = vld [vmem:[%s206] sm:$0xff]
    %v208 = vld [vmem:[%s206 + $0x8] sm:$0xff]
    %v209 = vld [vmem:[%s206 + $0x10] sm:$0xff]
    %v210 = vld [vmem:[%s206 + $0x18] sm:$0xff]
    %v211 = vld [vmem:[#allocation2] sm:$0xff]
    %v212 = vld [vmem:[#allocation2 + $0x8] sm:$0xff]
    %v213 = vld [vmem:[#allocation2 + $0x10] sm:$0xff]
    %v214 = vld [vmem:[#allocation2 + $0x18] sm:$0xff]
    %v215 = vld [vmem:[#allocation5] sm:$0xff]
    %v216 = vld [vmem:[#allocation5 + $0x8] sm:$0xff]
    %v217 = vld [vmem:[#allocation5 + $0x10] sm:$0xff]
    %v218 = vld [vmem:[#allocation5 + $0x18] sm:$0xff]
    %v219 = vld [vmem:[#allocation8] sm:$0xff]
    %v220 = vld [vmem:[#allocation8 + $0x8] sm:$0xff]
    %v221 = vld [vmem:[#allocation8 + $0x10] sm:$0xff]
    %v222 = vld [vmem:[#allocation8 + $0x18] sm:$0xff]
    %v223 = vld [vmem:[#allocation8 + $0x20] sm:$0xff]
    %v224 = vld [vmem:[#allocation8 + $0x28] sm:$0xff]
    %v225 = vld [vmem:[#allocation8 + $0x30] sm:$0xff]
    %v226 = vld [vmem:[#allocation8 + $0x38] sm:$0xff]
    %v227 = vld [vmem:[#allocation8 + $0x40] sm:$0xff]
    %v228 = vld [vmem:[#allocation8 + $0x48] sm:$0xff]
    %v229 = vld [vmem:[#allocation8 + $0x50] sm:$0xff]
    %v230 = vld [vmem:[#allocation8 + $0x58] sm:$0xff]
    %v231 = vld [vmem:[#allocation8 + $0x60] sm:$0xff]
    %v232 = vld [vmem:[#allocation8 + $0x68] sm:$0xff]
    %v233 = vld [vmem:[#allocation8 + $0x70] sm:$0xff]
    %v234 = vld [vmem:[#allocation8 + $0x78] sm:$0xff]
    %v235 = vld [vmem:[#allocation8 + $0x80] sm:$0xff]
    %v236 = vld [vmem:[#allocation8 + $0x88] sm:$0xff]
    %v237 = vld [vmem:[#allocation8 + $0x90] sm:$0xff]
    %v238 = vld [vmem:[#allocation8 + $0x98] sm:$0xff]
    %v239 = vld [vmem:[#allocation8 + $0xa0] sm:$0xff]
    %v240 = vld [vmem:[#allocation8 + $0xa8] sm:$0xff]
    %v241 = vld [vmem:[#allocation8 + $0xb0] sm:$0xff]
    %v242 = vld [vmem:[#allocation8 + $0xb8] sm:$0xff]
    %v243 = vld [vmem:[#allocation8 + $0xc0] sm:$0xff]
    %v244 = vld [vmem:[#allocation8 + $0xc8] sm:$0xff]
    %v245 = vld [vmem:[#allocation8 + $0xd0] sm:$0xff]
    %v246 = vld [vmem:[#allocation8 + $0xd8] sm:$0xff]
    %v247 = vld [vmem:[#allocation8 + $0xe0] sm:$0xff]
    %v248 = vld [vmem:[#allocation8 + $0xe8] sm:$0xff]
    %v249 = vld [vmem:[#allocation8 + $0xf0] sm:$0xff]
    %v250 = vld [vmem:[#allocation8 + $0xf8] sm:$0xff]
    %v251 = vld [vmem:[#allocation8 + $0x100] sm:$0xff]
    %v252 = vld [vmem:[#allocation8 + $0x108] sm:$0xff]
    %v253 = vld [vmem:[#allocation8 + $0x110] sm:$0xff]
    %v254 = vld [vmem:[#allocation8 + $0x118] sm:$0xff]
    %v255 = vld [vmem:[#allocation8 + $0x120] sm:$0xff]
    %v256 = vld [vmem:[#allocation8 + $0x128] sm:$0xff]
    %v257 = vld [vmem:[#allocation8 + $0x130] sm:$0xff]
    %v258 = vld [vmem:[#allocation8 + $0x138] sm:$0xff]
    %v259 = vld [vmem:[#allocation8 + $0x140] sm:$0xff]
    %v260 = vld [vmem:[#allocation8 + $0x148] sm:$0xff]
    %v261 = vld [vmem:[#allocation8 + $0x150] sm:$0xff]
    %v262 = vld [vmem:[#allocation8 + $0x158] sm:$0xff]
    %v263 = vld [vmem:[#allocation8 + $0x160] sm:$0xff]
    %v264 = vld [vmem:[#allocation8 + $0x168] sm:$0xff]
    %v265 = vld [vmem:[#allocation8 + $0x170] sm:$0xff]
    %v266 = vld [vmem:[#allocation8 + $0x178] sm:$0xff]
    %v267 = vld [vmem:[#allocation8 + $0x180] sm:$0xff]
    %v268 = vld [vmem:[#allocation8 + $0x188] sm:$0xff]
    %v269 = vld [vmem:[#allocation8 + $0x190] sm:$0xff]
    %v270 = vld [vmem:[#allocation8 + $0x198] sm:$0xff]
    %v271 = vld [vmem:[#allocation8 + $0x1a0] sm:$0xff]
    %v272 = vld [vmem:[#allocation8 + $0x1a8] sm:$0xff]
    %v273 = vld [vmem:[#allocation8 + $0x1b0] sm:$0xff]
    %v274 = vld [vmem:[#allocation8 + $0x1b8] sm:$0xff]
    %v275 = vld [vmem:[#allocation8 + $0x1c0] sm:$0xff]
    %v276 = vld [vmem:[#allocation8 + $0x1c8] sm:$0xff]
    %v277 = vld [vmem:[#allocation8 + $0x1d0] sm:$0xff]
    %v278 = vld [vmem:[#allocation8 + $0x1d8] sm:$0xff]
    %v279 = vld [vmem:[#allocation8 + $0x1e0] sm:$0xff]
    %v280 = vld [vmem:[#allocation8 + $0x1e8] sm:$0xff]
    %v281 = vld [vmem:[#allocation8 + $0x1f0] sm:$0xff]
    %v282 = vld [vmem:[#allocation8 + $0x1f8] sm:$0xff]
    %v283 = vld [vmem:[#allocation8 + $0x200] sm:$0xff]
    %v284 = vld [vmem:[#allocation8 + $0x208] sm:$0xff]
    %v285 = vld [vmem:[#allocation8 + $0x210] sm:$0xff]
    %v286 = vld [vmem:[#allocation8 + $0x218] sm:$0xff]
    %v287 = vld [vmem:[#allocation8 + $0x220] sm:$0xff]
    %v288 = vld [vmem:[#allocation8 + $0x228] sm:$0xff]
    %v289 = vld [vmem:[#allocation8 + $0x230] sm:$0xff]
    %v290 = vld [vmem:[#allocation8 + $0x238] sm:$0xff]
    %v291 = vld [vmem:[#allocation8 + $0x240] sm:$0xff]
    %v292 = vld [vmem:[#allocation8 + $0x248] sm:$0xff]
    %v293 = vld [vmem:[#allocation8 + $0x250] sm:$0xff]
    %v294 = vld [vmem:[#allocation8 + $0x258] sm:$0xff]
    %v295 = vld [vmem:[#allocation8 + $0x260] sm:$0xff]
    %v296 = vld [vmem:[#allocation8 + $0x268] sm:$0xff]
    %v297 = vld [vmem:[#allocation8 + $0x270] sm:$0xff]
    %v298 = vld [vmem:[#allocation8 + $0x278] sm:$0xff]
    %v299 = vld [vmem:[#allocation8 + $0x280] sm:$0xff]
    %v300 = vld [vmem:[#allocation8 + $0x288] sm:$0xff]
    %v301 = vld [vmem:[#allocation8 + $0x290] sm:$0xff]
    %v302 = vld [vmem:[#allocation8 + $0x298] sm:$0xff]
    %v303 = vld [vmem:[#allocation8 + $0x2a0] sm:$0xff]
    %v304 = vld [vmem:[#allocation8 + $0x2a8] sm:$0xff]
    %v305 = vld [vmem:[#allocation8 + $0x2b0] sm:$0xff]
    %v306 = vld [vmem:[#allocation8 + $0x2b8] sm:$0xff]
    %v307 = vld [vmem:[#allocation8 + $0x2c0] sm:$0xff]
    %v308 = vld [vmem:[#allocation8 + $0x2c8] sm:$0xff]
    %v309 = vld [vmem:[#allocation8 + $0x2d0] sm:$0xff]
    %v310 = vld [vmem:[#allocation8 + $0x2d8] sm:$0xff]
    %v311 = vld [vmem:[#allocation8 + $0x2e0] sm:$0xff]
    %v312 = vld [vmem:[#allocation8 + $0x2e8] sm:$0xff]
    %v313 = vld [vmem:[#allocation8 + $0x2f0] sm:$0xff]
    %v314 = vld [vmem:[#allocation8 + $0x2f8] sm:$0xff]
    %v315 = vld [vmem:[#allocation8 + $0x300] sm:$0xff]
    %v316 = vld [vmem:[#allocation8 + $0x308] sm:$0xff]
    %v317 = vld [vmem:[#allocation8 + $0x310] sm:$0xff]
    %v318 = vld [vmem:[#allocation8 + $0x318] sm:$0xff]
    %v319 = vld [vmem:[#allocation8 + $0x320] sm:$0xff]
    %v320 = vld [vmem:[#allocation8 + $0x328] sm:$0xff]
    %v321 = vld [vmem:[#allocation8 + $0x330] sm:$0xff]
    %v322 = vld [vmem:[#allocation8 + $0x338] sm:$0xff]
    %v323 = vld [vmem:[#allocation8 + $0x340] sm:$0xff]
    %v324 = vld [vmem:[#allocation8 + $0x348] sm:$0xff]
    %v325 = vld [vmem:[#allocation8 + $0x350] sm:$0xff]
    %v326 = vld [vmem:[#allocation8 + $0x358] sm:$0xff]
    %v327 = vld [vmem:[#allocation8 + $0x360] sm:$0xff]
    %v328 = vld [vmem:[#allocation8 + $0x368] sm:$0xff]
    %v329 = vld [vmem:[#allocation8 + $0x370] sm:$0xff]
    %v330 = vld [vmem:[#allocation8 + $0x378] sm:$0xff]
    %v331 = vld [vmem:[#allocation8 + $0x380] sm:$0xff]
    %v332 = vld [vmem:[#allocation8 + $0x388] sm:$0xff]
    %v333 = vld [vmem:[#allocation8 + $0x390] sm:$0xff]
    %v334 = vld [vmem:[#allocation8 + $0x398] sm:$0xff]
    %v335 = vld [vmem:[#allocation8 + $0x3a0] sm:$0xff]
    %v336 = vld [vmem:[#allocation8 + $0x3a8] sm:$0xff]
    %v337 = vld [vmem:[#allocation8 + $0x3b0] sm:$0xff]
    %v338 = vld [vmem:[#allocation8 + $0x3b8] sm:$0xff]
    %v339 = vld [vmem:[#allocation8 + $0x3c0] sm:$0xff]
    %v340 = vld [vmem:[#allocation8 + $0x3c8] sm:$0xff]
    %v341 = vld [vmem:[#allocation8 + $0x3d0] sm:$0xff]
    %v342 = vld [vmem:[#allocation8 + $0x3d8] sm:$0xff]
    %v343 = vld [vmem:[#allocation8 + $0x3e0] sm:$0xff]
    %v344 = vld [vmem:[#allocation8 + $0x3e8] sm:$0xff]
    %v345 = vld [vmem:[#allocation8 + $0x3f0] sm:$0xff]
    %v346 = vld [vmem:[#allocation8 + $0x3f8] sm:$0xff]
    %v347 = vld [vmem:[#allocation8 + $0x400] sm:$0xff]
    %v348 = vld [vmem:[#allocation8 + $0x408] sm:$0xff]
    %v349 = vld [vmem:[#allocation8 + $0x410] sm:$0xff]
    %v350 = vld [vmem:[#allocation8 + $0x418] sm:$0xff]
    %v351 = vld [vmem:[#allocation8 + $0x420] sm:$0xff]
    %v352 = vld [vmem:[#allocation8 + $0x428] sm:$0xff]
    %v353 = vld [vmem:[#allocation8 + $0x430] sm:$0xff]
    %v354 = vld [vmem:[#allocation8 + $0x438] sm:$0xff]
    %v355 = vld [vmem:[#allocation8 + $0x440] sm:$0xff]
    %v356 = vld [vmem:[#allocation8 + $0x448] sm:$0xff]
    %v357 = vld [vmem:[#allocation8 + $0x450] sm:$0xff]
    %v358 = vld [vmem:[#allocation8 + $0x458] sm:$0xff]
    %v359 = vld [vmem:[#allocation8 + $0x460] sm:$0xff]
    %v360 = vld [vmem:[#allocation8 + $0x468] sm:$0xff]
    %v361 = vld [vmem:[#allocation8 + $0x470] sm:$0xff]
    %v362 = vld [vmem:[#allocation8 + $0x478] sm:$0xff]
    %v363 = vld [vmem:[#allocation8 + $0x480] sm:$0xff]
    %v364 = vld [vmem:[#allocation8 + $0x488] sm:$0xff]
    %v365 = vld [vmem:[#allocation8 + $0x490] sm:$0xff]
    %v366 = vld [vmem:[#allocation8 + $0x498] sm:$0xff]
    %v367 = vld [vmem:[#allocation8 + $0x4a0] sm:$0xff]
    %v368 = vld [vmem:[#allocation8 + $0x4a8] sm:$0xff]
    %v369 = vld [vmem:[#allocation8 + $0x4b0] sm:$0xff]
    %v370 = vld [vmem:[#allocation8 + $0x4b8] sm:$0xff]
    %v371 = vld [vmem:[#allocation8 + $0x4c0] sm:$0xff]
    %v372 = vld [vmem:[#allocation8 + $0x4c8] sm:$0xff]
    %v373 = vld [vmem:[#allocation8 + $0x4d0] sm:$0xff]
    %v374 = vld [vmem:[#allocation8 + $0x4d8] sm:$0xff]
    %v375 = vld [vmem:[#allocation8 + $0x4e0] sm:$0xff]
    %v376 = vld [vmem:[#allocation8 + $0x4e8] sm:$0xff]
    %v377 = vld [vmem:[#allocation8 + $0x4f0] sm:$0xff]
    %v378 = vld [vmem:[#allocation8 + $0x4f8] sm:$0xff]
    %v379 = vld [vmem:[#allocation8 + $0x500] sm:$0xff]
    %v380 = vld [vmem:[#allocation8 + $0x508] sm:$0xff]
    %v381 = vld [vmem:[#allocation8 + $0x510] sm:$0xff]
    %v382 = vld [vmem:[#allocation8 + $0x518] sm:$0xff]
    %v383 = vld [vmem:[#allocation8 + $0x520] sm:$0xff]
    %v384 = vld [vmem:[#allocation8 + $0x528] sm:$0xff]
    %v385 = vld [vmem:[#allocation8 + $0x530] sm:$0xff]
    %v386 = vld [vmem:[#allocation8 + $0x538] sm:$0xff]
    %v387 = vld [vmem:[#allocation8 + $0x540] sm:$0xff]
    %v388 = vld [vmem:[#allocation8 + $0x548] sm:$0xff]
    %v389 = vld [vmem:[#allocation8 + $0x550] sm:$0xff]
    %v390 = vld [vmem:[#allocation8 + $0x558] sm:$0xff]
    %v391 = vld [vmem:[#allocation8 + $0x560] sm:$0xff]
    %v392 = vld [vmem:[#allocation8 + $0x568] sm:$0xff]
    %v393 = vld [vmem:[#allocation8 + $0x570] sm:$0xff]
    %v394 = vld [vmem:[#allocation8 + $0x578] sm:$0xff]
    %v395 = vld [vmem:[#allocation8 + $0x580] sm:$0xff]
    %v396 = vld [vmem:[#allocation8 + $0x588] sm:$0xff]
    %v397 = vld [vmem:[#allocation8 + $0x590] sm:$0xff]
    %v398 = vld [vmem:[#allocation8 + $0x598] sm:$0xff]
    %v399 = vld [vmem:[#allocation8 + $0x5a0] sm:$0xff]
    %v400 = vld [vmem:[#allocation8 + $0x5a8] sm:$0xff]
    %v401 = vld [vmem:[#allocation8 + $0x5b0] sm:$0xff]
    %v402 = vld [vmem:[#allocation8 + $0x5b8] sm:$0xff]
    %v403 = vld [vmem:[#allocation8 + $0x5c0] sm:$0xff]
    %v404 = vld [vmem:[#allocation8 + $0x5c8] sm:$0xff]
    %v405 = vld [vmem:[#allocation8 + $0x5d0] sm:$0xff]
    %v406 = vld [vmem:[#allocation8 + $0x5d8] sm:$0xff]
    %v407 = vld [vmem:[#allocation8 + $0x5e0] sm:$0xff]
    %v408 = vld [vmem:[#allocation8 + $0x5e8] sm:$0xff]
    %v409 = vld [vmem:[#allocation8 + $0x5f0] sm:$0xff]
    %v410 = vld [vmem:[#allocation8 + $0x5f8] sm:$0xff]
    %v411 = vld [vmem:[#allocation8 + $0x600] sm:$0xff]
    %v412 = vld [vmem:[#allocation8 + $0x608] sm:$0xff]
    %v413 = vld [vmem:[#allocation8 + $0x610] sm:$0xff]
    %v414 = vld [vmem:[#allocation8 + $0x618] sm:$0xff]
    %v415 = vld [vmem:[#allocation8 + $0x620] sm:$0xff]
    %v416 = vld [vmem:[#allocation8 + $0x628] sm:$0xff]
    %v417 = vld [vmem:[#allocation8 + $0x630] sm:$0xff]
    %v418 = vld [vmem:[#allocation8 + $0x638] sm:$0xff]
    %v419 = vld [vmem:[#allocation8 + $0x640] sm:$0xff]
    %v420 = vld [vmem:[#allocation8 + $0x648] sm:$0xff]
    %v421 = vld [vmem:[#allocation8 + $0x650] sm:$0xff]
    %v422 = vld [vmem:[#allocation8 + $0x658] sm:$0xff]
    %v423 = vld [vmem:[#allocation8 + $0x660] sm:$0xff]
    %v424 = vld [vmem:[#allocation8 + $0x668] sm:$0xff]
    %v425 = vld [vmem:[#allocation8 + $0x670] sm:$0xff]
    %v426 = vld [vmem:[#allocation8 + $0x678] sm:$0xff]
    %v427 = vld [vmem:[#allocation8 + $0x680] sm:$0xff]
    %v428 = vld [vmem:[#allocation8 + $0x688] sm:$0xff]
    %v429 = vld [vmem:[#allocation8 + $0x690] sm:$0xff]
    %v430 = vld [vmem:[#allocation8 + $0x698] sm:$0xff]
    %v431 = vld [vmem:[#allocation8 + $0x6a0] sm:$0xff]
    %v432 = vld [vmem:[#allocation8 + $0x6a8] sm:$0xff]
    %v433 = vld [vmem:[#allocation8 + $0x6b0] sm:$0xff]
    %v434 = vld [vmem:[#allocation8 + $0x6b8] sm:$0xff]
    %v435 = vld [vmem:[#allocation8 + $0x6c0] sm:$0xff]
    %v436 = vld [vmem:[#allocation8 + $0x6c8] sm:$0xff]
    %v437 = vld [vmem:[#allocation8 + $0x6d0] sm:$0xff]
    %v438 = vld [vmem:[#allocation8 + $0x6d8] sm:$0xff]
    %v439 = vld [vmem:[#allocation8 + $0x6e0] sm:$0xff]
    %v440 = vld [vmem:[#allocation8 + $0x6e8] sm:$0xff]
    %v441 = vld [vmem:[#allocation8 + $0x6f0] sm:$0xff]
    %v442 = vld [vmem:[#allocation8 + $0x6f8] sm:$0xff]
    %v443 = vld [vmem:[#allocation8 + $0x700] sm:$0xff]
    %v444 = vld [vmem:[#allocation8 + $0x708] sm:$0xff]
    %v445 = vld [vmem:[#allocation8 + $0x710] sm:$0xff]
    %v446 = vld [vmem:[#allocation8 + $0x718] sm:$0xff]
    %v447 = vld [vmem:[#allocation8 + $0x720] sm:$0xff]
    %v448 = vld [vmem:[#allocation8 + $0x728] sm:$0xff]
    %v449 = vld [vmem:[#allocation8 + $0x730] sm:$0xff]
    %v450 = vld [vmem:[#allocation8 + $0x738] sm:$0xff]
    %v451 = vld [vmem:[#allocation8 + $0x740] sm:$0xff]
    %v452 = vld [vmem:[#allocation8 + $0x748] sm:$0xff]
    %v453 = vld [vmem:[#allocation8 + $0x750] sm:$0xff]
    %v454 = vld [vmem:[#allocation8 + $0x758] sm:$0xff]
    %v455 = vld [vmem:[#allocation8 + $0x760] sm:$0xff]
    %v456 = vld [vmem:[#allocation8 + $0x768] sm:$0xff]
    %v457 = vld [vmem:[#allocation8 + $0x770] sm:$0xff]
    %v458 = vld [vmem:[#allocation8 + $0x778] sm:$0xff]
    %v459 = vld [vmem:[#allocation8 + $0x780] sm:$0xff]
    %v460 = vld [vmem:[#allocation8 + $0x788] sm:$0xff]
    %v461 = vld [vmem:[#allocation8 + $0x790] sm:$0xff]
    %v462 = vld [vmem:[#allocation8 + $0x798] sm:$0xff]
    %v463 = vld [vmem:[#allocation8 + $0x7a0] sm:$0xff]
    %v464 = vld [vmem:[#allocation8 + $0x7a8] sm:$0xff]
    %v465 = vld [vmem:[#allocation8 + $0x7b0] sm:$0xff]
    %v466 = vld [vmem:[#allocation8 + $0x7b8] sm:$0xff]
    %v467 = vld [vmem:[#allocation8 + $0x7c0] sm:$0xff]
    %v468 = vld [vmem:[#allocation8 + $0x7c8] sm:$0xff]
    %v469 = vld [vmem:[#allocation8 + $0x7d0] sm:$0xff]
    %v470 = vld [vmem:[#allocation8 + $0x7d8] sm:$0xff]
    %v471 = vld [vmem:[#allocation8 + $0x7e0] sm:$0xff]
    %v472 = vld [vmem:[#allocation8 + $0x7e8] sm:$0xff]
    %v473 = vld [vmem:[#allocation8 + $0x7f0] sm:$0xff]
    %v474 = vld [vmem:[#allocation8 + $0x7f8] sm:$0xff]
    %v475 = vld [vmem:[#allocation8 + $0x800] sm:$0xff]
    %v476 = vld [vmem:[#allocation8 + $0x808] sm:$0xff]
    %v477 = vld [vmem:[#allocation8 + $0x810] sm:$0xff]
    %v478 = vld [vmem:[#allocation8 + $0x818] sm:$0xff]
    %v479 = vld [vmem:[#allocation8 + $0x820] sm:$0xff]
    %v480 = vld [vmem:[#allocation8 + $0x828] sm:$0xff]
    %v481 = vld [vmem:[#allocation8 + $0x830] sm:$0xff]
    %v482 = vld [vmem:[#allocation8 + $0x838] sm:$0xff]
    %v483 = vld [vmem:[#allocation8 + $0x840] sm:$0xff]
    %v484 = vld [vmem:[#allocation8 + $0x848] sm:$0xff]
    %v485 = vld [vmem:[#allocation8 + $0x850] sm:$0xff]
    %v486 = vld [vmem:[#allocation8 + $0x858] sm:$0xff]
    %v487 = vld [vmem:[#allocation8 + $0x860] sm:$0xff]
    %v488 = vld [vmem:[#allocation8 + $0x868] sm:$0xff]
    %v489 = vld [vmem:[#allocation8 + $0x870] sm:$0xff]
    %v490 = vld [vmem:[#allocation8 + $0x878] sm:$0xff]
    %v491 = vld [vmem:[#allocation8 + $0x880] sm:$0xff]
    %v492 = vld [vmem:[#allocation8 + $0x888] sm:$0xff]
    %v493 = vld [vmem:[#allocation8 + $0x890] sm:$0xff]
    %v494 = vld [vmem:[#allocation8 + $0x898] sm:$0xff]
    %v495 = vld [vmem:[#allocation8 + $0x8a0] sm:$0xff]
    %v496 = vld [vmem:[#allocation8 + $0x8a8] sm:$0xff]
    %v497 = vld [vmem:[#allocation8 + $0x8b0] sm:$0xff]
    %v498 = vld [vmem:[#allocation8 + $0x8b8] sm:$0xff]
    %v499 = vld [vmem:[#allocation8 + $0x8c0] sm:$0xff]
    %v500 = vld [vmem:[#allocation8 + $0x8c8] sm:$0xff]
    %v501 = vld [vmem:[#allocation8 + $0x8d0] sm:$0xff]
    %v502 = vld [vmem:[#allocation8 + $0x8d8] sm:$0xff]
    %v503 = vld [vmem:[#allocation8 + $0x8e0] sm:$0xff]
    %v504 = vld [vmem:[#allocation8 + $0x8e8] sm:$0xff]
    %v505 = vld [vmem:[#allocation8 + $0x8f0] sm:$0xff]
    %v506 = vld [vmem:[#allocation8 + $0x8f8] sm:$0xff]
    %507 = vmatpush.msra.mxu0 %v354
    %508 = vmatpush.msra.mxu0 %v345
    %509 = vmatpush.msra.mxu0 %v336
    %510 = vmatpush.msra.mxu0 %v327
    %511 = vmatpush.msra.mxu0 %v318
    %512 = vmatpush.msra.mxu0 %v309
    %513 = vmatpush.msra.mxu0 %v300
    %514 = vmatpush.msra.mxu0 %v291
    %515 = vmatpush.msra.mxu0 %v282
    %516 = vmatpush.msra.mxu0 %v273
    %517 = vmatpush.msra.mxu0 %v264
    %518 = vmatpush.msra.mxu0 %v255
    %519 = vmatpush.msra.mxu0 %v246
    %520 = vmatpush.msra.mxu0 %v237
    %521 = vmatpush.msra.mxu0 %v228
    %522 = vmatpush.msra.mxu0 %v219
    %523 = vmatmul.f32.gmra.mxu0 %v211
    %v524 = vpop.f32.mrf.mxu0
    %v525 = vadd.f32 0.0, %v524
    %526 = vmatmul.f32.gmra.mxu0 %v212
    %v527 = vpop.f32.mrf.mxu0
    %v528 = vadd.f32 0.0, %v527
    %529 = vmatmul.f32.gmra.mxu0 %v213
    %v530 = vpop.f32.mrf.mxu0
    %v531 = vadd.f32 0.0, %v530
    %532 = vmatmul.f32.gmra.mxu0 %v214
    %v533 = vpop.f32.mrf.mxu0
    %v534 = vadd.f32 0.0, %v533
    %535 = vdwg.mxu0
    %536 = vmatpush.msra.mxu0 %v498
    %537 = vmatpush.msra.mxu0 %v489
    %538 = vmatpush.msra.mxu0 %v480
    %539 = vmatpush.msra.mxu0 %v471
    %540 = vmatpush.msra.mxu0 %v462
    %541 = vmatpush.msra.mxu0 %v453
    %542 = vmatpush.msra.mxu0 %v444
    %543 = vmatpush.msra.mxu0 %v435
    %544 = vmatpush.msra.mxu0 %v426
    %545 = vmatpush.msra.mxu0 %v417
    %546 = vmatpush.msra.mxu0 %v408
    %547 = vmatpush.msra.mxu0 %v399
    %548 = vmatpush.msra.mxu0 %v390
    %549 = vmatpush.msra.mxu0 %v381
    %550 = vmatpush.msra.mxu0 %v372
    %551 = vmatpush.msra.mxu0 %v363
    %552 = vmatmul.f32.gmra.mxu0 %v215
    %v553 = vpop.f32.mrf.mxu0
    %v554 = vadd.f32 %v525, %v553
    %555 = vmatmul.f32.gmra.mxu0 %v216
    %v556 = vpop.f32.mrf.mxu0
    %v557 = vadd.f32 %v528, %v556
    %558 = vmatmul.f32.gmra.mxu0 %v217
    %v559 = vpop.f32.mrf.mxu0
    %v560 = vadd.f32 %v531, %v559
    %561 = vmatmul.f32.gmra.mxu0 %v218
    %v562 = vpop.f32.mrf.mxu0
    %v563 = vadd.f32 %v534, %v562
    %564 = vdwg.mxu0
    %565 = vmatpush.msra.mxu0 %v355
    %566 = vmatpush.msra.mxu0 %v346
    %567 = vmatpush.msra.mxu0 %v337
    %568 = vmatpush.msra.mxu0 %v328
    %569 = vmatpush.msra.mxu0 %v319
    %570 = vmatpush.msra.mxu0 %v310
    %571 = vmatpush.msra.mxu0 %v301
    %572 = vmatpush.msra.mxu0 %v292
    %573 = vmatpush.msra.mxu0 %v283
    %574 = vmatpush.msra.mxu0 %v274
    %575 = vmatpush.msra.mxu0 %v265
    %576 = vmatpush.msra.mxu0 %v256
    %577 = vmatpush.msra.mxu0 %v247
    %578 = vmatpush.msra.mxu0 %v238
    %579 = vmatpush.msra.mxu0 %v229
    %580 = vmatpush.msra.mxu0 %v220
    %581 = vmatmul.f32.gmra.mxu0 %v211
    %v582 = vpop.f32.mrf.mxu0
    %v583 = vadd.f32 0.0, %v582
    %584 = vmatmul.f32.gmra.mxu0 %v212
    %v585 = vpop.f32.mrf.mxu0
    %v586 = vadd.f32 0.0, %v585
    %587 = vmatmul.f32.gmra.mxu0 %v213
    %v588 = vpop.f32.mrf.mxu0
    %v589 = vadd.f32 0.0, %v588
    %590 = vmatmul.f32.gmra.mxu0 %v214
    %v591 = vpop.f32.mrf.mxu0
    %v592 = vadd.f32 0.0, %v591
    %593 = vdwg.mxu0
    %594 = vmatpush.msra.mxu0 %v499
    %595 = vmatpush.msra.mxu0 %v490
    %596 = vmatpush.msra.mxu0 %v481
    %597 = vmatpush.msra.mxu0 %v472
    %598 = vmatpush.msra.mxu0 %v463
    %599 = vmatpush.msra.mxu0 %v454
    %600 = vmatpush.msra.mxu0 %v445
    %601 = vmatpush.msra.mxu0 %v436
    %602 = vmatpush.msra.mxu0 %v427
    %603 = vmatpush.msra.mxu0 %v418
    %604 = vmatpush.msra.mxu0 %v409
    %605 = vmatpush.msra.mxu0 %v400
    %606 = vmatpush.msra.mxu0 %v391
    %607 = vmatpush.msra.mxu0 %v382
    %608 = vmatpush.msra.mxu0 %v373
    %609 = vmatpush.msra.mxu0 %v364
    %610 = vmatmul.f32.gmra.mxu0 %v215
    %v611 = vpop.f32.mrf.mxu0
    %v612 = vadd.f32 %v583, %v611
    %613 = vmatmul.f32.gmra.mxu0 %v216
    %v614 = vpop.f32.mrf.mxu0
    %v615 = vadd.f32 %v586, %v614
    %616 = vmatmul.f32.gmra.mxu0 %v217
    %v617 = vpop.f32.mrf.mxu0
    %v618 = vadd.f32 %v589, %v617
    %619 = vmatmul.f32.gmra.mxu0 %v218
    %v620 = vpop.f32.mrf.mxu0
    %v621 = vadd.f32 %v592, %v620
    %622 = vdwg.mxu0
    %623 = vmatpush.msra.mxu0 %v356
    %624 = vmatpush.msra.mxu0 %v347
    %625 = vmatpush.msra.mxu0 %v338
    %626 = vmatpush.msra.mxu0 %v329
    %627 = vmatpush.msra.mxu0 %v320
    %628 = vmatpush.msra.mxu0 %v311
    %629 = vmatpush.msra.mxu0 %v302
    %630 = vmatpush.msra.mxu0 %v293
    %631 = vmatpush.msra.mxu0 %v284
    %632 = vmatpush.msra.mxu0 %v275
    %633 = vmatpush.msra.mxu0 %v266
    %634 = vmatpush.msra.mxu0 %v257
    %635 = vmatpush.msra.mxu0 %v248
    %636 = vmatpush.msra.mxu0 %v239
    %637 = vmatpush.msra.mxu0 %v230
    %638 = vmatpush.msra.mxu0 %v221
    %639 = vmatmul.f32.gmra.mxu0 %v211
    %v640 = vpop.f32.mrf.mxu0
    %v641 = vadd.f32 0.0, %v640
    %642 = vmatmul.f32.gmra.mxu0 %v212
    %v643 = vpop.f32.mrf.mxu0
    %v644 = vadd.f32 0.0, %v643
    %645 = vmatmul.f32.gmra.mxu0 %v213
    %v646 = vpop.f32.mrf.mxu0
    %v647 = vadd.f32 0.0, %v646
    %648 = vmatmul.f32.gmra.mxu0 %v214
    %v649 = vpop.f32.mrf.mxu0
    %v650 = vadd.f32 0.0, %v649
    %651 = vdwg.mxu0
    %652 = vmatpush.msra.mxu0 %v500
    %653 = vmatpush.msra.mxu0 %v491
    %654 = vmatpush.msra.mxu0 %v482
    %655 = vmatpush.msra.mxu0 %v473
    %656 = vmatpush.msra.mxu0 %v464
    %657 = vmatpush.msra.mxu0 %v455
    %658 = vmatpush.msra.mxu0 %v446
    %659 = vmatpush.msra.mxu0 %v437
    %660 = vmatpush.msra.mxu0 %v428
    %661 = vmatpush.msra.mxu0 %v419
    %662 = vmatpush.msra.mxu0 %v410
    %663 = vmatpush.msra.mxu0 %v401
    %664 = vmatpush.msra.mxu0 %v392
    %665 = vmatpush.msra.mxu0 %v383
    %666 = vmatpush.msra.mxu0 %v374
    %667 = vmatpush.msra.mxu0 %v365
    %668 = vmatmul.f32.gmra.mxu0 %v215
    %v669 = vpop.f32.mrf.mxu0
    %v670 = vadd.f32 %v641, %v669
    %671 = vmatmul.f32.gmra.mxu0 %v216
    %v672 = vpop.f32.mrf.mxu0
    %v673 = vadd.f32 %v644, %v672
    %674 = vmatmul.f32.gmra.mxu0 %v217
    %v675 = vpop.f32.mrf.mxu0
    %v676 = vadd.f32 %v647, %v675
    %677 = vmatmul.f32.gmra.mxu0 %v218
    %v678 = vpop.f32.mrf.mxu0
    %v679 = vadd.f32 %v650, %v678
    %680 = vdwg.mxu0
    %681 = vmatpush.msra.mxu0 %v357
    %682 = vmatpush.msra.mxu0 %v348
    %683 = vmatpush.msra.mxu0 %v339
    %684 = vmatpush.msra.mxu0 %v330
    %685 = vmatpush.msra.mxu0 %v321
    %686 = vmatpush.msra.mxu0 %v312
    %687 = vmatpush.msra.mxu0 %v303
    %688 = vmatpush.msra.mxu0 %v294
    %689 = vmatpush.msra.mxu0 %v285
    %690 = vmatpush.msra.mxu0 %v276
    %691 = vmatpush.msra.mxu0 %v267
    %692 = vmatpush.msra.mxu0 %v258
    %693 = vmatpush.msra.mxu0 %v249
    %694 = vmatpush.msra.mxu0 %v240
    %695 = vmatpush.msra.mxu0 %v231
    %696 = vmatpush.msra.mxu0 %v222
    %697 = vmatmul.f32.gmra.mxu0 %v211
    %v698 = vpop.f32.mrf.mxu0
    %v699 = vadd.f32 0.0, %v698
    %700 = vmatmul.f32.gmra.mxu0 %v212
    %v701 = vpop.f32.mrf.mxu0
    %v702 = vadd.f32 0.0, %v701
    %703 = vmatmul.f32.gmra.mxu0 %v213
    %v704 = vpop.f32.mrf.mxu0
    %v705 = vadd.f32 0.0, %v704
    %706 = vmatmul.f32.gmra.mxu0 %v214
    %v707 = vpop.f32.mrf.mxu0
    %v708 = vadd.f32 0.0, %v707
    %709 = vdwg.mxu0
    %710 = vmatpush.msra.mxu0 %v501
    %711 = vmatpush.msra.mxu0 %v492
    %712 = vmatpush.msra.mxu0 %v483
    %713 = vmatpush.msra.mxu0 %v474
    %714 = vmatpush.msra.mxu0 %v465
    %715 = vmatpush.msra.mxu0 %v456
    %716 = vmatpush.msra.mxu0 %v447
    %717 = vmatpush.msra.mxu0 %v438
    %718 = vmatpush.msra.mxu0 %v429
    %719 = vmatpush.msra.mxu0 %v420
    %720 = vmatpush.msra.mxu0 %v411
    %721 = vmatpush.msra.mxu0 %v402
    %722 = vmatpush.msra.mxu0 %v393
    %723 = vmatpush.msra.mxu0 %v384
    %724 = vmatpush.msra.mxu0 %v375
    %725 = vmatpush.msra.mxu0 %v366
    %726 = vmatmul.f32.gmra.mxu0 %v215
    %v727 = vpop.f32.mrf.mxu0
    %v728 = vadd.f32 %v699, %v727
    %729 = vmatmul.f32.gmra.mxu0 %v216
    %v730 = vpop.f32.mrf.mxu0
    %v731 = vadd.f32 %v702, %v730
    %732 = vmatmul.f32.gmra.mxu0 %v217
    %v733 = vpop.f32.mrf.mxu0
    %v734 = vadd.f32 %v705, %v733
    %735 = vmatmul.f32.gmra.mxu0 %v218
    %v736 = vpop.f32.mrf.mxu0
    %v737 = vadd.f32 %v708, %v736
    %738 = vdwg.mxu0
    %739 = vmatpush.msra.mxu0 %v358
    %740 = vmatpush.msra.mxu0 %v349
    %741 = vmatpush.msra.mxu0 %v340
    %742 = vmatpush.msra.mxu0 %v331
    %743 = vmatpush.msra.mxu0 %v322
    %744 = vmatpush.msra.mxu0 %v313
    %745 = vmatpush.msra.mxu0 %v304
    %746 = vmatpush.msra.mxu0 %v295
    %747 = vmatpush.msra.mxu0 %v286
    %748 = vmatpush.msra.mxu0 %v277
    %749 = vmatpush.msra.mxu0 %v268
    %750 = vmatpush.msra.mxu0 %v259
    %751 = vmatpush.msra.mxu0 %v250
    %752 = vmatpush.msra.mxu0 %v241
    %753 = vmatpush.msra.mxu0 %v232
    %754 = vmatpush.msra.mxu0 %v223
    %755 = vmatmul.f32.gmra.mxu0 %v211
    %v756 = vpop.f32.mrf.mxu0
    %v757 = vadd.f32 0.0, %v756
    %758 = vmatmul.f32.gmra.mxu0 %v212
    %v759 = vpop.f32.mrf.mxu0
    %v760 = vadd.f32 0.0, %v759
    %761 = vmatmul.f32.gmra.mxu0 %v213
    %v762 = vpop.f32.mrf.mxu0
    %v763 = vadd.f32 0.0, %v762
    %764 = vmatmul.f32.gmra.mxu0 %v214
    %v765 = vpop.f32.mrf.mxu0
    %v766 = vadd.f32 0.0, %v765
    %767 = vdwg.mxu0
    %768 = vmatpush.msra.mxu0 %v502
    %769 = vmatpush.msra.mxu0 %v493
    %770 = vmatpush.msra.mxu0 %v484
    %771 = vmatpush.msra.mxu0 %v475
    %772 = vmatpush.msra.mxu0 %v466
    %773 = vmatpush.msra.mxu0 %v457
    %774 = vmatpush.msra.mxu0 %v448
    %775 = vmatpush.msra.mxu0 %v439
    %776 = vmatpush.msra.mxu0 %v430
    %777 = vmatpush.msra.mxu0 %v421
    %778 = vmatpush.msra.mxu0 %v412
    %779 = vmatpush.msra.mxu0 %v403
    %780 = vmatpush.msra.mxu0 %v394
    %781 = vmatpush.msra.mxu0 %v385
    %782 = vmatpush.msra.mxu0 %v376
    %783 = vmatpush.msra.mxu0 %v367
    %784 = vmatmul.f32.gmra.mxu0 %v215
    %v785 = vpop.f32.mrf.mxu0
    %v786 = vadd.f32 %v757, %v785
    %787 = vmatmul.f32.gmra.mxu0 %v216
    %v788 = vpop.f32.mrf.mxu0
    %v789 = vadd.f32 %v760, %v788
    %790 = vmatmul.f32.gmra.mxu0 %v217
    %v791 = vpop.f32.mrf.mxu0
    %v792 = vadd.f32 %v763, %v791
    %793 = vmatmul.f32.gmra.mxu0 %v218
    %v794 = vpop.f32.mrf.mxu0
    %v795 = vadd.f32 %v766, %v794
    %796 = vdwg.mxu0
    %797 = vmatpush.msra.mxu0 %v359
    %798 = vmatpush.msra.mxu0 %v350
    %799 = vmatpush.msra.mxu0 %v341
    %800 = vmatpush.msra.mxu0 %v332
    %801 = vmatpush.msra.mxu0 %v323
    %802 = vmatpush.msra.mxu0 %v314
    %803 = vmatpush.msra.mxu0 %v305
    %804 = vmatpush.msra.mxu0 %v296
    %805 = vmatpush.msra.mxu0 %v287
    %806 = vmatpush.msra.mxu0 %v278
    %807 = vmatpush.msra.mxu0 %v269
    %808 = vmatpush.msra.mxu0 %v260
    %809 = vmatpush.msra.mxu0 %v251
    %810 = vmatpush.msra.mxu0 %v242
    %811 = vmatpush.msra.mxu0 %v233
    %812 = vmatpush.msra.mxu0 %v224
    %813 = vmatmul.f32.gmra.mxu0 %v211
    %v814 = vpop.f32.mrf.mxu0
    %v815 = vadd.f32 0.0, %v814
    %816 = vmatmul.f32.gmra.mxu0 %v212
    %v817 = vpop.f32.mrf.mxu0
    %v818 = vadd.f32 0.0, %v817
    %819 = vmatmul.f32.gmra.mxu0 %v213
    %v820 = vpop.f32.mrf.mxu0
    %v821 = vadd.f32 0.0, %v820
    %822 = vmatmul.f32.gmra.mxu0 %v214
    %v823 = vpop.f32.mrf.mxu0
    %v824 = vadd.f32 0.0, %v823
    %825 = vdwg.mxu0
    %826 = vmatpush.msra.mxu0 %v503
    %827 = vmatpush.msra.mxu0 %v494
    %828 = vmatpush.msra.mxu0 %v485
    %829 = vmatpush.msra.mxu0 %v476
    %830 = vmatpush.msra.mxu0 %v467
    %831 = vmatpush.msra.mxu0 %v458
    %832 = vmatpush.msra.mxu0 %v449
    %833 = vmatpush.msra.mxu0 %v440
    %834 = vmatpush.msra.mxu0 %v431
    %835 = vmatpush.msra.mxu0 %v422
    %836 = vmatpush.msra.mxu0 %v413
    %837 = vmatpush.msra.mxu0 %v404
    %838 = vmatpush.msra.mxu0 %v395
    %839 = vmatpush.msra.mxu0 %v386
    %840 = vmatpush.msra.mxu0 %v377
    %841 = vmatpush.msra.mxu0 %v368
    %842 = vmatmul.f32.gmra.mxu0 %v215
    %v843 = vpop.f32.mrf.mxu0
    %v844 = vadd.f32 %v815, %v843
    %845 = vmatmul.f32.gmra.mxu0 %v216
    %v846 = vpop.f32.mrf.mxu0
    %v847 = vadd.f32 %v818, %v846
    %848 = vmatmul.f32.gmra.mxu0 %v217
    %v849 = vpop.f32.mrf.mxu0
    %v850 = vadd.f32 %v821, %v849
    %851 = vmatmul.f32.gmra.mxu0 %v218
    %v852 = vpop.f32.mrf.mxu0
    %v853 = vadd.f32 %v824, %v852
    %854 = vdwg.mxu0
    %855 = vmatpush.msra.mxu0 %v360
    %856 = vmatpush.msra.mxu0 %v351
    %857 = vmatpush.msra.mxu0 %v342
    %858 = vmatpush.msra.mxu0 %v333
    %859 = vmatpush.msra.mxu0 %v324
    %860 = vmatpush.msra.mxu0 %v315
    %861 = vmatpush.msra.mxu0 %v306
    %862 = vmatpush.msra.mxu0 %v297
    %863 = vmatpush.msra.mxu0 %v288
    %864 = vmatpush.msra.mxu0 %v279
    %865 = vmatpush.msra.mxu0 %v270
    %866 = vmatpush.msra.mxu0 %v261
    %867 = vmatpush.msra.mxu0 %v252
    %868 = vmatpush.msra.mxu0 %v243
    %869 = vmatpush.msra.mxu0 %v234
    %870 = vmatpush.msra.mxu0 %v225
    %871 = vmatmul.f32.gmra.mxu0 %v211
    %v872 = vpop.f32.mrf.mxu0
    %v873 = vadd.f32 0.0, %v872
    %874 = vmatmul.f32.gmra.mxu0 %v212
    %v875 = vpop.f32.mrf.mxu0
    %v876 = vadd.f32 0.0, %v875
    %877 = vmatmul.f32.gmra.mxu0 %v213
    %v878 = vpop.f32.mrf.mxu0
    %v879 = vadd.f32 0.0, %v878
    %880 = vmatmul.f32.gmra.mxu0 %v214
    %v881 = vpop.f32.mrf.mxu0
    %v882 = vadd.f32 0.0, %v881
    %883 = vdwg.mxu0
    %884 = vmatpush.msra.mxu0 %v504
    %885 = vmatpush.msra.mxu0 %v495
    %886 = vmatpush.msra.mxu0 %v486
    %887 = vmatpush.msra.mxu0 %v477
    %888 = vmatpush.msra.mxu0 %v468
    %889 = vmatpush.msra.mxu0 %v459
    %890 = vmatpush.msra.mxu0 %v450
    %891 = vmatpush.msra.mxu0 %v441
    %892 = vmatpush.msra.mxu0 %v432
    %893 = vmatpush.msra.mxu0 %v423
    %894 = vmatpush.msra.mxu0 %v414
    %895 = vmatpush.msra.mxu0 %v405
    %896 = vmatpush.msra.mxu0 %v396
    %897 = vmatpush.msra.mxu0 %v387
    %898 = vmatpush.msra.mxu0 %v378
    %899 = vmatpush.msra.mxu0 %v369
    %900 = vmatmul.f32.gmra.mxu0 %v215
    %v901 = vpop.f32.mrf.mxu0
    %v902 = vadd.f32 %v873, %v901
    %903 = vmatmul.f32.gmra.mxu0 %v216
    %v904 = vpop.f32.mrf.mxu0
    %v905 = vadd.f32 %v876, %v904
    %906 = vmatmul.f32.gmra.mxu0 %v217
    %v907 = vpop.f32.mrf.mxu0
    %v908 = vadd.f32 %v879, %v907
    %909 = vmatmul.f32.gmra.mxu0 %v218
    %v910 = vpop.f32.mrf.mxu0
    %v911 = vadd.f32 %v882, %v910
    %912 = vdwg.mxu0
    %913 = vmatpush.msra.mxu0 %v361
    %914 = vmatpush.msra.mxu0 %v352
    %915 = vmatpush.msra.mxu0 %v343
    %916 = vmatpush.msra.mxu0 %v334
    %917 = vmatpush.msra.mxu0 %v325
    %918 = vmatpush.msra.mxu0 %v316
    %919 = vmatpush.msra.mxu0 %v307
    %920 = vmatpush.msra.mxu0 %v298
    %921 = vmatpush.msra.mxu0 %v289
    %922 = vmatpush.msra.mxu0 %v280
    %923 = vmatpush.msra.mxu0 %v271
    %924 = vmatpush.msra.mxu0 %v262
    %925 = vmatpush.msra.mxu0 %v253
    %926 = vmatpush.msra.mxu0 %v244
    %927 = vmatpush.msra.mxu0 %v235
    %928 = vmatpush.msra.mxu0 %v226
    %929 = vmatmul.f32.gmra.mxu0 %v211
    %v930 = vpop.f32.mrf.mxu0
    %v931 = vadd.f32 0.0, %v930
    %932 = vmatmul.f32.gmra.mxu0 %v212
    %v933 = vpop.f32.mrf.mxu0
    %v934 = vadd.f32 0.0, %v933
    %935 = vmatmul.f32.gmra.mxu0 %v213
    %v936 = vpop.f32.mrf.mxu0
    %v937 = vadd.f32 0.0, %v936
    %938 = vmatmul.f32.gmra.mxu0 %v214
    %v939 = vpop.f32.mrf.mxu0
    %v940 = vadd.f32 0.0, %v939
    %941 = vdwg.mxu0
    %942 = vmatpush.msra.mxu0 %v505
    %943 = vmatpush.msra.mxu0 %v496
    %944 = vmatpush.msra.mxu0 %v487
    %945 = vmatpush.msra.mxu0 %v478
    %946 = vmatpush.msra.mxu0 %v469
    %947 = vmatpush.msra.mxu0 %v460
    %948 = vmatpush.msra.mxu0 %v451
    %949 = vmatpush.msra.mxu0 %v442
    %950 = vmatpush.msra.mxu0 %v433
    %951 = vmatpush.msra.mxu0 %v424
    %952 = vmatpush.msra.mxu0 %v415
    %953 = vmatpush.msra.mxu0 %v406
    %954 = vmatpush.msra.mxu0 %v397
    %955 = vmatpush.msra.mxu0 %v388
    %956 = vmatpush.msra.mxu0 %v379
    %957 = vmatpush.msra.mxu0 %v370
    %958 = vmatmul.f32.gmra.mxu0 %v215
    %v959 = vpop.f32.mrf.mxu0
    %v960 = vadd.f32 %v931, %v959
    %961 = vmatmul.f32.gmra.mxu0 %v216
    %v962 = vpop.f32.mrf.mxu0
    %v963 = vadd.f32 %v934, %v962
    %964 = vmatmul.f32.gmra.mxu0 %v217
    %v965 = vpop.f32.mrf.mxu0
    %v966 = vadd.f32 %v937, %v965
    %967 = vmatmul.f32.gmra.mxu0 %v218
    %v968 = vpop.f32.mrf.mxu0
    %v969 = vadd.f32 %v940, %v968
    %970 = vdwg.mxu0
    %971 = vmatpush.msra.mxu0 %v362
    %972 = vmatpush.msra.mxu0 %v353
    %973 = vmatpush.msra.mxu0 %v344
    %974 = vmatpush.msra.mxu0 %v335
    %975 = vmatpush.msra.mxu0 %v326
    %976 = vmatpush.msra.mxu0 %v317
    %977 = vmatpush.msra.mxu0 %v308
    %978 = vmatpush.msra.mxu0 %v299
    %979 = vmatpush.msra.mxu0 %v290
    %980 = vmatpush.msra.mxu0 %v281
    %981 = vmatpush.msra.mxu0 %v272
    %982 = vmatpush.msra.mxu0 %v263
    %983 = vmatpush.msra.mxu0 %v254
    %984 = vmatpush.msra.mxu0 %v245
    %985 = vmatpush.msra.mxu0 %v236
    %986 = vmatpush.msra.mxu0 %v227
    %987 = vmatmul.f32.gmra.mxu0 %v211
    %v988 = vpop.f32.mrf.mxu0
    %v989 = vadd.f32 0.0, %v988
    %990 = vmatmul.f32.gmra.mxu0 %v212
    %v991 = vpop.f32.mrf.mxu0
    %v992 = vadd.f32 0.0, %v991
    %993 = vmatmul.f32.gmra.mxu0 %v213
    %v994 = vpop.f32.mrf.mxu0
    %v995 = vadd.f32 0.0, %v994
    %996 = vmatmul.f32.gmra.mxu0 %v214
    %v997 = vpop.f32.mrf.mxu0
    %v998 = vadd.f32 0.0, %v997
    %999 = vdwg.mxu0
    %1000 = vmatpush.msra.mxu0 %v506
    %1001 = vmatpush.msra.mxu0 %v497
    %1002 = vmatpush.msra.mxu0 %v488
    %1003 = vmatpush.msra.mxu0 %v479
    %1004 = vmatpush.msra.mxu0 %v470
    %1005 = vmatpush.msra.mxu0 %v461
    %1006 = vmatpush.msra.mxu0 %v452
    %1007 = vmatpush.msra.mxu0 %v443
    %1008 = vmatpush.msra.mxu0 %v434
    %1009 = vmatpush.msra.mxu0 %v425
    %1010 = vmatpush.msra.mxu0 %v416
    %1011 = vmatpush.msra.mxu0 %v407
    %1012 = vmatpush.msra.mxu0 %v398
    %1013 = vmatpush.msra.mxu0 %v389
    %1014 = vmatpush.msra.mxu0 %v380
    %1015 = vmatpush.msra.mxu0 %v371
    %1016 = vmatmul.f32.gmra.mxu0 %v215
    %v1017 = vpop.f32.mrf.mxu0
    %v1018 = vadd.f32 %v989, %v1017
    %1019 = vmatmul.f32.gmra.mxu0 %v216
    %v1020 = vpop.f32.mrf.mxu0
    %v1021 = vadd.f32 %v992, %v1020
    %1022 = vmatmul.f32.gmra.mxu0 %v217
    %v1023 = vpop.f32.mrf.mxu0
    %v1024 = vadd.f32 %v995, %v1023
    %1025 = vmatmul.f32.gmra.mxu0 %v218
    %v1026 = vpop.f32.mrf.mxu0
    %v1027 = vadd.f32 %v998, %v1026
    %1028 = vdwg.mxu0
    %vm1029 = vcmask 261120
    %v1031 = vsel %vm1029, %v202, 0
    %v1034 = vsel %vm1029, %v203, 0
    %v1037 = vsel %vm1029, %v204, 0
    %v1040 = vsel %vm1029, %v205, 0
    %1042 = vmatpush.msra.mxu0 0.0
    %1043 = vmatpush.msra.mxu0 0.0
    %1044 = vmatpush.msra.mxu0 0.0
    %1045 = vmatpush.msra.mxu0 0.0
    %1046 = vmatpush.msra.mxu0 0.0
    %1047 = vmatpush.msra.mxu0 0.0
    %1048 = vmatpush.msra.mxu0 0.0
    %1049 = vmatpush.msra.mxu0 0.0
    %1050 = vmatpush.msra.mxu0 0.0
    %1051 = vmatpush.msra.mxu0 0.0
    %1052 = vmatpush.msra.mxu0 0.0
    %1053 = vmatpush.msra.mxu0 0.0
    %1054 = vmatpush.msra.mxu0 %v679
    %1055 = vmatpush.msra.mxu0 %v676
    %1056 = vmatpush.msra.mxu0 %v673
    %1057 = vmatpush.msra.mxu0 %v670
    %1058 = vmatmul.f32.gmra.mxu0 %v1031
    %v1059 = vpop.f32.mrf.mxu0
    %v1060 = vadd.f32 0.0, %v1059
    %1061 = vmatmul.f32.gmra.mxu0 %v1034
    %v1062 = vpop.f32.mrf.mxu0
    %v1063 = vadd.f32 0.0, %v1062
    %1064 = vmatmul.f32.gmra.mxu0 %v1037
    %v1065 = vpop.f32.mrf.mxu0
    %v1066 = vadd.f32 0.0, %v1065
    %1067 = vmatmul.f32.gmra.mxu0 %v1040
    %v1068 = vpop.f32.mrf.mxu0
    %v1069 = vadd.f32 0.0, %v1068
    %1070 = vdwg.mxu0
    %1071 = vmatpush.msra.mxu0 0.0
    %1072 = vmatpush.msra.mxu0 0.0
    %1073 = vmatpush.msra.mxu0 0.0
    %1074 = vmatpush.msra.mxu0 0.0
    %1075 = vmatpush.msra.mxu0 0.0
    %1076 = vmatpush.msra.mxu0 0.0
    %1077 = vmatpush.msra.mxu0 0.0
    %1078 = vmatpush.msra.mxu0 0.0
    %1079 = vmatpush.msra.mxu0 0.0
    %1080 = vmatpush.msra.mxu0 0.0
    %1081 = vmatpush.msra.mxu0 0.0
    %1082 = vmatpush.msra.mxu0 0.0
    %1083 = vmatpush.msra.mxu0 %v737
    %1084 = vmatpush.msra.mxu0 %v734
    %1085 = vmatpush.msra.mxu0 %v731
    %1086 = vmatpush.msra.mxu0 %v728
    %1087 = vmatmul.f32.gmra.mxu0 %v1031
    %v1088 = vpop.f32.mrf.mxu0
    %v1089 = vadd.f32 0.0, %v1088
    %1090 = vmatmul.f32.gmra.mxu0 %v1034
    %v1091 = vpop.f32.mrf.mxu0
    %v1092 = vadd.f32 0.0, %v1091
    %1093 = vmatmul.f32.gmra.mxu0 %v1037
    %v1094 = vpop.f32.mrf.mxu0
    %v1095 = vadd.f32 0.0, %v1094
    %1096 = vmatmul.f32.gmra.mxu0 %v1040
    %v1097 = vpop.f32.mrf.mxu0
    %v1098 = vadd.f32 0.0, %v1097
    %1099 = vdwg.mxu0
    %v1100 = vadd.f32 %v554, %v1060
    %v1101 = vadd.f32 %v612, %v1089
    %v1102 = vadd.f32 %v557, %v1063
    %v1103 = vadd.f32 %v615, %v1092
    %v1104 = vadd.f32 %v560, %v1066
    %v1105 = vadd.f32 %v618, %v1095
    %v1106 = vadd.f32 %v563, %v1069
    %v1107 = vadd.f32 %v621, %v1098
    %v1109 = vsel %vm1029, %v207, 0
    %v1112 = vsel %vm1029, %v208, 0
    %v1115 = vsel %vm1029, %v209, 0
    %v1118 = vsel %vm1029, %v210, 0
    %1120 = vmatpush.msra.mxu0 0.0
    %1121 = vmatpush.msra.mxu0 0.0
    %1122 = vmatpush.msra.mxu0 0.0
    %1123 = vmatpush.msra.mxu0 0.0
    %1124 = vmatpush.msra.mxu0 0.0
    %1125 = vmatpush.msra.mxu0 0.0
    %1126 = vmatpush.msra.mxu0 0.0
    %1127 = vmatpush.msra.mxu0 0.0
    %1128 = vmatpush.msra.mxu0 0.0
    %1129 = vmatpush.msra.mxu0 0.0
    %1130 = vmatpush.msra.mxu0 0.0
    %1131 = vmatpush.msra.mxu0 0.0
    %1132 = vmatpush.msra.mxu0 %v795
    %1133 = vmatpush.msra.mxu0 %v792
    %1134 = vmatpush.msra.mxu0 %v789
    %1135 = vmatpush.msra.mxu0 %v786
    %1136 = vmatmul.f32.gmra.mxu0 %v1109
    %v1137 = vpop.f32.mrf.mxu0
    %v1138 = vadd.f32 0.0, %v1137
    %1139 = vmatmul.f32.gmra.mxu0 %v1112
    %v1140 = vpop.f32.mrf.mxu0
    %v1141 = vadd.f32 0.0, %v1140
    %1142 = vmatmul.f32.gmra.mxu0 %v1115
    %v1143 = vpop.f32.mrf.mxu0
    %v1144 = vadd.f32 0.0, %v1143
    %1145 = vmatmul.f32.gmra.mxu0 %v1118
    %v1146 = vpop.f32.mrf.mxu0
    %v1147 = vadd.f32 0.0, %v1146
    %1148 = vdwg.mxu0
    %1149 = vmatpush.msra.mxu0 0.0
    %1150 = vmatpush.msra.mxu0 0.0
    %1151 = vmatpush.msra.mxu0 0.0
    %1152 = vmatpush.msra.mxu0 0.0
    %1153 = vmatpush.msra.mxu0 0.0
    %1154 = vmatpush.msra.mxu0 0.0
    %1155 = vmatpush.msra.mxu0 0.0
    %1156 = vmatpush.msra.mxu0 0.0
    %1157 = vmatpush.msra.mxu0 0.0
    %1158 = vmatpush.msra.mxu0 0.0
    %1159 = vmatpush.msra.mxu0 0.0
    %1160 = vmatpush.msra.mxu0 0.0
    %1161 = vmatpush.msra.mxu0 %v853
    %1162 = vmatpush.msra.mxu0 %v850
    %1163 = vmatpush.msra.mxu0 %v847
    %1164 = vmatpush.msra.mxu0 %v844
    %1165 = vmatmul.f32.gmra.mxu0 %v1109
    %v1166 = vpop.f32.mrf.mxu0
    %v1167 = vadd.f32 0.0, %v1166
    %1168 = vmatmul.f32.gmra.mxu0 %v1112
    %v1169 = vpop.f32.mrf.mxu0
    %v1170 = vadd.f32 0.0, %v1169
    %1171 = vmatmul.f32.gmra.mxu0 %v1115
    %v1172 = vpop.f32.mrf.mxu0
    %v1173 = vadd.f32 0.0, %v1172
    %1174 = vmatmul.f32.gmra.mxu0 %v1118
    %v1175 = vpop.f32.mrf.mxu0
    %v1176 = vadd.f32 0.0, %v1175
    %1177 = vdwg.mxu0
    %v1178 = vadd.f32 %v1100, %v1138
    %v1179 = vadd.f32 %v1101, %v1167
    %v1180 = vadd.f32 %v1102, %v1141
    %v1181 = vadd.f32 %v1103, %v1170
    %v1182 = vadd.f32 %v1104, %v1144
    %v1183 = vadd.f32 %v1105, %v1173
    %v1184 = vadd.f32 %v1106, %v1147
    %v1185 = vadd.f32 %v1107, %v1176
    %v1186 = vld [vmem:[#allocation11] sm:$0x3]
    %v1188 = vperm.slane %v1186, 0
    %v1189 = vperm.slane %v1186, 1
    %v1192 = vadd.f32 %v1178, %v1188
    %v1193 = vadd.f32 %v1179, %v1189
    %v1194 = vadd.f32 %v1180, %v1188
    %v1195 = vadd.f32 %v1181, %v1189
    %v1196 = vadd.f32 %v1182, %v1188
    %v1197 = vadd.f32 %v1183, %v1189
    %v1198 = vadd.f32 %v1184, %v1188
    %v1199 = vadd.f32 %v1185, %v1189
    %v1200 = vxor.u32 %v1192, 2147483648
    %v1201 = vxor.u32 %v1193, 2147483648
    %v1202 = vxor.u32 %v1194, 2147483648
    %v1203 = vxor.u32 %v1195, 2147483648
    %v1204 = vxor.u32 %v1196, 2147483648
    %v1205 = vxor.u32 %v1197, 2147483648
    %v1206 = vxor.u32 %v1198, 2147483648
    %v1207 = vxor.u32 %v1199, 2147483648
    %v1208 = vmul.f32 %v1200, 1.442695
    %v1209 = vpow.pop %v1208
    %v1210 = vmul.f32 %v1201, 1.442695
    %v1211 = vpow.pop %v1210
    %v1212 = vmul.f32 %v1202, 1.442695
    %v1213 = vpow.pop %v1212
    %v1214 = vmul.f32 %v1203, 1.442695
    %v1215 = vpow.pop %v1214
    %v1216 = vmul.f32 %v1204, 1.442695
    %v1217 = vpow.pop %v1216
    %v1218 = vmul.f32 %v1205, 1.442695
    %v1219 = vpow.pop %v1218
    %v1220 = vmul.f32 %v1206, 1.442695
    %v1221 = vpow.pop %v1220
    %v1222 = vmul.f32 %v1207, 1.442695
    %v1223 = vpow.pop %v1222
    %v1224 = vadd.f32 %v1209, 1.0
    %v1225 = vadd.f32 %v1211, 1.0
    %v1226 = vadd.f32 %v1213, 1.0
    %v1227 = vadd.f32 %v1215, 1.0
    %v1228 = vadd.f32 %v1217, 1.0
    %v1229 = vadd.f32 %v1219, 1.0
    %v1230 = vadd.f32 %v1221, 1.0
    %v1231 = vadd.f32 %v1223, 1.0
    %v1232 = vrcp.pop %v1224
    %v1233 = vmul.f32 %v1224, %v1232
    %v1234 = vsub.f32 1.0, %v1233
    %v1235 = vmul.f32 %v1232, %v1234
    %v1236 = vadd.f32 %v1232, %v1235
    %vm1237 = vweird.f32 %v1224
    %vm1238 = vweird.f32 %v1232
    %vm1239 = vmor %vm1237, %vm1238
    %v1240 = vsel %vm1239, %v1232, %v1236
    %v1241 = vand.u32 2147483647, %v1224
    %vm1242 = vcmp.eq.f32.partialorder %v1241, 8.507059e+37
    %v1243 = vand.u32 %v1224, 2147483648
    %v1244 = vor.u32 1.1754944e-38, %v1243
    %v1245 = vsel %vm1242, %v1244, %v1240
    %v1246 = vmul.f32 1.0, %v1245
    %v1247 = vrcp.pop %v1225
    %v1248 = vmul.f32 %v1225, %v1247
    %v1249 = vsub.f32 1.0, %v1248
    %v1250 = vmul.f32 %v1247, %v1249
    %v1251 = vadd.f32 %v1247, %v1250
    %vm1252 = vweird.f32 %v1225
    %vm1253 = vweird.f32 %v1247
    %vm1254 = vmor %vm1252, %vm1253
    %v1255 = vsel %vm1254, %v1247, %v1251
    %v1256 = vand.u32 2147483647, %v1225
    %vm1257 = vcmp.eq.f32.partialorder %v1256, 8.507059e+37
    %v1258 = vand.u32 %v1225, 2147483648
    %v1259 = vor.u32 1.1754944e-38, %v1258
    %v1260 = vsel %vm1257, %v1259, %v1255
    %v1261 = vmul.f32 1.0, %v1260
    %v1262 = vrcp.pop %v1226
    %v1263 = vmul.f32 %v1226, %v1262
    %v1264 = vsub.f32 1.0, %v1263
    %v1265 = vmul.f32 %v1262, %v1264
    %v1266 = vadd.f32 %v1262, %v1265
    %vm1267 = vweird.f32 %v1226
    %vm1268 = vweird.f32 %v1262
    %vm1269 = vmor %vm1267, %vm1268
    %v1270 = vsel %vm1269, %v1262, %v1266
    %v1271 = vand.u32 2147483647, %v1226
    %vm1272 = vcmp.eq.f32.partialorder %v1271, 8.507059e+37
    %v1273 = vand.u32 %v1226, 2147483648
    %v1274 = vor.u32 1.1754944e-38, %v1273
    %v1275 = vsel %vm1272, %v1274, %v1270
    %v1276 = vmul.f32 1.0, %v1275
    %v1277 = vrcp.pop %v1227
    %v1278 = vmul.f32 %v1227, %v1277
    %v1279 = vsub.f32 1.0, %v1278
    %v1280 = vmul.f32 %v1277, %v1279
    %v1281 = vadd.f32 %v1277, %v1280
    %vm1282 = vweird.f32 %v1227
    %vm1283 = vweird.f32 %v1277
    %vm1284 = vmor %vm1282, %vm1283
    %v1285 = vsel %vm1284, %v1277, %v1281
    %v1286 = vand.u32 2147483647, %v1227
    %vm1287 = vcmp.eq.f32.partialorder %v1286, 8.507059e+37
    %v1288 = vand.u32 %v1227, 2147483648
    %v1289 = vor.u32 1.1754944e-38, %v1288
    %v1290 = vsel %vm1287, %v1289, %v1285
    %v1291 = vmul.f32 1.0, %v1290
    %v1292 = vrcp.pop %v1228
    %v1293 = vmul.f32 %v1228, %v1292
    %v1294 = vsub.f32 1.0, %v1293
    %v1295 = vmul.f32 %v1292, %v1294
    %v1296 = vadd.f32 %v1292, %v1295
    %vm1297 = vweird.f32 %v1228
    %vm1298 = vweird.f32 %v1292
    %vm1299 = vmor %vm1297, %vm1298
    %v1300 = vsel %vm1299, %v1292, %v1296
    %v1301 = vand.u32 2147483647, %v1228
    %vm1302 = vcmp.eq.f32.partialorder %v1301, 8.507059e+37
    %v1303 = vand.u32 %v1228, 2147483648
    %v1304 = vor.u32 1.1754944e-38, %v1303
    %v1305 = vsel %vm1302, %v1304, %v1300
    %v1306 = vmul.f32 1.0, %v1305
    %v1307 = vrcp.pop %v1229
    %v1308 = vmul.f32 %v1229, %v1307
    %v1309 = vsub.f32 1.0, %v1308
    %v1310 = vmul.f32 %v1307, %v1309
    %v1311 = vadd.f32 %v1307, %v1310
    %vm1312 = vweird.f32 %v1229
    %vm1313 = vweird.f32 %v1307
    %vm1314 = vmor %vm1312, %vm1313
    %v1315 = vsel %vm1314, %v1307, %v1311
    %v1316 = vand.u32 2147483647, %v1229
    %vm1317 = vcmp.eq.f32.partialorder %v1316, 8.507059e+37
    %v1318 = vand.u32 %v1229, 2147483648
    %v1319 = vor.u32 1.1754944e-38, %v1318
    %v1320 = vsel %vm1317, %v1319, %v1315
    %v1321 = vmul.f32 1.0, %v1320
    %v1322 = vrcp.pop %v1230
    %v1323 = vmul.f32 %v1230, %v1322
    %v1324 = vsub.f32 1.0, %v1323
    %v1325 = vmul.f32 %v1322, %v1324
    %v1326 = vadd.f32 %v1322, %v1325
    %vm1327 = vweird.f32 %v1230
    %vm1328 = vweird.f32 %v1322
    %vm1329 = vmor %vm1327, %vm1328
    %v1330 = vsel %vm1329, %v1322, %v1326
    %v1331 = vand.u32 2147483647, %v1230
    %vm1332 = vcmp.eq.f32.partialorder %v1331, 8.507059e+37
    %v1333 = vand.u32 %v1230, 2147483648
    %v1334 = vor.u32 1.1754944e-38, %v1333
    %v1335 = vsel %vm1332, %v1334, %v1330
    %v1336 = vmul.f32 1.0, %v1335
    %v1337 = vrcp.pop %v1231
    %v1338 = vmul.f32 %v1231, %v1337
    %v1339 = vsub.f32 1.0, %v1338
    %v1340 = vmul.f32 %v1337, %v1339
    %v1341 = vadd.f32 %v1337, %v1340
    %vm1342 = vweird.f32 %v1231
    %vm1343 = vweird.f32 %v1337
    %vm1344 = vmor %vm1342, %vm1343
    %v1345 = vsel %vm1344, %v1337, %v1341
    %v1346 = vand.u32 2147483647, %v1231
    %vm1347 = vcmp.eq.f32.partialorder %v1346, 8.507059e+37
    %v1348 = vand.u32 %v1231, 2147483648
    %v1349 = vor.u32 1.1754944e-38, %v1348
    %v1350 = vsel %vm1347, %v1349, %v1345
    %v1351 = vmul.f32 1.0, %v1350
    %v1352 = vmul.f32 %v1246, %v215
    %v1353 = vmul.f32 %v1276, %v216
    %v1354 = vmul.f32 %v1306, %v217
    %v1355 = vmul.f32 %v1336, %v218
    %v1356 = vld [vmem:[#allocation10] sm:$0xff]
    %v1357 = vld [vmem:[#allocation10 + $0x8] sm:$0xff]
    %v1358 = vld [vmem:[#allocation10 + $0x10] sm:$0xff]
    %v1359 = vld [vmem:[#allocation10 + $0x18] sm:$0xff]
    %v1360 = vld [vmem:[#allocation10 + $0x20] sm:$0xff]
    %v1361 = vld [vmem:[#allocation10 + $0x28] sm:$0xff]
    %v1362 = vld [vmem:[#allocation10 + $0x30] sm:$0xff]
    %v1363 = vld [vmem:[#allocation10 + $0x38] sm:$0xff]
    %v1364 = vld [vmem:[#allocation10 + $0x40] sm:$0xff]
    %v1365 = vld [vmem:[#allocation10 + $0x48] sm:$0xff]
    %v1366 = vld [vmem:[#allocation10 + $0x50] sm:$0xff]
    %v1367 = vld [vmem:[#allocation10 + $0x58] sm:$0xff]
    %v1368 = vld [vmem:[#allocation10 + $0x60] sm:$0xff]
    %v1369 = vld [vmem:[#allocation10 + $0x68] sm:$0xff]
    %v1370 = vld [vmem:[#allocation10 + $0x70] sm:$0xff]
    %v1371 = vld [vmem:[#allocation10 + $0x78] sm:$0xff]
    %v1372 = vld [vmem:[#allocation10 + $0x80] sm:$0xff]
    %v1373 = vld [vmem:[#allocation10 + $0x88] sm:$0xff]
    %v1374 = vld [vmem:[#allocation10 + $0x90] sm:$0xff]
    %v1375 = vld [vmem:[#allocation10 + $0x98] sm:$0xff]
    %v1376 = vld [vmem:[#allocation10 + $0xa0] sm:$0xff]
    %v1377 = vld [vmem:[#allocation10 + $0xa8] sm:$0xff]
    %v1378 = vld [vmem:[#allocation10 + $0xb0] sm:$0xff]
    %v1379 = vld [vmem:[#allocation10 + $0xb8] sm:$0xff]
    %v1380 = vld [vmem:[#allocation10 + $0xc0] sm:$0xff]
    %v1381 = vld [vmem:[#allocation10 + $0xc8] sm:$0xff]
    %v1382 = vld [vmem:[#allocation10 + $0xd0] sm:$0xff]
    %v1383 = vld [vmem:[#allocation10 + $0xd8] sm:$0xff]
    %v1384 = vld [vmem:[#allocation10 + $0xe0] sm:$0xff]
    %v1385 = vld [vmem:[#allocation10 + $0xe8] sm:$0xff]
    %v1386 = vld [vmem:[#allocation10 + $0xf0] sm:$0xff]
    %v1387 = vld [vmem:[#allocation10 + $0xf8] sm:$0xff]
    %v1388 = vld [vmem:[#allocation10 + $0x100] sm:$0xff]
    %v1389 = vld [vmem:[#allocation10 + $0x108] sm:$0xff]
    %v1390 = vld [vmem:[#allocation10 + $0x110] sm:$0xff]
    %v1391 = vld [vmem:[#allocation10 + $0x118] sm:$0xff]
    %v1392 = vld [vmem:[#allocation10 + $0x120] sm:$0xff]
    %v1393 = vld [vmem:[#allocation10 + $0x128] sm:$0xff]
    %v1394 = vld [vmem:[#allocation10 + $0x130] sm:$0xff]
    %v1395 = vld [vmem:[#allocation10 + $0x138] sm:$0xff]
    %v1396 = vld [vmem:[#allocation10 + $0x140] sm:$0xff]
    %v1397 = vld [vmem:[#allocation10 + $0x148] sm:$0xff]
    %v1398 = vld [vmem:[#allocation10 + $0x150] sm:$0xff]
    %v1399 = vld [vmem:[#allocation10 + $0x158] sm:$0xff]
    %v1400 = vld [vmem:[#allocation10 + $0x160] sm:$0xff]
    %v1401 = vld [vmem:[#allocation10 + $0x168] sm:$0xff]
    %v1402 = vld [vmem:[#allocation10 + $0x170] sm:$0xff]
    %v1403 = vld [vmem:[#allocation10 + $0x178] sm:$0xff]
    %1404 = vmatpush.msra.mxu0 %v1401
    %1405 = vmatpush.msra.mxu0 %v1398
    %1406 = vmatpush.msra.mxu0 %v1395
    %1407 = vmatpush.msra.mxu0 %v1392
    %1408 = vmatpush.msra.mxu0 %v1389
    %1409 = vmatpush.msra.mxu0 %v1386
    %1410 = vmatpush.msra.mxu0 %v1383
    %1411 = vmatpush.msra.mxu0 %v1380
    %1412 = vmatpush.msra.mxu0 %v1377
    %1413 = vmatpush.msra.mxu0 %v1374
    %1414 = vmatpush.msra.mxu0 %v1371
    %1415 = vmatpush.msra.mxu0 %v1368
    %1416 = vmatpush.msra.mxu0 %v1365
    %1417 = vmatpush.msra.mxu0 %v1362
    %1418 = vmatpush.msra.mxu0 %v1359
    %1419 = vmatpush.msra.mxu0 %v1356
    %1420 = vmatmul.f32.gmra.mxu0 %v1352
    %v1421 = vpop.f32.mrf.mxu0
    %v1422 = vadd.f32 0.0, %v1421
    %1423 = vmatmul.f32.gmra.mxu0 %v1353
    %v1424 = vpop.f32.mrf.mxu0
    %v1425 = vadd.f32 0.0, %v1424
    %1426 = vmatmul.f32.gmra.mxu0 %v1354
    %v1427 = vpop.f32.mrf.mxu0
    %v1428 = vadd.f32 0.0, %v1427
    %1429 = vmatmul.f32.gmra.mxu0 %v1355
    %v1430 = vpop.f32.mrf.mxu0
    %v1431 = vadd.f32 0.0, %v1430
    %1432 = vdwg.mxu0
    %1433 = vmatpush.msra.mxu0 %v1402
    %1434 = vmatpush.msra.mxu0 %v1399
    %1435 = vmatpush.msra.mxu0 %v1396
    %1436 = vmatpush.msra.mxu0 %v1393
    %1437 = vmatpush.msra.mxu0 %v1390
    %1438 = vmatpush.msra.mxu0 %v1387
    %1439 = vmatpush.msra.mxu0 %v1384
    %1440 = vmatpush.msra.mxu0 %v1381
    %1441 = vmatpush.msra.mxu0 %v1378
    %1442 = vmatpush.msra.mxu0 %v1375
    %1443 = vmatpush.msra.mxu0 %v1372
    %1444 = vmatpush.msra.mxu0 %v1369
    %1445 = vmatpush.msra.mxu0 %v1366
    %1446 = vmatpush.msra.mxu0 %v1363
    %1447 = vmatpush.msra.mxu0 %v1360
    %1448 = vmatpush.msra.mxu0 %v1357
    %1449 = vmatmul.f32.gmra.mxu0 %v1352
    %v1450 = vpop.f32.mrf.mxu0
    %v1451 = vadd.f32 0.0, %v1450
    %1452 = vmatmul.f32.gmra.mxu0 %v1353
    %v1453 = vpop.f32.mrf.mxu0
    %v1454 = vadd.f32 0.0, %v1453
    %1455 = vmatmul.f32.gmra.mxu0 %v1354
    %v1456 = vpop.f32.mrf.mxu0
    %v1457 = vadd.f32 0.0, %v1456
    %1458 = vmatmul.f32.gmra.mxu0 %v1355
    %v1459 = vpop.f32.mrf.mxu0
    %v1460 = vadd.f32 0.0, %v1459
    %1461 = vdwg.mxu0
    %1462 = vmatpush.msra.mxu0 %v1403
    %1463 = vmatpush.msra.mxu0 %v1400
    %1464 = vmatpush.msra.mxu0 %v1397
    %1465 = vmatpush.msra.mxu0 %v1394
    %1466 = vmatpush.msra.mxu0 %v1391
    %1467 = vmatpush.msra.mxu0 %v1388
    %1468 = vmatpush.msra.mxu0 %v1385
    %1469 = vmatpush.msra.mxu0 %v1382
    %1470 = vmatpush.msra.mxu0 %v1379
    %1471 = vmatpush.msra.mxu0 %v1376
    %1472 = vmatpush.msra.mxu0 %v1373
    %1473 = vmatpush.msra.mxu0 %v1370
    %1474 = vmatpush.msra.mxu0 %v1367
    %1475 = vmatpush.msra.mxu0 %v1364
    %1476 = vmatpush.msra.mxu0 %v1361
    %1477 = vmatpush.msra.mxu0 %v1358
    %1478 = vmatmul.f32.gmra.mxu0 %v1352
    %v1479 = vpop.f32.mrf.mxu0
    %v1480 = vadd.f32 0.0, %v1479
    %1481 = vmatmul.f32.gmra.mxu0 %v1353
    %v1482 = vpop.f32.mrf.mxu0
    %v1483 = vadd.f32 0.0, %v1482
    %1484 = vmatmul.f32.gmra.mxu0 %v1354
    %v1485 = vpop.f32.mrf.mxu0
    %v1486 = vadd.f32 0.0, %v1485
    %1487 = vmatmul.f32.gmra.mxu0 %v1355
    %v1488 = vpop.f32.mrf.mxu0
    %v1489 = vadd.f32 0.0, %v1488
    %1490 = vdwg.mxu0
    %v1491 = vadd.f32 %v902, %v1422
    %v1492 = vadd.f32 %v905, %v1425
    %v1493 = vadd.f32 %v908, %v1428
    %v1494 = vadd.f32 %v911, %v1431
    %v1495 = vadd.f32 %v960, %v1451
    %v1496 = vadd.f32 %v963, %v1454
    %v1497 = vadd.f32 %v966, %v1457
    %v1498 = vadd.f32 %v969, %v1460
    %1499 = vmatpush.msra.mxu0 0.0
    %1500 = vmatpush.msra.mxu0 0.0
    %1501 = vmatpush.msra.mxu0 0.0
    %1502 = vmatpush.msra.mxu0 0.0
    %1503 = vmatpush.msra.mxu0 0.0
    %1504 = vmatpush.msra.mxu0 0.0
    %1505 = vmatpush.msra.mxu0 0.0
    %1506 = vmatpush.msra.mxu0 0.0
    %1507 = vmatpush.msra.mxu0 0.0
    %1508 = vmatpush.msra.mxu0 0.0
    %1509 = vmatpush.msra.mxu0 0.0
    %1510 = vmatpush.msra.mxu0 0.0
    %1511 = vmatpush.msra.mxu0 %v1498
    %1512 = vmatpush.msra.mxu0 %v1497
    %1513 = vmatpush.msra.mxu0 %v1496
    %1514 = vmatpush.msra.mxu0 %v1495
    %1515 = vmatmul.f32.gmra.mxu0 %v1031
    %v1516 = vpop.f32.mrf.mxu0
    %v1517 = vadd.f32 0.0, %v1516
    %1518 = vmatmul.f32.gmra.mxu0 %v1034
    %v1519 = vpop.f32.mrf.mxu0
    %v1520 = vadd.f32 0.0, %v1519
    %1521 = vmatmul.f32.gmra.mxu0 %v1037
    %v1522 = vpop.f32.mrf.mxu0
    %v1523 = vadd.f32 0.0, %v1522
    %1524 = vmatmul.f32.gmra.mxu0 %v1040
    %v1525 = vpop.f32.mrf.mxu0
    %v1526 = vadd.f32 0.0, %v1525
    %1527 = vdwg.mxu0
    %v1528 = vadd.f32 %v1491, %v1517
    %v1529 = vadd.f32 %v1492, %v1520
    %v1530 = vadd.f32 %v1493, %v1523
    %v1531 = vadd.f32 %v1494, %v1526
    %v1532 = vadd.f32 %v1018, %v1480
    %v1533 = vadd.f32 %v1021, %v1483
    %v1534 = vadd.f32 %v1024, %v1486
    %v1535 = vadd.f32 %v1027, %v1489
    %1536 = vmatpush.msra.mxu0 0.0
    %1537 = vmatpush.msra.mxu0 0.0
    %1538 = vmatpush.msra.mxu0 0.0
    %1539 = vmatpush.msra.mxu0 0.0
    %1540 = vmatpush.msra.mxu0 0.0
    %1541 = vmatpush.msra.mxu0 0.0
    %1542 = vmatpush.msra.mxu0 0.0
    %1543 = vmatpush.msra.mxu0 0.0
    %1544 = vmatpush.msra.mxu0 0.0
    %1545 = vmatpush.msra.mxu0 0.0
    %1546 = vmatpush.msra.mxu0 0.0
    %1547 = vmatpush.msra.mxu0 0.0
    %1548 = vmatpush.msra.mxu0 %v1535
    %1549 = vmatpush.msra.mxu0 %v1534
    %1550 = vmatpush.msra.mxu0 %v1533
    %1551 = vmatpush.msra.mxu0 %v1532
    %1552 = vmatmul.f32.gmra.mxu0 %v1109
    %v1553 = vpop.f32.mrf.mxu0
    %v1554 = vadd.f32 0.0, %v1553
    %1555 = vmatmul.f32.gmra.mxu0 %v1112
    %v1556 = vpop.f32.mrf.mxu0
    %v1557 = vadd.f32 0.0, %v1556
    %1558 = vmatmul.f32.gmra.mxu0 %v1115
    %v1559 = vpop.f32.mrf.mxu0
    %v1560 = vadd.f32 0.0, %v1559
    %1561 = vmatmul.f32.gmra.mxu0 %v1118
    %v1562 = vpop.f32.mrf.mxu0
    %v1563 = vadd.f32 0.0, %v1562
    %1564 = vdwg.mxu0
    %v1565 = vadd.f32 %v1528, %v1554
    %v1566 = vadd.f32 %v1529, %v1557
    %v1567 = vadd.f32 %v1530, %v1560
    %v1568 = vadd.f32 %v1531, %v1563
    %v1569 = vld [vmem:[#allocation13] sm:$0x1]
    %v1571 = vperm.slane %v1569, 0
    %v1573 = vadd.f32 %v1565, %v1571
    %v1574 = vadd.f32 %v1566, %v1571
    %v1575 = vadd.f32 %v1567, %v1571
    %v1576 = vadd.f32 %v1568, %v1571
    %v1577 = vtanh.pop %v1573
    %v1578 = vtanh.pop %v1574
    %v1579 = vtanh.pop %v1575
    %v1580 = vtanh.pop %v1576
    %v1581 = vmul.f32 %v1261, %v215
    %v1582 = vmul.f32 %v1291, %v216
    %v1583 = vmul.f32 %v1321, %v217
    %v1584 = vmul.f32 %v1351, %v218
    %v1585 = vsub.f32 1.0, %v1261
    %v1586 = vsub.f32 1.0, %v1291
    %v1587 = vsub.f32 1.0, %v1321
    %v1588 = vsub.f32 1.0, %v1351
    %v1589 = vmul.f32 %v1585, %v1577
    %v1590 = vmul.f32 %v1586, %v1578
    %v1591 = vmul.f32 %v1587, %v1579
    %v1592 = vmul.f32 %v1588, %v1580
    %v1593 = vadd.f32 %v1581, %v1589
    %v1594 = vadd.f32 %v1582, %v1590
    %v1595 = vadd.f32 %v1583, %v1591
    %v1596 = vadd.f32 %v1584, %v1592
    %1597 = vst [vmem:[#allocation20] sm:$0xff] %v1593
    %1598 = vst [vmem:[#allocation20 + $0x8] sm:$0xff] %v1594
    %1599 = vst [vmem:[#allocation20 + $0x10] sm:$0xff] %v1595
    %1600 = vst [vmem:[#allocation20 + $0x18] sm:$0xff] %v1596
    %s1601 = scalar_lea.vmem [#allocation5], 32
    %v1602 = vld [vmem:[%s1601] sm:$0xff]
    %v1603 = vld [vmem:[%s1601 + $0x8] sm:$0xff]
    %v1604 = vld [vmem:[%s1601 + $0x10] sm:$0xff]
    %v1605 = vld [vmem:[%s1601 + $0x18] sm:$0xff]
    %v1606 = vld [vmem:[#allocation14] sm:$0xff]
    %v1607 = vld [vmem:[#allocation14 + $0x8] sm:$0xff]
    %v1608 = vld [vmem:[#allocation14 + $0x10] sm:$0xff]
    %v1609 = vld [vmem:[#allocation14 + $0x18] sm:$0xff]
    %v1610 = vld [vmem:[#allocation14 + $0x20] sm:$0xff]
    %v1611 = vld [vmem:[#allocation14 + $0x28] sm:$0xff]
    %v1612 = vld [vmem:[#allocation14 + $0x30] sm:$0xff]
    %v1613 = vld [vmem:[#allocation14 + $0x38] sm:$0xff]
    %v1614 = vld [vmem:[#allocation14 + $0x40] sm:$0xff]
    %v1615 = vld [vmem:[#allocation14 + $0x48] sm:$0xff]
    %v1616 = vld [vmem:[#allocation14 + $0x50] sm:$0xff]
    %v1617 = vld [vmem:[#allocation14 + $0x58] sm:$0xff]
    %v1618 = vld [vmem:[#allocation14 + $0x60] sm:$0xff]
    %v1619 = vld [vmem:[#allocation14 + $0x68] sm:$0xff]
    %v1620 = vld [vmem:[#allocation14 + $0x70] sm:$0xff]
    %v1621 = vld [vmem:[#allocation14 + $0x78] sm:$0xff]
    %v1622 = vld [vmem:[#allocation14 + $0x80] sm:$0xff]
    %v1623 = vld [vmem:[#allocation14 + $0x88] sm:$0xff]
    %v1624 = vld [vmem:[#allocation14 + $0x90] sm:$0xff]
    %v1625 = vld [vmem:[#allocation14 + $0x98] sm:$0xff]
    %v1626 = vld [vmem:[#allocation14 + $0xa0] sm:$0xff]
    %v1627 = vld [vmem:[#allocation14 + $0xa8] sm:$0xff]
    %v1628 = vld [vmem:[#allocation14 + $0xb0] sm:$0xff]
    %v1629 = vld [vmem:[#allocation14 + $0xb8] sm:$0xff]
    %v1630 = vld [vmem:[#allocation14 + $0xc0] sm:$0xff]
    %v1631 = vld [vmem:[#allocation14 + $0xc8] sm:$0xff]
    %v1632 = vld [vmem:[#allocation14 + $0xd0] sm:$0xff]
    %v1633 = vld [vmem:[#allocation14 + $0xd8] sm:$0xff]
    %v1634 = vld [vmem:[#allocation14 + $0xe0] sm:$0xff]
    %v1635 = vld [vmem:[#allocation14 + $0xe8] sm:$0xff]
    %v1636 = vld [vmem:[#allocation14 + $0xf0] sm:$0xff]
    %v1637 = vld [vmem:[#allocation14 + $0xf8] sm:$0xff]
    %v1638 = vld [vmem:[#allocation14 + $0x100] sm:$0xff]
    %v1639 = vld [vmem:[#allocation14 + $0x108] sm:$0xff]
    %v1640 = vld [vmem:[#allocation14 + $0x110] sm:$0xff]
    %v1641 = vld [vmem:[#allocation14 + $0x118] sm:$0xff]
    %v1642 = vld [vmem:[#allocation14 + $0x120] sm:$0xff]
    %v1643 = vld [vmem:[#allocation14 + $0x128] sm:$0xff]
    %v1644 = vld [vmem:[#allocation14 + $0x130] sm:$0xff]
    %v1645 = vld [vmem:[#allocation14 + $0x138] sm:$0xff]
    %v1646 = vld [vmem:[#allocation14 + $0x140] sm:$0xff]
    %v1647 = vld [vmem:[#allocation14 + $0x148] sm:$0xff]
    %v1648 = vld [vmem:[#allocation14 + $0x150] sm:$0xff]
    %v1649 = vld [vmem:[#allocation14 + $0x158] sm:$0xff]
    %v1650 = vld [vmem:[#allocation14 + $0x160] sm:$0xff]
    %v1651 = vld [vmem:[#allocation14 + $0x168] sm:$0xff]
    %v1652 = vld [vmem:[#allocation14 + $0x170] sm:$0xff]
    %v1653 = vld [vmem:[#allocation14 + $0x178] sm:$0xff]
    %v1654 = vld [vmem:[#allocation14 + $0x180] sm:$0xff]
    %v1655 = vld [vmem:[#allocation14 + $0x188] sm:$0xff]
    %v1656 = vld [vmem:[#allocation14 + $0x190] sm:$0xff]
    %v1657 = vld [vmem:[#allocation14 + $0x198] sm:$0xff]
    %v1658 = vld [vmem:[#allocation14 + $0x1a0] sm:$0xff]
    %v1659 = vld [vmem:[#allocation14 + $0x1a8] sm:$0xff]
    %v1660 = vld [vmem:[#allocation14 + $0x1b0] sm:$0xff]
    %v1661 = vld [vmem:[#allocation14 + $0x1b8] sm:$0xff]
    %v1662 = vld [vmem:[#allocation14 + $0x1c0] sm:$0xff]
    %v1663 = vld [vmem:[#allocation14 + $0x1c8] sm:$0xff]
    %v1664 = vld [vmem:[#allocation14 + $0x1d0] sm:$0xff]
    %v1665 = vld [vmem:[#allocation14 + $0x1d8] sm:$0xff]
    %v1666 = vld [vmem:[#allocation14 + $0x1e0] sm:$0xff]
    %v1667 = vld [vmem:[#allocation14 + $0x1e8] sm:$0xff]
    %v1668 = vld [vmem:[#allocation14 + $0x1f0] sm:$0xff]
    %v1669 = vld [vmem:[#allocation14 + $0x1f8] sm:$0xff]
    %v1670 = vld [vmem:[#allocation14 + $0x200] sm:$0xff]
    %v1671 = vld [vmem:[#allocation14 + $0x208] sm:$0xff]
    %v1672 = vld [vmem:[#allocation14 + $0x210] sm:$0xff]
    %v1673 = vld [vmem:[#allocation14 + $0x218] sm:$0xff]
    %v1674 = vld [vmem:[#allocation14 + $0x220] sm:$0xff]
    %v1675 = vld [vmem:[#allocation14 + $0x228] sm:$0xff]
    %v1676 = vld [vmem:[#allocation14 + $0x230] sm:$0xff]
    %v1677 = vld [vmem:[#allocation14 + $0x238] sm:$0xff]
    %v1678 = vld [vmem:[#allocation14 + $0x240] sm:$0xff]
    %v1679 = vld [vmem:[#allocation14 + $0x248] sm:$0xff]
    %v1680 = vld [vmem:[#allocation14 + $0x250] sm:$0xff]
    %v1681 = vld [vmem:[#allocation14 + $0x258] sm:$0xff]
    %v1682 = vld [vmem:[#allocation14 + $0x260] sm:$0xff]
    %v1683 = vld [vmem:[#allocation14 + $0x268] sm:$0xff]
    %v1684 = vld [vmem:[#allocation14 + $0x270] sm:$0xff]
    %v1685 = vld [vmem:[#allocation14 + $0x278] sm:$0xff]
    %v1686 = vld [vmem:[#allocation14 + $0x280] sm:$0xff]
    %v1687 = vld [vmem:[#allocation14 + $0x288] sm:$0xff]
    %v1688 = vld [vmem:[#allocation14 + $0x290] sm:$0xff]
    %v1689 = vld [vmem:[#allocation14 + $0x298] sm:$0xff]
    %v1690 = vld [vmem:[#allocation14 + $0x2a0] sm:$0xff]
    %v1691 = vld [vmem:[#allocation14 + $0x2a8] sm:$0xff]
    %v1692 = vld [vmem:[#allocation14 + $0x2b0] sm:$0xff]
    %v1693 = vld [vmem:[#allocation14 + $0x2b8] sm:$0xff]
    %v1694 = vld [vmem:[#allocation14 + $0x2c0] sm:$0xff]
    %v1695 = vld [vmem:[#allocation14 + $0x2c8] sm:$0xff]
    %v1696 = vld [vmem:[#allocation14 + $0x2d0] sm:$0xff]
    %v1697 = vld [vmem:[#allocation14 + $0x2d8] sm:$0xff]
    %v1698 = vld [vmem:[#allocation14 + $0x2e0] sm:$0xff]
    %v1699 = vld [vmem:[#allocation14 + $0x2e8] sm:$0xff]
    %v1700 = vld [vmem:[#allocation14 + $0x2f0] sm:$0xff]
    %v1701 = vld [vmem:[#allocation14 + $0x2f8] sm:$0xff]
    %v1702 = vld [vmem:[#allocation14 + $0x300] sm:$0xff]
    %v1703 = vld [vmem:[#allocation14 + $0x308] sm:$0xff]
    %v1704 = vld [vmem:[#allocation14 + $0x310] sm:$0xff]
    %v1705 = vld [vmem:[#allocation14 + $0x318] sm:$0xff]
    %v1706 = vld [vmem:[#allocation14 + $0x320] sm:$0xff]
    %v1707 = vld [vmem:[#allocation14 + $0x328] sm:$0xff]
    %v1708 = vld [vmem:[#allocation14 + $0x330] sm:$0xff]
    %v1709 = vld [vmem:[#allocation14 + $0x338] sm:$0xff]
    %v1710 = vld [vmem:[#allocation14 + $0x340] sm:$0xff]
    %v1711 = vld [vmem:[#allocation14 + $0x348] sm:$0xff]
    %v1712 = vld [vmem:[#allocation14 + $0x350] sm:$0xff]
    %v1713 = vld [vmem:[#allocation14 + $0x358] sm:$0xff]
    %v1714 = vld [vmem:[#allocation14 + $0x360] sm:$0xff]
    %v1715 = vld [vmem:[#allocation14 + $0x368] sm:$0xff]
    %v1716 = vld [vmem:[#allocation14 + $0x370] sm:$0xff]
    %v1717 = vld [vmem:[#allocation14 + $0x378] sm:$0xff]
    %v1718 = vld [vmem:[#allocation14 + $0x380] sm:$0xff]
    %v1719 = vld [vmem:[#allocation14 + $0x388] sm:$0xff]
    %v1720 = vld [vmem:[#allocation14 + $0x390] sm:$0xff]
    %v1721 = vld [vmem:[#allocation14 + $0x398] sm:$0xff]
    %v1722 = vld [vmem:[#allocation14 + $0x3a0] sm:$0xff]
    %v1723 = vld [vmem:[#allocation14 + $0x3a8] sm:$0xff]
    %v1724 = vld [vmem:[#allocation14 + $0x3b0] sm:$0xff]
    %v1725 = vld [vmem:[#allocation14 + $0x3b8] sm:$0xff]
    %v1726 = vld [vmem:[#allocation14 + $0x3c0] sm:$0xff]
    %v1727 = vld [vmem:[#allocation14 + $0x3c8] sm:$0xff]
    %v1728 = vld [vmem:[#allocation14 + $0x3d0] sm:$0xff]
    %v1729 = vld [vmem:[#allocation14 + $0x3d8] sm:$0xff]
    %v1730 = vld [vmem:[#allocation14 + $0x3e0] sm:$0xff]
    %v1731 = vld [vmem:[#allocation14 + $0x3e8] sm:$0xff]
    %v1732 = vld [vmem:[#allocation14 + $0x3f0] sm:$0xff]
    %v1733 = vld [vmem:[#allocation14 + $0x3f8] sm:$0xff]
    %v1734 = vld [vmem:[#allocation14 + $0x400] sm:$0xff]
    %v1735 = vld [vmem:[#allocation14 + $0x408] sm:$0xff]
    %v1736 = vld [vmem:[#allocation14 + $0x410] sm:$0xff]
    %v1737 = vld [vmem:[#allocation14 + $0x418] sm:$0xff]
    %v1738 = vld [vmem:[#allocation14 + $0x420] sm:$0xff]
    %v1739 = vld [vmem:[#allocation14 + $0x428] sm:$0xff]
    %v1740 = vld [vmem:[#allocation14 + $0x430] sm:$0xff]
    %v1741 = vld [vmem:[#allocation14 + $0x438] sm:$0xff]
    %v1742 = vld [vmem:[#allocation14 + $0x440] sm:$0xff]
    %v1743 = vld [vmem:[#allocation14 + $0x448] sm:$0xff]
    %v1744 = vld [vmem:[#allocation14 + $0x450] sm:$0xff]
    %v1745 = vld [vmem:[#allocation14 + $0x458] sm:$0xff]
    %v1746 = vld [vmem:[#allocation14 + $0x460] sm:$0xff]
    %v1747 = vld [vmem:[#allocation14 + $0x468] sm:$0xff]
    %v1748 = vld [vmem:[#allocation14 + $0x470] sm:$0xff]
    %v1749 = vld [vmem:[#allocation14 + $0x478] sm:$0xff]
    %v1750 = vld [vmem:[#allocation14 + $0x480] sm:$0xff]
    %v1751 = vld [vmem:[#allocation14 + $0x488] sm:$0xff]
    %v1752 = vld [vmem:[#allocation14 + $0x490] sm:$0xff]
    %v1753 = vld [vmem:[#allocation14 + $0x498] sm:$0xff]
    %v1754 = vld [vmem:[#allocation14 + $0x4a0] sm:$0xff]
    %v1755 = vld [vmem:[#allocation14 + $0x4a8] sm:$0xff]
    %v1756 = vld [vmem:[#allocation14 + $0x4b0] sm:$0xff]
    %v1757 = vld [vmem:[#allocation14 + $0x4b8] sm:$0xff]
    %v1758 = vld [vmem:[#allocation14 + $0x4c0] sm:$0xff]
    %v1759 = vld [vmem:[#allocation14 + $0x4c8] sm:$0xff]
    %v1760 = vld [vmem:[#allocation14 + $0x4d0] sm:$0xff]
    %v1761 = vld [vmem:[#allocation14 + $0x4d8] sm:$0xff]
    %v1762 = vld [vmem:[#allocation14 + $0x4e0] sm:$0xff]
    %v1763 = vld [vmem:[#allocation14 + $0x4e8] sm:$0xff]
    %v1764 = vld [vmem:[#allocation14 + $0x4f0] sm:$0xff]
    %v1765 = vld [vmem:[#allocation14 + $0x4f8] sm:$0xff]
    %v1766 = vld [vmem:[#allocation14 + $0x500] sm:$0xff]
    %v1767 = vld [vmem:[#allocation14 + $0x508] sm:$0xff]
    %v1768 = vld [vmem:[#allocation14 + $0x510] sm:$0xff]
    %v1769 = vld [vmem:[#allocation14 + $0x518] sm:$0xff]
    %v1770 = vld [vmem:[#allocation14 + $0x520] sm:$0xff]
    %v1771 = vld [vmem:[#allocation14 + $0x528] sm:$0xff]
    %v1772 = vld [vmem:[#allocation14 + $0x530] sm:$0xff]
    %v1773 = vld [vmem:[#allocation14 + $0x538] sm:$0xff]
    %v1774 = vld [vmem:[#allocation14 + $0x540] sm:$0xff]
    %v1775 = vld [vmem:[#allocation14 + $0x548] sm:$0xff]
    %v1776 = vld [vmem:[#allocation14 + $0x550] sm:$0xff]
    %v1777 = vld [vmem:[#allocation14 + $0x558] sm:$0xff]
    %v1778 = vld [vmem:[#allocation14 + $0x560] sm:$0xff]
    %v1779 = vld [vmem:[#allocation14 + $0x568] sm:$0xff]
    %v1780 = vld [vmem:[#allocation14 + $0x570] sm:$0xff]
    %v1781 = vld [vmem:[#allocation14 + $0x578] sm:$0xff]
    %v1782 = vld [vmem:[#allocation14 + $0x580] sm:$0xff]
    %v1783 = vld [vmem:[#allocation14 + $0x588] sm:$0xff]
    %v1784 = vld [vmem:[#allocation14 + $0x590] sm:$0xff]
    %v1785 = vld [vmem:[#allocation14 + $0x598] sm:$0xff]
    %v1786 = vld [vmem:[#allocation14 + $0x5a0] sm:$0xff]
    %v1787 = vld [vmem:[#allocation14 + $0x5a8] sm:$0xff]
    %v1788 = vld [vmem:[#allocation14 + $0x5b0] sm:$0xff]
    %v1789 = vld [vmem:[#allocation14 + $0x5b8] sm:$0xff]
    %v1790 = vld [vmem:[#allocation14 + $0x5c0] sm:$0xff]
    %v1791 = vld [vmem:[#allocation14 + $0x5c8] sm:$0xff]
    %v1792 = vld [vmem:[#allocation14 + $0x5d0] sm:$0xff]
    %v1793 = vld [vmem:[#allocation14 + $0x5d8] sm:$0xff]
    %v1794 = vld [vmem:[#allocation14 + $0x5e0] sm:$0xff]
    %v1795 = vld [vmem:[#allocation14 + $0x5e8] sm:$0xff]
    %v1796 = vld [vmem:[#allocation14 + $0x5f0] sm:$0xff]
    %v1797 = vld [vmem:[#allocation14 + $0x5f8] sm:$0xff]
    %v1798 = vld [vmem:[#allocation14 + $0x600] sm:$0xff]
    %v1799 = vld [vmem:[#allocation14 + $0x608] sm:$0xff]
    %v1800 = vld [vmem:[#allocation14 + $0x610] sm:$0xff]
    %v1801 = vld [vmem:[#allocation14 + $0x618] sm:$0xff]
    %v1802 = vld [vmem:[#allocation14 + $0x620] sm:$0xff]
    %v1803 = vld [vmem:[#allocation14 + $0x628] sm:$0xff]
    %v1804 = vld [vmem:[#allocation14 + $0x630] sm:$0xff]
    %v1805 = vld [vmem:[#allocation14 + $0x638] sm:$0xff]
    %v1806 = vld [vmem:[#allocation14 + $0x640] sm:$0xff]
    %v1807 = vld [vmem:[#allocation14 + $0x648] sm:$0xff]
    %v1808 = vld [vmem:[#allocation14 + $0x650] sm:$0xff]
    %v1809 = vld [vmem:[#allocation14 + $0x658] sm:$0xff]
    %v1810 = vld [vmem:[#allocation14 + $0x660] sm:$0xff]
    %v1811 = vld [vmem:[#allocation14 + $0x668] sm:$0xff]
    %v1812 = vld [vmem:[#allocation14 + $0x670] sm:$0xff]
    %v1813 = vld [vmem:[#allocation14 + $0x678] sm:$0xff]
    %v1814 = vld [vmem:[#allocation14 + $0x680] sm:$0xff]
    %v1815 = vld [vmem:[#allocation14 + $0x688] sm:$0xff]
    %v1816 = vld [vmem:[#allocation14 + $0x690] sm:$0xff]
    %v1817 = vld [vmem:[#allocation14 + $0x698] sm:$0xff]
    %v1818 = vld [vmem:[#allocation14 + $0x6a0] sm:$0xff]
    %v1819 = vld [vmem:[#allocation14 + $0x6a8] sm:$0xff]
    %v1820 = vld [vmem:[#allocation14 + $0x6b0] sm:$0xff]
    %v1821 = vld [vmem:[#allocation14 + $0x6b8] sm:$0xff]
    %v1822 = vld [vmem:[#allocation14 + $0x6c0] sm:$0xff]
    %v1823 = vld [vmem:[#allocation14 + $0x6c8] sm:$0xff]
    %v1824 = vld [vmem:[#allocation14 + $0x6d0] sm:$0xff]
    %v1825 = vld [vmem:[#allocation14 + $0x6d8] sm:$0xff]
    %v1826 = vld [vmem:[#allocation14 + $0x6e0] sm:$0xff]
    %v1827 = vld [vmem:[#allocation14 + $0x6e8] sm:$0xff]
    %v1828 = vld [vmem:[#allocation14 + $0x6f0] sm:$0xff]
    %v1829 = vld [vmem:[#allocation14 + $0x6f8] sm:$0xff]
    %v1830 = vld [vmem:[#allocation14 + $0x700] sm:$0xff]
    %v1831 = vld [vmem:[#allocation14 + $0x708] sm:$0xff]
    %v1832 = vld [vmem:[#allocation14 + $0x710] sm:$0xff]
    %v1833 = vld [vmem:[#allocation14 + $0x718] sm:$0xff]
    %v1834 = vld [vmem:[#allocation14 + $0x720] sm:$0xff]
    %v1835 = vld [vmem:[#allocation14 + $0x728] sm:$0xff]
    %v1836 = vld [vmem:[#allocation14 + $0x730] sm:$0xff]
    %v1837 = vld [vmem:[#allocation14 + $0x738] sm:$0xff]
    %v1838 = vld [vmem:[#allocation14 + $0x740] sm:$0xff]
    %v1839 = vld [vmem:[#allocation14 + $0x748] sm:$0xff]
    %v1840 = vld [vmem:[#allocation14 + $0x750] sm:$0xff]
    %v1841 = vld [vmem:[#allocation14 + $0x758] sm:$0xff]
    %v1842 = vld [vmem:[#allocation14 + $0x760] sm:$0xff]
    %v1843 = vld [vmem:[#allocation14 + $0x768] sm:$0xff]
    %v1844 = vld [vmem:[#allocation14 + $0x770] sm:$0xff]
    %v1845 = vld [vmem:[#allocation14 + $0x778] sm:$0xff]
    %v1846 = vld [vmem:[#allocation14 + $0x780] sm:$0xff]
    %v1847 = vld [vmem:[#allocation14 + $0x788] sm:$0xff]
    %v1848 = vld [vmem:[#allocation14 + $0x790] sm:$0xff]
    %v1849 = vld [vmem:[#allocation14 + $0x798] sm:$0xff]
    %v1850 = vld [vmem:[#allocation14 + $0x7a0] sm:$0xff]
    %v1851 = vld [vmem:[#allocation14 + $0x7a8] sm:$0xff]
    %v1852 = vld [vmem:[#allocation14 + $0x7b0] sm:$0xff]
    %v1853 = vld [vmem:[#allocation14 + $0x7b8] sm:$0xff]
    %v1854 = vld [vmem:[#allocation14 + $0x7c0] sm:$0xff]
    %v1855 = vld [vmem:[#allocation14 + $0x7c8] sm:$0xff]
    %v1856 = vld [vmem:[#allocation14 + $0x7d0] sm:$0xff]
    %v1857 = vld [vmem:[#allocation14 + $0x7d8] sm:$0xff]
    %v1858 = vld [vmem:[#allocation14 + $0x7e0] sm:$0xff]
    %v1859 = vld [vmem:[#allocation14 + $0x7e8] sm:$0xff]
    %v1860 = vld [vmem:[#allocation14 + $0x7f0] sm:$0xff]
    %v1861 = vld [vmem:[#allocation14 + $0x7f8] sm:$0xff]
    %v1862 = vld [vmem:[#allocation14 + $0x800] sm:$0xff]
    %v1863 = vld [vmem:[#allocation14 + $0x808] sm:$0xff]
    %v1864 = vld [vmem:[#allocation14 + $0x810] sm:$0xff]
    %v1865 = vld [vmem:[#allocation14 + $0x818] sm:$0xff]
    %v1866 = vld [vmem:[#allocation14 + $0x820] sm:$0xff]
    %v1867 = vld [vmem:[#allocation14 + $0x828] sm:$0xff]
    %v1868 = vld [vmem:[#allocation14 + $0x830] sm:$0xff]
    %v1869 = vld [vmem:[#allocation14 + $0x838] sm:$0xff]
    %v1870 = vld [vmem:[#allocation14 + $0x840] sm:$0xff]
    %v1871 = vld [vmem:[#allocation14 + $0x848] sm:$0xff]
    %v1872 = vld [vmem:[#allocation14 + $0x850] sm:$0xff]
    %v1873 = vld [vmem:[#allocation14 + $0x858] sm:$0xff]
    %v1874 = vld [vmem:[#allocation14 + $0x860] sm:$0xff]
    %v1875 = vld [vmem:[#allocation14 + $0x868] sm:$0xff]
    %v1876 = vld [vmem:[#allocation14 + $0x870] sm:$0xff]
    %v1877 = vld [vmem:[#allocation14 + $0x878] sm:$0xff]
    %v1878 = vld [vmem:[#allocation14 + $0x880] sm:$0xff]
    %v1879 = vld [vmem:[#allocation14 + $0x888] sm:$0xff]
    %v1880 = vld [vmem:[#allocation14 + $0x890] sm:$0xff]
    %v1881 = vld [vmem:[#allocation14 + $0x898] sm:$0xff]
    %v1882 = vld [vmem:[#allocation14 + $0x8a0] sm:$0xff]
    %v1883 = vld [vmem:[#allocation14 + $0x8a8] sm:$0xff]
    %v1884 = vld [vmem:[#allocation14 + $0x8b0] sm:$0xff]
    %v1885 = vld [vmem:[#allocation14 + $0x8b8] sm:$0xff]
    %v1886 = vld [vmem:[#allocation14 + $0x8c0] sm:$0xff]
    %v1887 = vld [vmem:[#allocation14 + $0x8c8] sm:$0xff]
    %v1888 = vld [vmem:[#allocation14 + $0x8d0] sm:$0xff]
    %v1889 = vld [vmem:[#allocation14 + $0x8d8] sm:$0xff]
    %v1890 = vld [vmem:[#allocation14 + $0x8e0] sm:$0xff]
    %v1891 = vld [vmem:[#allocation14 + $0x8e8] sm:$0xff]
    %v1892 = vld [vmem:[#allocation14 + $0x8f0] sm:$0xff]
    %v1893 = vld [vmem:[#allocation14 + $0x8f8] sm:$0xff]
    %1894 = vmatpush.msra.mxu0 %v1741
    %1895 = vmatpush.msra.mxu0 %v1732
    %1896 = vmatpush.msra.mxu0 %v1723
    %1897 = vmatpush.msra.mxu0 %v1714
    %1898 = vmatpush.msra.mxu0 %v1705
    %1899 = vmatpush.msra.mxu0 %v1696
    %1900 = vmatpush.msra.mxu0 %v1687
    %1901 = vmatpush.msra.mxu0 %v1678
    %1902 = vmatpush.msra.mxu0 %v1669
    %1903 = vmatpush.msra.mxu0 %v1660
    %1904 = vmatpush.msra.mxu0 %v1651
    %1905 = vmatpush.msra.mxu0 %v1642
    %1906 = vmatpush.msra.mxu0 %v1633
    %1907 = vmatpush.msra.mxu0 %v1624
    %1908 = vmatpush.msra.mxu0 %v1615
    %1909 = vmatpush.msra.mxu0 %v1606
    %1910 = vmatmul.f32.gmra.mxu0 %v1593
    %v1911 = vpop.f32.mrf.mxu0
    %v1912 = vadd.f32 0.0, %v1911
    %1913 = vmatmul.f32.gmra.mxu0 %v1594
    %v1914 = vpop.f32.mrf.mxu0
    %v1915 = vadd.f32 0.0, %v1914
    %1916 = vmatmul.f32.gmra.mxu0 %v1595
    %v1917 = vpop.f32.mrf.mxu0
    %v1918 = vadd.f32 0.0, %v1917
    %1919 = vmatmul.f32.gmra.mxu0 %v1596
    %v1920 = vpop.f32.mrf.mxu0
    %v1921 = vadd.f32 0.0, %v1920
    %1922 = vdwg.mxu0
    %1923 = vmatpush.msra.mxu0 %v1885
    %1924 = vmatpush.msra.mxu0 %v1876
    %1925 = vmatpush.msra.mxu0 %v1867
    %1926 = vmatpush.msra.mxu0 %v1858
    %1927 = vmatpush.msra.mxu0 %v1849
    %1928 = vmatpush.msra.mxu0 %v1840
    %1929 = vmatpush.msra.mxu0 %v1831
    %1930 = vmatpush.msra.mxu0 %v1822
    %1931 = vmatpush.msra.mxu0 %v1813
    %1932 = vmatpush.msra.mxu0 %v1804
    %1933 = vmatpush.msra.mxu0 %v1795
    %1934 = vmatpush.msra.mxu0 %v1786
    %1935 = vmatpush.msra.mxu0 %v1777
    %1936 = vmatpush.msra.mxu0 %v1768
    %1937 = vmatpush.msra.mxu0 %v1759
    %1938 = vmatpush.msra.mxu0 %v1750
    %1939 = vmatmul.f32.gmra.mxu0 %v1602
    %v1940 = vpop.f32.mrf.mxu0
    %v1941 = vadd.f32 %v1912, %v1940
    %1942 = vmatmul.f32.gmra.mxu0 %v1603
    %v1943 = vpop.f32.mrf.mxu0
    %v1944 = vadd.f32 %v1915, %v1943
    %1945 = vmatmul.f32.gmra.mxu0 %v1604
    %v1946 = vpop.f32.mrf.mxu0
    %v1947 = vadd.f32 %v1918, %v1946
    %1948 = vmatmul.f32.gmra.mxu0 %v1605
    %v1949 = vpop.f32.mrf.mxu0
    %v1950 = vadd.f32 %v1921, %v1949
    %1951 = vdwg.mxu0
    %1952 = vmatpush.msra.mxu0 %v1742
    %1953 = vmatpush.msra.mxu0 %v1733
    %1954 = vmatpush.msra.mxu0 %v1724
    %1955 = vmatpush.msra.mxu0 %v1715
    %1956 = vmatpush.msra.mxu0 %v1706
    %1957 = vmatpush.msra.mxu0 %v1697
    %1958 = vmatpush.msra.mxu0 %v1688
    %1959 = vmatpush.msra.mxu0 %v1679
    %1960 = vmatpush.msra.mxu0 %v1670
    %1961 = vmatpush.msra.mxu0 %v1661
    %1962 = vmatpush.msra.mxu0 %v1652
    %1963 = vmatpush.msra.mxu0 %v1643
    %1964 = vmatpush.msra.mxu0 %v1634
    %1965 = vmatpush.msra.mxu0 %v1625
    %1966 = vmatpush.msra.mxu0 %v1616
    %1967 = vmatpush.msra.mxu0 %v1607
    %1968 = vmatmul.f32.gmra.mxu0 %v1593
    %v1969 = vpop.f32.mrf.mxu0
    %v1970 = vadd.f32 0.0, %v1969
    %1971 = vmatmul.f32.gmra.mxu0 %v1594
    %v1972 = vpop.f32.mrf.mxu0
    %v1973 = vadd.f32 0.0, %v1972
    %1974 = vmatmul.f32.gmra.mxu0 %v1595
    %v1975 = vpop.f32.mrf.mxu0
    %v1976 = vadd.f32 0.0, %v1975
    %1977 = vmatmul.f32.gmra.mxu0 %v1596
    %v1978 = vpop.f32.mrf.mxu0
    %v1979 = vadd.f32 0.0, %v1978
    %1980 = vdwg.mxu0
    %1981 = vmatpush.msra.mxu0 %v1886
    %1982 = vmatpush.msra.mxu0 %v1877
    %1983 = vmatpush.msra.mxu0 %v1868
    %1984 = vmatpush.msra.mxu0 %v1859
    %1985 = vmatpush.msra.mxu0 %v1850
    %1986 = vmatpush.msra.mxu0 %v1841
    %1987 = vmatpush.msra.mxu0 %v1832
    %1988 = vmatpush.msra.mxu0 %v1823
    %1989 = vmatpush.msra.mxu0 %v1814
    %1990 = vmatpush.msra.mxu0 %v1805
    %1991 = vmatpush.msra.mxu0 %v1796
    %1992 = vmatpush.msra.mxu0 %v1787
    %1993 = vmatpush.msra.mxu0 %v1778
    %1994 = vmatpush.msra.mxu0 %v1769
    %1995 = vmatpush.msra.mxu0 %v1760
    %1996 = vmatpush.msra.mxu0 %v1751
    %1997 = vmatmul.f32.gmra.mxu0 %v1602
    %v1998 = vpop.f32.mrf.mxu0
    %v1999 = vadd.f32 %v1970, %v1998
    %2000 = vmatmul.f32.gmra.mxu0 %v1603
    %v2001 = vpop.f32.mrf.mxu0
    %v2002 = vadd.f32 %v1973, %v2001
    %2003 = vmatmul.f32.gmra.mxu0 %v1604
    %v2004 = vpop.f32.mrf.mxu0
    %v2005 = vadd.f32 %v1976, %v2004
    %2006 = vmatmul.f32.gmra.mxu0 %v1605
    %v2007 = vpop.f32.mrf.mxu0
    %v2008 = vadd.f32 %v1979, %v2007
    %2009 = vdwg.mxu0
    %2010 = vmatpush.msra.mxu0 %v1743
    %2011 = vmatpush.msra.mxu0 %v1734
    %2012 = vmatpush.msra.mxu0 %v1725
    %2013 = vmatpush.msra.mxu0 %v1716
    %2014 = vmatpush.msra.mxu0 %v1707
    %2015 = vmatpush.msra.mxu0 %v1698
    %2016 = vmatpush.msra.mxu0 %v1689
    %2017 = vmatpush.msra.mxu0 %v1680
    %2018 = vmatpush.msra.mxu0 %v1671
    %2019 = vmatpush.msra.mxu0 %v1662
    %2020 = vmatpush.msra.mxu0 %v1653
    %2021 = vmatpush.msra.mxu0 %v1644
    %2022 = vmatpush.msra.mxu0 %v1635
    %2023 = vmatpush.msra.mxu0 %v1626
    %2024 = vmatpush.msra.mxu0 %v1617
    %2025 = vmatpush.msra.mxu0 %v1608
    %2026 = vmatmul.f32.gmra.mxu0 %v1593
    %v2027 = vpop.f32.mrf.mxu0
    %v2028 = vadd.f32 0.0, %v2027
    %2029 = vmatmul.f32.gmra.mxu0 %v1594
    %v2030 = vpop.f32.mrf.mxu0
    %v2031 = vadd.f32 0.0, %v2030
    %2032 = vmatmul.f32.gmra.mxu0 %v1595
    %v2033 = vpop.f32.mrf.mxu0
    %v2034 = vadd.f32 0.0, %v2033
    %2035 = vmatmul.f32.gmra.mxu0 %v1596
    %v2036 = vpop.f32.mrf.mxu0
    %v2037 = vadd.f32 0.0, %v2036
    %2038 = vdwg.mxu0
    %2039 = vmatpush.msra.mxu0 %v1887
    %2040 = vmatpush.msra.mxu0 %v1878
    %2041 = vmatpush.msra.mxu0 %v1869
    %2042 = vmatpush.msra.mxu0 %v1860
    %2043 = vmatpush.msra.mxu0 %v1851
    %2044 = vmatpush.msra.mxu0 %v1842
    %2045 = vmatpush.msra.mxu0 %v1833
    %2046 = vmatpush.msra.mxu0 %v1824
    %2047 = vmatpush.msra.mxu0 %v1815
    %2048 = vmatpush.msra.mxu0 %v1806
    %2049 = vmatpush.msra.mxu0 %v1797
    %2050 = vmatpush.msra.mxu0 %v1788
    %2051 = vmatpush.msra.mxu0 %v1779
    %2052 = vmatpush.msra.mxu0 %v1770
    %2053 = vmatpush.msra.mxu0 %v1761
    %2054 = vmatpush.msra.mxu0 %v1752
    %2055 = vmatmul.f32.gmra.mxu0 %v1602
    %v2056 = vpop.f32.mrf.mxu0
    %v2057 = vadd.f32 %v2028, %v2056
    %2058 = vmatmul.f32.gmra.mxu0 %v1603
    %v2059 = vpop.f32.mrf.mxu0
    %v2060 = vadd.f32 %v2031, %v2059
    %2061 = vmatmul.f32.gmra.mxu0 %v1604
    %v2062 = vpop.f32.mrf.mxu0
    %v2063 = vadd.f32 %v2034, %v2062
    %2064 = vmatmul.f32.gmra.mxu0 %v1605
    %v2065 = vpop.f32.mrf.mxu0
    %v2066 = vadd.f32 %v2037, %v2065
    %2067 = vdwg.mxu0
    %2068 = vmatpush.msra.mxu0 %v1744
    %2069 = vmatpush.msra.mxu0 %v1735
    %2070 = vmatpush.msra.mxu0 %v1726
    %2071 = vmatpush.msra.mxu0 %v1717
    %2072 = vmatpush.msra.mxu0 %v1708
    %2073 = vmatpush.msra.mxu0 %v1699
    %2074 = vmatpush.msra.mxu0 %v1690
    %2075 = vmatpush.msra.mxu0 %v1681
    %2076 = vmatpush.msra.mxu0 %v1672
    %2077 = vmatpush.msra.mxu0 %v1663
    %2078 = vmatpush.msra.mxu0 %v1654
    %2079 = vmatpush.msra.mxu0 %v1645
    %2080 = vmatpush.msra.mxu0 %v1636
    %2081 = vmatpush.msra.mxu0 %v1627
    %2082 = vmatpush.msra.mxu0 %v1618
    %2083 = vmatpush.msra.mxu0 %v1609
    %2084 = vmatmul.f32.gmra.mxu0 %v1593
    %v2085 = vpop.f32.mrf.mxu0
    %v2086 = vadd.f32 0.0, %v2085
    %2087 = vmatmul.f32.gmra.mxu0 %v1594
    %v2088 = vpop.f32.mrf.mxu0
    %v2089 = vadd.f32 0.0, %v2088
    %2090 = vmatmul.f32.gmra.mxu0 %v1595
    %v2091 = vpop.f32.mrf.mxu0
    %v2092 = vadd.f32 0.0, %v2091
    %2093 = vmatmul.f32.gmra.mxu0 %v1596
    %v2094 = vpop.f32.mrf.mxu0
    %v2095 = vadd.f32 0.0, %v2094
    %2096 = vdwg.mxu0
    %2097 = vmatpush.msra.mxu0 %v1888
    %2098 = vmatpush.msra.mxu0 %v1879
    %2099 = vmatpush.msra.mxu0 %v1870
    %2100 = vmatpush.msra.mxu0 %v1861
    %2101 = vmatpush.msra.mxu0 %v1852
    %2102 = vmatpush.msra.mxu0 %v1843
    %2103 = vmatpush.msra.mxu0 %v1834
    %2104 = vmatpush.msra.mxu0 %v1825
    %2105 = vmatpush.msra.mxu0 %v1816
    %2106 = vmatpush.msra.mxu0 %v1807
    %2107 = vmatpush.msra.mxu0 %v1798
    %2108 = vmatpush.msra.mxu0 %v1789
    %2109 = vmatpush.msra.mxu0 %v1780
    %2110 = vmatpush.msra.mxu0 %v1771
    %2111 = vmatpush.msra.mxu0 %v1762
    %2112 = vmatpush.msra.mxu0 %v1753
    %2113 = vmatmul.f32.gmra.mxu0 %v1602
    %v2114 = vpop.f32.mrf.mxu0
    %v2115 = vadd.f32 %v2086, %v2114
    %2116 = vmatmul.f32.gmra.mxu0 %v1603
    %v2117 = vpop.f32.mrf.mxu0
    %v2118 = vadd.f32 %v2089, %v2117
    %2119 = vmatmul.f32.gmra.mxu0 %v1604
    %v2120 = vpop.f32.mrf.mxu0
    %v2121 = vadd.f32 %v2092, %v2120
    %2122 = vmatmul.f32.gmra.mxu0 %v1605
    %v2123 = vpop.f32.mrf.mxu0
    %v2124 = vadd.f32 %v2095, %v2123
    %2125 = vdwg.mxu0
    %2126 = vmatpush.msra.mxu0 %v1745
    %2127 = vmatpush.msra.mxu0 %v1736
    %2128 = vmatpush.msra.mxu0 %v1727
    %2129 = vmatpush.msra.mxu0 %v1718
    %2130 = vmatpush.msra.mxu0 %v1709
    %2131 = vmatpush.msra.mxu0 %v1700
    %2132 = vmatpush.msra.mxu0 %v1691
    %2133 = vmatpush.msra.mxu0 %v1682
    %2134 = vmatpush.msra.mxu0 %v1673
    %2135 = vmatpush.msra.mxu0 %v1664
    %2136 = vmatpush.msra.mxu0 %v1655
    %2137 = vmatpush.msra.mxu0 %v1646
    %2138 = vmatpush.msra.mxu0 %v1637
    %2139 = vmatpush.msra.mxu0 %v1628
    %2140 = vmatpush.msra.mxu0 %v1619
    %2141 = vmatpush.msra.mxu0 %v1610
    %2142 = vmatmul.f32.gmra.mxu0 %v1593
    %v2143 = vpop.f32.mrf.mxu0
    %v2144 = vadd.f32 0.0, %v2143
    %2145 = vmatmul.f32.gmra.mxu0 %v1594
    %v2146 = vpop.f32.mrf.mxu0
    %v2147 = vadd.f32 0.0, %v2146
    %2148 = vmatmul.f32.gmra.mxu0 %v1595
    %v2149 = vpop.f32.mrf.mxu0
    %v2150 = vadd.f32 0.0, %v2149
    %2151 = vmatmul.f32.gmra.mxu0 %v1596
    %v2152 = vpop.f32.mrf.mxu0
    %v2153 = vadd.f32 0.0, %v2152
    %2154 = vdwg.mxu0
    %2155 = vmatpush.msra.mxu0 %v1889
    %2156 = vmatpush.msra.mxu0 %v1880
    %2157 = vmatpush.msra.mxu0 %v1871
    %2158 = vmatpush.msra.mxu0 %v1862
    %2159 = vmatpush.msra.mxu0 %v1853
    %2160 = vmatpush.msra.mxu0 %v1844
    %2161 = vmatpush.msra.mxu0 %v1835
    %2162 = vmatpush.msra.mxu0 %v1826
    %2163 = vmatpush.msra.mxu0 %v1817
    %2164 = vmatpush.msra.mxu0 %v1808
    %2165 = vmatpush.msra.mxu0 %v1799
    %2166 = vmatpush.msra.mxu0 %v1790
    %2167 = vmatpush.msra.mxu0 %v1781
    %2168 = vmatpush.msra.mxu0 %v1772
    %2169 = vmatpush.msra.mxu0 %v1763
    %2170 = vmatpush.msra.mxu0 %v1754
    %2171 = vmatmul.f32.gmra.mxu0 %v1602
    %v2172 = vpop.f32.mrf.mxu0
    %v2173 = vadd.f32 %v2144, %v2172
    %2174 = vmatmul.f32.gmra.mxu0 %v1603
    %v2175 = vpop.f32.mrf.mxu0
    %v2176 = vadd.f32 %v2147, %v2175
    %2177 = vmatmul.f32.gmra.mxu0 %v1604
    %v2178 = vpop.f32.mrf.mxu0
    %v2179 = vadd.f32 %v2150, %v2178
    %2180 = vmatmul.f32.gmra.mxu0 %v1605
    %v2181 = vpop.f32.mrf.mxu0
    %v2182 = vadd.f32 %v2153, %v2181
    %2183 = vdwg.mxu0
    %2184 = vmatpush.msra.mxu0 %v1746
    %2185 = vmatpush.msra.mxu0 %v1737
    %2186 = vmatpush.msra.mxu0 %v1728
    %2187 = vmatpush.msra.mxu0 %v1719
    %2188 = vmatpush.msra.mxu0 %v1710
    %2189 = vmatpush.msra.mxu0 %v1701
    %2190 = vmatpush.msra.mxu0 %v1692
    %2191 = vmatpush.msra.mxu0 %v1683
    %2192 = vmatpush.msra.mxu0 %v1674
    %2193 = vmatpush.msra.mxu0 %v1665
    %2194 = vmatpush.msra.mxu0 %v1656
    %2195 = vmatpush.msra.mxu0 %v1647
    %2196 = vmatpush.msra.mxu0 %v1638
    %2197 = vmatpush.msra.mxu0 %v1629
    %2198 = vmatpush.msra.mxu0 %v1620
    %2199 = vmatpush.msra.mxu0 %v1611
    %2200 = vmatmul.f32.gmra.mxu0 %v1593
    %v2201 = vpop.f32.mrf.mxu0
    %v2202 = vadd.f32 0.0, %v2201
    %2203 = vmatmul.f32.gmra.mxu0 %v1594
    %v2204 = vpop.f32.mrf.mxu0
    %v2205 = vadd.f32 0.0, %v2204
    %2206 = vmatmul.f32.gmra.mxu0 %v1595
    %v2207 = vpop.f32.mrf.mxu0
    %v2208 = vadd.f32 0.0, %v2207
    %2209 = vmatmul.f32.gmra.mxu0 %v1596
    %v2210 = vpop.f32.mrf.mxu0
    %v2211 = vadd.f32 0.0, %v2210
    %2212 = vdwg.mxu0
    %2213 = vmatpush.msra.mxu0 %v1890
    %2214 = vmatpush.msra.mxu0 %v1881
    %2215 = vmatpush.msra.mxu0 %v1872
    %2216 = vmatpush.msra.mxu0 %v1863
    %2217 = vmatpush.msra.mxu0 %v1854
    %2218 = vmatpush.msra.mxu0 %v1845
    %2219 = vmatpush.msra.mxu0 %v1836
    %2220 = vmatpush.msra.mxu0 %v1827
    %2221 = vmatpush.msra.mxu0 %v1818
    %2222 = vmatpush.msra.mxu0 %v1809
    %2223 = vmatpush.msra.mxu0 %v1800
    %2224 = vmatpush.msra.mxu0 %v1791
    %2225 = vmatpush.msra.mxu0 %v1782
    %2226 = vmatpush.msra.mxu0 %v1773
    %2227 = vmatpush.msra.mxu0 %v1764
    %2228 = vmatpush.msra.mxu0 %v1755
    %2229 = vmatmul.f32.gmra.mxu0 %v1602
    %v2230 = vpop.f32.mrf.mxu0
    %v2231 = vadd.f32 %v2202, %v2230
    %2232 = vmatmul.f32.gmra.mxu0 %v1603
    %v2233 = vpop.f32.mrf.mxu0
    %v2234 = vadd.f32 %v2205, %v2233
    %2235 = vmatmul.f32.gmra.mxu0 %v1604
    %v2236 = vpop.f32.mrf.mxu0
    %v2237 = vadd.f32 %v2208, %v2236
    %2238 = vmatmul.f32.gmra.mxu0 %v1605
    %v2239 = vpop.f32.mrf.mxu0
    %v2240 = vadd.f32 %v2211, %v2239
    %2241 = vdwg.mxu0
    %2242 = vmatpush.msra.mxu0 %v1747
    %2243 = vmatpush.msra.mxu0 %v1738
    %2244 = vmatpush.msra.mxu0 %v1729
    %2245 = vmatpush.msra.mxu0 %v1720
    %2246 = vmatpush.msra.mxu0 %v1711
    %2247 = vmatpush.msra.mxu0 %v1702
    %2248 = vmatpush.msra.mxu0 %v1693
    %2249 = vmatpush.msra.mxu0 %v1684
    %2250 = vmatpush.msra.mxu0 %v1675
    %2251 = vmatpush.msra.mxu0 %v1666
    %2252 = vmatpush.msra.mxu0 %v1657
    %2253 = vmatpush.msra.mxu0 %v1648
    %2254 = vmatpush.msra.mxu0 %v1639
    %2255 = vmatpush.msra.mxu0 %v1630
    %2256 = vmatpush.msra.mxu0 %v1621
    %2257 = vmatpush.msra.mxu0 %v1612
    %2258 = vmatmul.f32.gmra.mxu0 %v1593
    %v2259 = vpop.f32.mrf.mxu0
    %v2260 = vadd.f32 0.0, %v2259
    %2261 = vmatmul.f32.gmra.mxu0 %v1594
    %v2262 = vpop.f32.mrf.mxu0
    %v2263 = vadd.f32 0.0, %v2262
    %2264 = vmatmul.f32.gmra.mxu0 %v1595
    %v2265 = vpop.f32.mrf.mxu0
    %v2266 = vadd.f32 0.0, %v2265
    %2267 = vmatmul.f32.gmra.mxu0 %v1596
    %v2268 = vpop.f32.mrf.mxu0
    %v2269 = vadd.f32 0.0, %v2268
    %2270 = vdwg.mxu0
    %2271 = vmatpush.msra.mxu0 %v1891
    %2272 = vmatpush.msra.mxu0 %v1882
    %2273 = vmatpush.msra.mxu0 %v1873
    %2274 = vmatpush.msra.mxu0 %v1864
    %2275 = vmatpush.msra.mxu0 %v1855
    %2276 = vmatpush.msra.mxu0 %v1846
    %2277 = vmatpush.msra.mxu0 %v1837
    %2278 = vmatpush.msra.mxu0 %v1828
    %2279 = vmatpush.msra.mxu0 %v1819
    %2280 = vmatpush.msra.mxu0 %v1810
    %2281 = vmatpush.msra.mxu0 %v1801
    %2282 = vmatpush.msra.mxu0 %v1792
    %2283 = vmatpush.msra.mxu0 %v1783
    %2284 = vmatpush.msra.mxu0 %v1774
    %2285 = vmatpush.msra.mxu0 %v1765
    %2286 = vmatpush.msra.mxu0 %v1756
    %2287 = vmatmul.f32.gmra.mxu0 %v1602
    %v2288 = vpop.f32.mrf.mxu0
    %v2289 = vadd.f32 %v2260, %v2288
    %2290 = vmatmul.f32.gmra.mxu0 %v1603
    %v2291 = vpop.f32.mrf.mxu0
    %v2292 = vadd.f32 %v2263, %v2291
    %2293 = vmatmul.f32.gmra.mxu0 %v1604
    %v2294 = vpop.f32.mrf.mxu0
    %v2295 = vadd.f32 %v2266, %v2294
    %2296 = vmatmul.f32.gmra.mxu0 %v1605
    %v2297 = vpop.f32.mrf.mxu0
    %v2298 = vadd.f32 %v2269, %v2297
    %2299 = vdwg.mxu0
    %2300 = vmatpush.msra.mxu0 %v1748
    %2301 = vmatpush.msra.mxu0 %v1739
    %2302 = vmatpush.msra.mxu0 %v1730
    %2303 = vmatpush.msra.mxu0 %v1721
    %2304 = vmatpush.msra.mxu0 %v1712
    %2305 = vmatpush.msra.mxu0 %v1703
    %2306 = vmatpush.msra.mxu0 %v1694
    %2307 = vmatpush.msra.mxu0 %v1685
    %2308 = vmatpush.msra.mxu0 %v1676
    %2309 = vmatpush.msra.mxu0 %v1667
    %2310 = vmatpush.msra.mxu0 %v1658
    %2311 = vmatpush.msra.mxu0 %v1649
    %2312 = vmatpush.msra.mxu0 %v1640
    %2313 = vmatpush.msra.mxu0 %v1631
    %2314 = vmatpush.msra.mxu0 %v1622
    %2315 = vmatpush.msra.mxu0 %v1613
    %2316 = vmatmul.f32.gmra.mxu0 %v1593
    %v2317 = vpop.f32.mrf.mxu0
    %v2318 = vadd.f32 0.0, %v2317
    %2319 = vmatmul.f32.gmra.mxu0 %v1594
    %v2320 = vpop.f32.mrf.mxu0
    %v2321 = vadd.f32 0.0, %v2320
    %2322 = vmatmul.f32.gmra.mxu0 %v1595
    %v2323 = vpop.f32.mrf.mxu0
    %v2324 = vadd.f32 0.0, %v2323
    %2325 = vmatmul.f32.gmra.mxu0 %v1596
    %v2326 = vpop.f32.mrf.mxu0
    %v2327 = vadd.f32 0.0, %v2326
    %2328 = vdwg.mxu0
    %2329 = vmatpush.msra.mxu0 %v1892
    %2330 = vmatpush.msra.mxu0 %v1883
    %2331 = vmatpush.msra.mxu0 %v1874
    %2332 = vmatpush.msra.mxu0 %v1865
    %2333 = vmatpush.msra.mxu0 %v1856
    %2334 = vmatpush.msra.mxu0 %v1847
    %2335 = vmatpush.msra.mxu0 %v1838
    %2336 = vmatpush.msra.mxu0 %v1829
    %2337 = vmatpush.msra.mxu0 %v1820
    %2338 = vmatpush.msra.mxu0 %v1811
    %2339 = vmatpush.msra.mxu0 %v1802
    %2340 = vmatpush.msra.mxu0 %v1793
    %2341 = vmatpush.msra.mxu0 %v1784
    %2342 = vmatpush.msra.mxu0 %v1775
    %2343 = vmatpush.msra.mxu0 %v1766
    %2344 = vmatpush.msra.mxu0 %v1757
    %2345 = vmatmul.f32.gmra.mxu0 %v1602
    %v2346 = vpop.f32.mrf.mxu0
    %v2347 = vadd.f32 %v2318, %v2346
    %2348 = vmatmul.f32.gmra.mxu0 %v1603
    %v2349 = vpop.f32.mrf.mxu0
    %v2350 = vadd.f32 %v2321, %v2349
    %2351 = vmatmul.f32.gmra.mxu0 %v1604
    %v2352 = vpop.f32.mrf.mxu0
    %v2353 = vadd.f32 %v2324, %v2352
    %2354 = vmatmul.f32.gmra.mxu0 %v1605
    %v2355 = vpop.f32.mrf.mxu0
    %v2356 = vadd.f32 %v2327, %v2355
    %2357 = vdwg.mxu0
    %2358 = vmatpush.msra.mxu0 %v1749
    %2359 = vmatpush.msra.mxu0 %v1740
    %2360 = vmatpush.msra.mxu0 %v1731
    %2361 = vmatpush.msra.mxu0 %v1722
    %2362 = vmatpush.msra.mxu0 %v1713
    %2363 = vmatpush.msra.mxu0 %v1704
    %2364 = vmatpush.msra.mxu0 %v1695
    %2365 = vmatpush.msra.mxu0 %v1686
    %2366 = vmatpush.msra.mxu0 %v1677
    %2367 = vmatpush.msra.mxu0 %v1668
    %2368 = vmatpush.msra.mxu0 %v1659
    %2369 = vmatpush.msra.mxu0 %v1650
    %2370 = vmatpush.msra.mxu0 %v1641
    %2371 = vmatpush.msra.mxu0 %v1632
    %2372 = vmatpush.msra.mxu0 %v1623
    %2373 = vmatpush.msra.mxu0 %v1614
    %2374 = vmatmul.f32.gmra.mxu0 %v1593
    %v2375 = vpop.f32.mrf.mxu0
    %v2376 = vadd.f32 0.0, %v2375
    %2377 = vmatmul.f32.gmra.mxu0 %v1594
    %v2378 = vpop.f32.mrf.mxu0
    %v2379 = vadd.f32 0.0, %v2378
    %2380 = vmatmul.f32.gmra.mxu0 %v1595
    %v2381 = vpop.f32.mrf.mxu0
    %v2382 = vadd.f32 0.0, %v2381
    %2383 = vmatmul.f32.gmra.mxu0 %v1596
    %v2384 = vpop.f32.mrf.mxu0
    %v2385 = vadd.f32 0.0, %v2384
    %2386 = vdwg.mxu0
    %2387 = vmatpush.msra.mxu0 %v1893
    %2388 = vmatpush.msra.mxu0 %v1884
    %2389 = vmatpush.msra.mxu0 %v1875
    %2390 = vmatpush.msra.mxu0 %v1866
    %2391 = vmatpush.msra.mxu0 %v1857
    %2392 = vmatpush.msra.mxu0 %v1848
    %2393 = vmatpush.msra.mxu0 %v1839
    %2394 = vmatpush.msra.mxu0 %v1830
    %2395 = vmatpush.msra.mxu0 %v1821
    %2396 = vmatpush.msra.mxu0 %v1812
    %2397 = vmatpush.msra.mxu0 %v1803
    %2398 = vmatpush.msra.mxu0 %v1794
    %2399 = vmatpush.msra.mxu0 %v1785
    %2400 = vmatpush.msra.mxu0 %v1776
    %2401 = vmatpush.msra.mxu0 %v1767
    %2402 = vmatpush.msra.mxu0 %v1758
    %2403 = vmatmul.f32.gmra.mxu0 %v1602
    %v2404 = vpop.f32.mrf.mxu0
    %v2405 = vadd.f32 %v2376, %v2404
    %2406 = vmatmul.f32.gmra.mxu0 %v1603
    %v2407 = vpop.f32.mrf.mxu0
    %v2408 = vadd.f32 %v2379, %v2407
    %2409 = vmatmul.f32.gmra.mxu0 %v1604
    %v2410 = vpop.f32.mrf.mxu0
    %v2411 = vadd.f32 %v2382, %v2410
    %2412 = vmatmul.f32.gmra.mxu0 %v1605
    %v2413 = vpop.f32.mrf.mxu0
    %v2414 = vadd.f32 %v2385, %v2413
    %2415 = vdwg.mxu0
    %2416 = vmatpush.msra.mxu0 0.0
    %2417 = vmatpush.msra.mxu0 0.0
    %2418 = vmatpush.msra.mxu0 0.0
    %2419 = vmatpush.msra.mxu0 0.0
    %2420 = vmatpush.msra.mxu0 0.0
    %2421 = vmatpush.msra.mxu0 0.0
    %2422 = vmatpush.msra.mxu0 0.0
    %2423 = vmatpush.msra.mxu0 0.0
    %2424 = vmatpush.msra.mxu0 0.0
    %2425 = vmatpush.msra.mxu0 0.0
    %2426 = vmatpush.msra.mxu0 0.0
    %2427 = vmatpush.msra.mxu0 0.0
    %2428 = vmatpush.msra.mxu0 %v2066
    %2429 = vmatpush.msra.mxu0 %v2063
    %2430 = vmatpush.msra.mxu0 %v2060
    %2431 = vmatpush.msra.mxu0 %v2057
    %2432 = vmatmul.f32.gmra.mxu0 %v1031
    %v2433 = vpop.f32.mrf.mxu0
    %v2434 = vadd.f32 0.0, %v2433
    %2435 = vmatmul.f32.gmra.mxu0 %v1034
    %v2436 = vpop.f32.mrf.mxu0
    %v2437 = vadd.f32 0.0, %v2436
    %2438 = vmatmul.f32.gmra.mxu0 %v1037
    %v2439 = vpop.f32.mrf.mxu0
    %v2440 = vadd.f32 0.0, %v2439
    %2441 = vmatmul.f32.gmra.mxu0 %v1040
    %v2442 = vpop.f32.mrf.mxu0
    %v2443 = vadd.f32 0.0, %v2442
    %2444 = vdwg.mxu0
    %2445 = vmatpush.msra.mxu0 0.0
    %2446 = vmatpush.msra.mxu0 0.0
    %2447 = vmatpush.msra.mxu0 0.0
    %2448 = vmatpush.msra.mxu0 0.0
    %2449 = vmatpush.msra.mxu0 0.0
    %2450 = vmatpush.msra.mxu0 0.0
    %2451 = vmatpush.msra.mxu0 0.0
    %2452 = vmatpush.msra.mxu0 0.0
    %2453 = vmatpush.msra.mxu0 0.0
    %2454 = vmatpush.msra.mxu0 0.0
    %2455 = vmatpush.msra.mxu0 0.0
    %2456 = vmatpush.msra.mxu0 0.0
    %2457 = vmatpush.msra.mxu0 %v2124
    %2458 = vmatpush.msra.mxu0 %v2121
    %2459 = vmatpush.msra.mxu0 %v2118
    %2460 = vmatpush.msra.mxu0 %v2115
    %2461 = vmatmul.f32.gmra.mxu0 %v1031
    %v2462 = vpop.f32.mrf.mxu0
    %v2463 = vadd.f32 0.0, %v2462
    %2464 = vmatmul.f32.gmra.mxu0 %v1034
    %v2465 = vpop.f32.mrf.mxu0
    %v2466 = vadd.f32 0.0, %v2465
    %2467 = vmatmul.f32.gmra.mxu0 %v1037
    %v2468 = vpop.f32.mrf.mxu0
    %v2469 = vadd.f32 0.0, %v2468
    %2470 = vmatmul.f32.gmra.mxu0 %v1040
    %v2471 = vpop.f32.mrf.mxu0
    %v2472 = vadd.f32 0.0, %v2471
    %2473 = vdwg.mxu0
    %v2474 = vadd.f32 %v1941, %v2434
    %v2475 = vadd.f32 %v1999, %v2463
    %v2476 = vadd.f32 %v1944, %v2437
    %v2477 = vadd.f32 %v2002, %v2466
    %v2478 = vadd.f32 %v1947, %v2440
    %v2479 = vadd.f32 %v2005, %v2469
    %v2480 = vadd.f32 %v1950, %v2443
    %v2481 = vadd.f32 %v2008, %v2472
    %2482 = vmatpush.msra.mxu0 0.0
    %2483 = vmatpush.msra.mxu0 0.0
    %2484 = vmatpush.msra.mxu0 0.0
    %2485 = vmatpush.msra.mxu0 0.0
    %2486 = vmatpush.msra.mxu0 0.0
    %2487 = vmatpush.msra.mxu0 0.0
    %2488 = vmatpush.msra.mxu0 0.0
    %2489 = vmatpush.msra.mxu0 0.0
    %2490 = vmatpush.msra.mxu0 0.0
    %2491 = vmatpush.msra.mxu0 0.0
    %2492 = vmatpush.msra.mxu0 0.0
    %2493 = vmatpush.msra.mxu0 0.0
    %2494 = vmatpush.msra.mxu0 %v2182
    %2495 = vmatpush.msra.mxu0 %v2179
    %2496 = vmatpush.msra.mxu0 %v2176
    %2497 = vmatpush.msra.mxu0 %v2173
    %2498 = vmatmul.f32.gmra.mxu0 %v1109
    %v2499 = vpop.f32.mrf.mxu0
    %v2500 = vadd.f32 0.0, %v2499
    %2501 = vmatmul.f32.gmra.mxu0 %v1112
    %v2502 = vpop.f32.mrf.mxu0
    %v2503 = vadd.f32 0.0, %v2502
    %2504 = vmatmul.f32.gmra.mxu0 %v1115
    %v2505 = vpop.f32.mrf.mxu0
    %v2506 = vadd.f32 0.0, %v2505
    %2507 = vmatmul.f32.gmra.mxu0 %v1118
    %v2508 = vpop.f32.mrf.mxu0
    %v2509 = vadd.f32 0.0, %v2508
    %2510 = vdwg.mxu0
    %2511 = vmatpush.msra.mxu0 0.0
    %2512 = vmatpush.msra.mxu0 0.0
    %2513 = vmatpush.msra.mxu0 0.0
    %2514 = vmatpush.msra.mxu0 0.0
    %2515 = vmatpush.msra.mxu0 0.0
    %2516 = vmatpush.msra.mxu0 0.0
    %2517 = vmatpush.msra.mxu0 0.0
    %2518 = vmatpush.msra.mxu0 0.0
    %2519 = vmatpush.msra.mxu0 0.0
    %2520 = vmatpush.msra.mxu0 0.0
    %2521 = vmatpush.msra.mxu0 0.0
    %2522 = vmatpush.msra.mxu0 0.0
    %2523 = vmatpush.msra.mxu0 %v2240
    %2524 = vmatpush.msra.mxu0 %v2237
    %2525 = vmatpush.msra.mxu0 %v2234
    %2526 = vmatpush.msra.mxu0 %v2231
    %2527 = vmatmul.f32.gmra.mxu0 %v1109
    %v2528 = vpop.f32.mrf.mxu0
    %v2529 = vadd.f32 0.0, %v2528
    %2530 = vmatmul.f32.gmra.mxu0 %v1112
    %v2531 = vpop.f32.mrf.mxu0
    %v2532 = vadd.f32 0.0, %v2531
    %2533 = vmatmul.f32.gmra.mxu0 %v1115
    %v2534 = vpop.f32.mrf.mxu0
    %v2535 = vadd.f32 0.0, %v2534
    %2536 = vmatmul.f32.gmra.mxu0 %v1118
    %v2537 = vpop.f32.mrf.mxu0
    %v2538 = vadd.f32 0.0, %v2537
    %2539 = vdwg.mxu0
    %v2540 = vadd.f32 %v2474, %v2500
    %v2541 = vadd.f32 %v2475, %v2529
    %v2542 = vadd.f32 %v2476, %v2503
    %v2543 = vadd.f32 %v2477, %v2532
    %v2544 = vadd.f32 %v2478, %v2506
    %v2545 = vadd.f32 %v2479, %v2535
    %v2546 = vadd.f32 %v2480, %v2509
    %v2547 = vadd.f32 %v2481, %v2538
    %v2548 = vld [vmem:[#allocation17] sm:$0x3]
    %v2550 = vperm.slane %v2548, 0
    %v2551 = vperm.slane %v2548, 1
    %v2554 = vadd.f32 %v2540, %v2550
    %v2555 = vadd.f32 %v2541, %v2551
    %v2556 = vadd.f32 %v2542, %v2550
    %v2557 = vadd.f32 %v2543, %v2551
    %v2558 = vadd.f32 %v2544, %v2550
    %v2559 = vadd.f32 %v2545, %v2551
    %v2560 = vadd.f32 %v2546, %v2550
    %v2561 = vadd.f32 %v2547, %v2551
    %v2562 = vxor.u32 %v2554, 2147483648
    %v2563 = vxor.u32 %v2555, 2147483648
    %v2564 = vxor.u32 %v2556, 2147483648
    %v2565 = vxor.u32 %v2557, 2147483648
    %v2566 = vxor.u32 %v2558, 2147483648
    %v2567 = vxor.u32 %v2559, 2147483648
    %v2568 = vxor.u32 %v2560, 2147483648
    %v2569 = vxor.u32 %v2561, 2147483648
    %v2570 = vmul.f32 %v2562, 1.442695
    %v2571 = vpow.pop %v2570
    %v2572 = vmul.f32 %v2563, 1.442695
    %v2573 = vpow.pop %v2572
    %v2574 = vmul.f32 %v2564, 1.442695
    %v2575 = vpow.pop %v2574
    %v2576 = vmul.f32 %v2565, 1.442695
    %v2577 = vpow.pop %v2576
    %v2578 = vmul.f32 %v2566, 1.442695
    %v2579 = vpow.pop %v2578
    %v2580 = vmul.f32 %v2567, 1.442695
    %v2581 = vpow.pop %v2580
    %v2582 = vmul.f32 %v2568, 1.442695
    %v2583 = vpow.pop %v2582
    %v2584 = vmul.f32 %v2569, 1.442695
    %v2585 = vpow.pop %v2584
    %v2586 = vadd.f32 %v2571, 1.0
    %v2587 = vadd.f32 %v2573, 1.0
    %v2588 = vadd.f32 %v2575, 1.0
    %v2589 = vadd.f32 %v2577, 1.0
    %v2590 = vadd.f32 %v2579, 1.0
    %v2591 = vadd.f32 %v2581, 1.0
    %v2592 = vadd.f32 %v2583, 1.0
    %v2593 = vadd.f32 %v2585, 1.0
    %v2594 = vrcp.pop %v2586
    %v2595 = vmul.f32 %v2586, %v2594
    %v2596 = vsub.f32 1.0, %v2595
    %v2597 = vmul.f32 %v2594, %v2596
    %v2598 = vadd.f32 %v2594, %v2597
    %vm2599 = vweird.f32 %v2586
    %vm2600 = vweird.f32 %v2594
    %vm2601 = vmor %vm2599, %vm2600
    %v2602 = vsel %vm2601, %v2594, %v2598
    %v2603 = vand.u32 2147483647, %v2586
    %vm2604 = vcmp.eq.f32.partialorder %v2603, 8.507059e+37
    %v2605 = vand.u32 %v2586, 2147483648
    %v2606 = vor.u32 1.1754944e-38, %v2605
    %v2607 = vsel %vm2604, %v2606, %v2602
    %v2608 = vmul.f32 1.0, %v2607
    %v2609 = vrcp.pop %v2587
    %v2610 = vmul.f32 %v2587, %v2609
    %v2611 = vsub.f32 1.0, %v2610
    %v2612 = vmul.f32 %v2609, %v2611
    %v2613 = vadd.f32 %v2609, %v2612
    %vm2614 = vweird.f32 %v2587
    %vm2615 = vweird.f32 %v2609
    %vm2616 = vmor %vm2614, %vm2615
    %v2617 = vsel %vm2616, %v2609, %v2613
    %v2618 = vand.u32 2147483647, %v2587
    %vm2619 = vcmp.eq.f32.partialorder %v2618, 8.507059e+37
    %v2620 = vand.u32 %v2587, 2147483648
    %v2621 = vor.u32 1.1754944e-38, %v2620
    %v2622 = vsel %vm2619, %v2621, %v2617
    %v2623 = vmul.f32 1.0, %v2622
    %v2624 = vrcp.pop %v2588
    %v2625 = vmul.f32 %v2588, %v2624
    %v2626 = vsub.f32 1.0, %v2625
    %v2627 = vmul.f32 %v2624, %v2626
    %v2628 = vadd.f32 %v2624, %v2627
    %vm2629 = vweird.f32 %v2588
    %vm2630 = vweird.f32 %v2624
    %vm2631 = vmor %vm2629, %vm2630
    %v2632 = vsel %vm2631, %v2624, %v2628
    %v2633 = vand.u32 2147483647, %v2588
    %vm2634 = vcmp.eq.f32.partialorder %v2633, 8.507059e+37
    %v2635 = vand.u32 %v2588, 2147483648
    %v2636 = vor.u32 1.1754944e-38, %v2635
    %v2637 = vsel %vm2634, %v2636, %v2632
    %v2638 = vmul.f32 1.0, %v2637
    %v2639 = vrcp.pop %v2589
    %v2640 = vmul.f32 %v2589, %v2639
    %v2641 = vsub.f32 1.0, %v2640
    %v2642 = vmul.f32 %v2639, %v2641
    %v2643 = vadd.f32 %v2639, %v2642
    %vm2644 = vweird.f32 %v2589
    %vm2645 = vweird.f32 %v2639
    %vm2646 = vmor %vm2644, %vm2645
    %v2647 = vsel %vm2646, %v2639, %v2643
    %v2648 = vand.u32 2147483647, %v2589
    %vm2649 = vcmp.eq.f32.partialorder %v2648, 8.507059e+37
    %v2650 = vand.u32 %v2589, 2147483648
    %v2651 = vor.u32 1.1754944e-38, %v2650
    %v2652 = vsel %vm2649, %v2651, %v2647
    %v2653 = vmul.f32 1.0, %v2652
    %v2654 = vrcp.pop %v2590
    %v2655 = vmul.f32 %v2590, %v2654
    %v2656 = vsub.f32 1.0, %v2655
    %v2657 = vmul.f32 %v2654, %v2656
    %v2658 = vadd.f32 %v2654, %v2657
    %vm2659 = vweird.f32 %v2590
    %vm2660 = vweird.f32 %v2654
    %vm2661 = vmor %vm2659, %vm2660
    %v2662 = vsel %vm2661, %v2654, %v2658
    %v2663 = vand.u32 2147483647, %v2590
    %vm2664 = vcmp.eq.f32.partialorder %v2663, 8.507059e+37
    %v2665 = vand.u32 %v2590, 2147483648
    %v2666 = vor.u32 1.1754944e-38, %v2665
    %v2667 = vsel %vm2664, %v2666, %v2662
    %v2668 = vmul.f32 1.0, %v2667
    %v2669 = vrcp.pop %v2591
    %v2670 = vmul.f32 %v2591, %v2669
    %v2671 = vsub.f32 1.0, %v2670
    %v2672 = vmul.f32 %v2669, %v2671
    %v2673 = vadd.f32 %v2669, %v2672
    %vm2674 = vweird.f32 %v2591
    %vm2675 = vweird.f32 %v2669
    %vm2676 = vmor %vm2674, %vm2675
    %v2677 = vsel %vm2676, %v2669, %v2673
    %v2678 = vand.u32 2147483647, %v2591
    %vm2679 = vcmp.eq.f32.partialorder %v2678, 8.507059e+37
    %v2680 = vand.u32 %v2591, 2147483648
    %v2681 = vor.u32 1.1754944e-38, %v2680
    %v2682 = vsel %vm2679, %v2681, %v2677
    %v2683 = vmul.f32 1.0, %v2682
    %v2684 = vrcp.pop %v2592
    %v2685 = vmul.f32 %v2592, %v2684
    %v2686 = vsub.f32 1.0, %v2685
    %v2687 = vmul.f32 %v2684, %v2686
    %v2688 = vadd.f32 %v2684, %v2687
    %vm2689 = vweird.f32 %v2592
    %vm2690 = vweird.f32 %v2684
    %vm2691 = vmor %vm2689, %vm2690
    %v2692 = vsel %vm2691, %v2684, %v2688
    %v2693 = vand.u32 2147483647, %v2592
    %vm2694 = vcmp.eq.f32.partialorder %v2693, 8.507059e+37
    %v2695 = vand.u32 %v2592, 2147483648
    %v2696 = vor.u32 1.1754944e-38, %v2695
    %v2697 = vsel %vm2694, %v2696, %v2692
    %v2698 = vmul.f32 1.0, %v2697
    %v2699 = vrcp.pop %v2593
    %v2700 = vmul.f32 %v2593, %v2699
    %v2701 = vsub.f32 1.0, %v2700
    %v2702 = vmul.f32 %v2699, %v2701
    %v2703 = vadd.f32 %v2699, %v2702
    %vm2704 = vweird.f32 %v2593
    %vm2705 = vweird.f32 %v2699
    %vm2706 = vmor %vm2704, %vm2705
    %v2707 = vsel %vm2706, %v2699, %v2703
    %v2708 = vand.u32 2147483647, %v2593
    %vm2709 = vcmp.eq.f32.partialorder %v2708, 8.507059e+37
    %v2710 = vand.u32 %v2593, 2147483648
    %v2711 = vor.u32 1.1754944e-38, %v2710
    %v2712 = vsel %vm2709, %v2711, %v2707
    %v2713 = vmul.f32 1.0, %v2712
    %v2714 = vmul.f32 %v2608, %v1602
    %v2715 = vmul.f32 %v2638, %v1603
    %v2716 = vmul.f32 %v2668, %v1604
    %v2717 = vmul.f32 %v2698, %v1605
    %v2718 = vld [vmem:[#allocation16] sm:$0xff]
    %v2719 = vld [vmem:[#allocation16 + $0x8] sm:$0xff]
    %v2720 = vld [vmem:[#allocation16 + $0x10] sm:$0xff]
    %v2721 = vld [vmem:[#allocation16 + $0x18] sm:$0xff]
    %v2722 = vld [vmem:[#allocation16 + $0x20] sm:$0xff]
    %v2723 = vld [vmem:[#allocation16 + $0x28] sm:$0xff]
    %v2724 = vld [vmem:[#allocation16 + $0x30] sm:$0xff]
    %v2725 = vld [vmem:[#allocation16 + $0x38] sm:$0xff]
    %v2726 = vld [vmem:[#allocation16 + $0x40] sm:$0xff]
    %v2727 = vld [vmem:[#allocation16 + $0x48] sm:$0xff]
    %v2728 = vld [vmem:[#allocation16 + $0x50] sm:$0xff]
    %v2729 = vld [vmem:[#allocation16 + $0x58] sm:$0xff]
    %v2730 = vld [vmem:[#allocation16 + $0x60] sm:$0xff]
    %v2731 = vld [vmem:[#allocation16 + $0x68] sm:$0xff]
    %v2732 = vld [vmem:[#allocation16 + $0x70] sm:$0xff]
    %v2733 = vld [vmem:[#allocation16 + $0x78] sm:$0xff]
    %v2734 = vld [vmem:[#allocation16 + $0x80] sm:$0xff]
    %v2735 = vld [vmem:[#allocation16 + $0x88] sm:$0xff]
    %v2736 = vld [vmem:[#allocation16 + $0x90] sm:$0xff]
    %v2737 = vld [vmem:[#allocation16 + $0x98] sm:$0xff]
    %v2738 = vld [vmem:[#allocation16 + $0xa0] sm:$0xff]
    %v2739 = vld [vmem:[#allocation16 + $0xa8] sm:$0xff]
    %v2740 = vld [vmem:[#allocation16 + $0xb0] sm:$0xff]
    %v2741 = vld [vmem:[#allocation16 + $0xb8] sm:$0xff]
    %v2742 = vld [vmem:[#allocation16 + $0xc0] sm:$0xff]
    %v2743 = vld [vmem:[#allocation16 + $0xc8] sm:$0xff]
    %v2744 = vld [vmem:[#allocation16 + $0xd0] sm:$0xff]
    %v2745 = vld [vmem:[#allocation16 + $0xd8] sm:$0xff]
    %v2746 = vld [vmem:[#allocation16 + $0xe0] sm:$0xff]
    %v2747 = vld [vmem:[#allocation16 + $0xe8] sm:$0xff]
    %v2748 = vld [vmem:[#allocation16 + $0xf0] sm:$0xff]
    %v2749 = vld [vmem:[#allocation16 + $0xf8] sm:$0xff]
    %v2750 = vld [vmem:[#allocation16 + $0x100] sm:$0xff]
    %v2751 = vld [vmem:[#allocation16 + $0x108] sm:$0xff]
    %v2752 = vld [vmem:[#allocation16 + $0x110] sm:$0xff]
    %v2753 = vld [vmem:[#allocation16 + $0x118] sm:$0xff]
    %v2754 = vld [vmem:[#allocation16 + $0x120] sm:$0xff]
    %v2755 = vld [vmem:[#allocation16 + $0x128] sm:$0xff]
    %v2756 = vld [vmem:[#allocation16 + $0x130] sm:$0xff]
    %v2757 = vld [vmem:[#allocation16 + $0x138] sm:$0xff]
    %v2758 = vld [vmem:[#allocation16 + $0x140] sm:$0xff]
    %v2759 = vld [vmem:[#allocation16 + $0x148] sm:$0xff]
    %v2760 = vld [vmem:[#allocation16 + $0x150] sm:$0xff]
    %v2761 = vld [vmem:[#allocation16 + $0x158] sm:$0xff]
    %v2762 = vld [vmem:[#allocation16 + $0x160] sm:$0xff]
    %v2763 = vld [vmem:[#allocation16 + $0x168] sm:$0xff]
    %v2764 = vld [vmem:[#allocation16 + $0x170] sm:$0xff]
    %v2765 = vld [vmem:[#allocation16 + $0x178] sm:$0xff]
    %2766 = vmatpush.msra.mxu0 %v2763
    %2767 = vmatpush.msra.mxu0 %v2760
    %2768 = vmatpush.msra.mxu0 %v2757
    %2769 = vmatpush.msra.mxu0 %v2754
    %2770 = vmatpush.msra.mxu0 %v2751
    %2771 = vmatpush.msra.mxu0 %v2748
    %2772 = vmatpush.msra.mxu0 %v2745
    %2773 = vmatpush.msra.mxu0 %v2742
    %2774 = vmatpush.msra.mxu0 %v2739
    %2775 = vmatpush.msra.mxu0 %v2736
    %2776 = vmatpush.msra.mxu0 %v2733
    %2777 = vmatpush.msra.mxu0 %v2730
    %2778 = vmatpush.msra.mxu0 %v2727
    %2779 = vmatpush.msra.mxu0 %v2724
    %2780 = vmatpush.msra.mxu0 %v2721
    %2781 = vmatpush.msra.mxu0 %v2718
    %2782 = vmatmul.f32.gmra.mxu0 %v2714
    %v2783 = vpop.f32.mrf.mxu0
    %v2784 = vadd.f32 0.0, %v2783
    %2785 = vmatmul.f32.gmra.mxu0 %v2715
    %v2786 = vpop.f32.mrf.mxu0
    %v2787 = vadd.f32 0.0, %v2786
    %2788 = vmatmul.f32.gmra.mxu0 %v2716
    %v2789 = vpop.f32.mrf.mxu0
    %v2790 = vadd.f32 0.0, %v2789
    %2791 = vmatmul.f32.gmra.mxu0 %v2717
    %v2792 = vpop.f32.mrf.mxu0
    %v2793 = vadd.f32 0.0, %v2792
    %2794 = vdwg.mxu0
    %2795 = vmatpush.msra.mxu0 %v2764
    %2796 = vmatpush.msra.mxu0 %v2761
    %2797 = vmatpush.msra.mxu0 %v2758
    %2798 = vmatpush.msra.mxu0 %v2755
    %2799 = vmatpush.msra.mxu0 %v2752
    %2800 = vmatpush.msra.mxu0 %v2749
    %2801 = vmatpush.msra.mxu0 %v2746
    %2802 = vmatpush.msra.mxu0 %v2743
    %2803 = vmatpush.msra.mxu0 %v2740
    %2804 = vmatpush.msra.mxu0 %v2737
    %2805 = vmatpush.msra.mxu0 %v2734
    %2806 = vmatpush.msra.mxu0 %v2731
    %2807 = vmatpush.msra.mxu0 %v2728
    %2808 = vmatpush.msra.mxu0 %v2725
    %2809 = vmatpush.msra.mxu0 %v2722
    %2810 = vmatpush.msra.mxu0 %v2719
    %2811 = vmatmul.f32.gmra.mxu0 %v2714
    %v2812 = vpop.f32.mrf.mxu0
    %v2813 = vadd.f32 0.0, %v2812
    %2814 = vmatmul.f32.gmra.mxu0 %v2715
    %v2815 = vpop.f32.mrf.mxu0
    %v2816 = vadd.f32 0.0, %v2815
    %2817 = vmatmul.f32.gmra.mxu0 %v2716
    %v2818 = vpop.f32.mrf.mxu0
    %v2819 = vadd.f32 0.0, %v2818
    %2820 = vmatmul.f32.gmra.mxu0 %v2717
    %v2821 = vpop.f32.mrf.mxu0
    %v2822 = vadd.f32 0.0, %v2821
    %2823 = vdwg.mxu0
    %2824 = vmatpush.msra.mxu0 %v2765
    %2825 = vmatpush.msra.mxu0 %v2762
    %2826 = vmatpush.msra.mxu0 %v2759
    %2827 = vmatpush.msra.mxu0 %v2756
    %2828 = vmatpush.msra.mxu0 %v2753
    %2829 = vmatpush.msra.mxu0 %v2750
    %2830 = vmatpush.msra.mxu0 %v2747
    %2831 = vmatpush.msra.mxu0 %v2744
    %2832 = vmatpush.msra.mxu0 %v2741
    %2833 = vmatpush.msra.mxu0 %v2738
    %2834 = vmatpush.msra.mxu0 %v2735
    %2835 = vmatpush.msra.mxu0 %v2732
    %2836 = vmatpush.msra.mxu0 %v2729
    %2837 = vmatpush.msra.mxu0 %v2726
    %2838 = vmatpush.msra.mxu0 %v2723
    %2839 = vmatpush.msra.mxu0 %v2720
    %2840 = vmatmul.f32.gmra.mxu0 %v2714
    %v2841 = vpop.f32.mrf.mxu0
    %v2842 = vadd.f32 0.0, %v2841
    %2843 = vmatmul.f32.gmra.mxu0 %v2715
    %v2844 = vpop.f32.mrf.mxu0
    %v2845 = vadd.f32 0.0, %v2844
    %2846 = vmatmul.f32.gmra.mxu0 %v2716
    %v2847 = vpop.f32.mrf.mxu0
    %v2848 = vadd.f32 0.0, %v2847
    %2849 = vmatmul.f32.gmra.mxu0 %v2717
    %v2850 = vpop.f32.mrf.mxu0
    %v2851 = vadd.f32 0.0, %v2850
    %2852 = vdwg.mxu0
    %v2853 = vadd.f32 %v2289, %v2784
    %v2854 = vadd.f32 %v2292, %v2787
    %v2855 = vadd.f32 %v2295, %v2790
    %v2856 = vadd.f32 %v2298, %v2793
    %v2857 = vadd.f32 %v2347, %v2813
    %v2858 = vadd.f32 %v2350, %v2816
    %v2859 = vadd.f32 %v2353, %v2819
    %v2860 = vadd.f32 %v2356, %v2822
    %2861 = vmatpush.msra.mxu0 0.0
    %2862 = vmatpush.msra.mxu0 0.0
    %2863 = vmatpush.msra.mxu0 0.0
    %2864 = vmatpush.msra.mxu0 0.0
    %2865 = vmatpush.msra.mxu0 0.0
    %2866 = vmatpush.msra.mxu0 0.0
    %2867 = vmatpush.msra.mxu0 0.0
    %2868 = vmatpush.msra.mxu0 0.0
    %2869 = vmatpush.msra.mxu0 0.0
    %2870 = vmatpush.msra.mxu0 0.0
    %2871 = vmatpush.msra.mxu0 0.0
    %2872 = vmatpush.msra.mxu0 0.0
    %2873 = vmatpush.msra.mxu0 %v2860
    %2874 = vmatpush.msra.mxu0 %v2859
    %2875 = vmatpush.msra.mxu0 %v2858
    %2876 = vmatpush.msra.mxu0 %v2857
    %2877 = vmatmul.f32.gmra.mxu0 %v1031
    %v2878 = vpop.f32.mrf.mxu0
    %v2879 = vadd.f32 0.0, %v2878
    %2880 = vmatmul.f32.gmra.mxu0 %v1034
    %v2881 = vpop.f32.mrf.mxu0
    %v2882 = vadd.f32 0.0, %v2881
    %2883 = vmatmul.f32.gmra.mxu0 %v1037
    %v2884 = vpop.f32.mrf.mxu0
    %v2885 = vadd.f32 0.0, %v2884
    %2886 = vmatmul.f32.gmra.mxu0 %v1040
    %v2887 = vpop.f32.mrf.mxu0
    %v2888 = vadd.f32 0.0, %v2887
    %2889 = vdwg.mxu0
    %v2890 = vadd.f32 %v2853, %v2879
    %v2891 = vadd.f32 %v2854, %v2882
    %v2892 = vadd.f32 %v2855, %v2885
    %v2893 = vadd.f32 %v2856, %v2888
    %v2894 = vadd.f32 %v2405, %v2842
    %v2895 = vadd.f32 %v2408, %v2845
    %v2896 = vadd.f32 %v2411, %v2848
    %v2897 = vadd.f32 %v2414, %v2851
    %2898 = vmatpush.msra.mxu0 0.0
    %2899 = vmatpush.msra.mxu0 0.0
    %2900 = vmatpush.msra.mxu0 0.0
    %2901 = vmatpush.msra.mxu0 0.0
    %2902 = vmatpush.msra.mxu0 0.0
    %2903 = vmatpush.msra.mxu0 0.0
    %2904 = vmatpush.msra.mxu0 0.0
    %2905 = vmatpush.msra.mxu0 0.0
    %2906 = vmatpush.msra.mxu0 0.0
    %2907 = vmatpush.msra.mxu0 0.0
    %2908 = vmatpush.msra.mxu0 0.0
    %2909 = vmatpush.msra.mxu0 0.0
    %2910 = vmatpush.msra.mxu0 %v2897
    %2911 = vmatpush.msra.mxu0 %v2896
    %2912 = vmatpush.msra.mxu0 %v2895
    %2913 = vmatpush.msra.mxu0 %v2894
    %2914 = vmatmul.f32.gmra.mxu0 %v1109
    %v2915 = vpop.f32.mrf.mxu0
    %v2916 = vadd.f32 0.0, %v2915
    %2917 = vmatmul.f32.gmra.mxu0 %v1112
    %v2918 = vpop.f32.mrf.mxu0
    %v2919 = vadd.f32 0.0, %v2918
    %2920 = vmatmul.f32.gmra.mxu0 %v1115
    %v2921 = vpop.f32.mrf.mxu0
    %v2922 = vadd.f32 0.0, %v2921
    %2923 = vmatmul.f32.gmra.mxu0 %v1118
    %v2924 = vpop.f32.mrf.mxu0
    %v2925 = vadd.f32 0.0, %v2924
    %2926 = vdwg.mxu0
    %v2927 = vadd.f32 %v2890, %v2916
    %v2928 = vadd.f32 %v2891, %v2919
    %v2929 = vadd.f32 %v2892, %v2922
    %v2930 = vadd.f32 %v2893, %v2925
    %v2931 = vld [vmem:[#allocation19] sm:$0x1]
    %v2933 = vperm.slane %v2931, 0
    %v2935 = vadd.f32 %v2927, %v2933
    %v2936 = vadd.f32 %v2928, %v2933
    %v2937 = vadd.f32 %v2929, %v2933
    %v2938 = vadd.f32 %v2930, %v2933
    %v2939 = vtanh.pop %v2935
    %v2940 = vtanh.pop %v2936
    %v2941 = vtanh.pop %v2937
    %v2942 = vtanh.pop %v2938
    %v2943 = vmul.f32 %v2623, %v1602
    %v2944 = vmul.f32 %v2653, %v1603
    %v2945 = vmul.f32 %v2683, %v1604
    %v2946 = vmul.f32 %v2713, %v1605
    %v2947 = vsub.f32 1.0, %v2623
    %v2948 = vsub.f32 1.0, %v2653
    %v2949 = vsub.f32 1.0, %v2683
    %v2950 = vsub.f32 1.0, %v2713
    %v2951 = vmul.f32 %v2947, %v2939
    %v2952 = vmul.f32 %v2948, %v2940
    %v2953 = vmul.f32 %v2949, %v2941
    %v2954 = vmul.f32 %v2950, %v2942
    %v2955 = vadd.f32 %v2943, %v2951
    %v2956 = vadd.f32 %v2944, %v2952
    %v2957 = vadd.f32 %v2945, %v2953
    %v2958 = vadd.f32 %v2946, %v2954
    %s2959 = scalar_lea.vmem [#allocation20], 32
    %2960 = vst [vmem:[%s2959] sm:$0xff] %v2955
    %2961 = vst [vmem:[%s2959 + $0x8] sm:$0xff] %v2956
    %2962 = vst [vmem:[%s2959 + $0x10] sm:$0xff] %v2957
    %2963 = vst [vmem:[%s2959 + $0x18] sm:$0xff] %v2958
    // Predicated region
    $region90: #{tpu_custom_call.1} parent=1 // pred_check
      _
    $region91: #{tpu_custom_call.1} parent=1 // pred_check_branch
      %2965 = sbr.rel (0) target = $region93
    $region92: #{tpu_custom_call.1} parent=1 // pred_region
      %2967 = vsyncadd [#allocation4], 0
      %s2968 = sshll.u32 [#allocation20], 4
      %s2969 = int_to_ptr.vmem [resolvable:$true] %s2968
      %s2970 = sshll.u32 %s11, 4
      %s2971 = int_to_ptr.hbm [resolvable:$true] %s2970
      %2976 = dma.vmem_to_hbm [thread:$0]  %s2969, 1024, %s2971, [#allocation4], 128, 128, 8
    $region93: #{tpu_custom_call.1} parent=1 // pred_fallthru
      _
    // Predicated region
    $region94: #{tpu_custom_call.1} parent=1 // pred_check
      _
    $region95: #{tpu_custom_call.1} parent=1 // pred_check_branch
      %2978 = sbr.rel (0) target = $region97
    $region96: #{tpu_custom_call.1} parent=1 // pred_region
      %2980 = dma.done [#allocation4], 1024
    $region97: #{tpu_custom_call.1} parent=1 // pred_fallthru
      _
    %2981 = vsyncpa [#allocation3], 1
    %2982 = vsyncpa [#allocation6], 1
    %2983 = vsyncpa [#allocation9], 1
    %2984 = vsyncpa [#allocation12], 1
    %2985 = vsyncpa [#allocation15], 1
    %2986 = vsyncpa [#allocation18], 1
    %2987 = vsyncpa [#allocation4], 1

</llo_original>
